<compile_context>
chip_gen: v7x
topology: tpu7x:2x2x1
jax: 0.10.0
libtpu: 0.0.40
codegen_flags: <defaults>
</compile_context>

<pallas_src>
import jax
import jax.numpy as jnp
from jax import lax
from jax.experimental import pallas as pl
from jax.experimental.pallas import tpu as pltpu

LEAK = 0.2


def _round_up(x, m):
    return (x + m - 1) // m * m


# ----------------------------- fused Pallas kernel ------------------------------
def _make_refine_kernel(Hq, Wq, Wr, P, dilations):
    C = 32
    No = Hq * Wr                       # interior image rows, row-padded layout
    LEAD = _round_up(P, 8)             # leading/trailing slack, sublane aligned
    BASE0 = LEAD + P * Wr              # flat index of the first interior row
    NFLAT = 2 * LEAD + (Hq + 2 * P) * Wr

    def kernel(aug_ref, hyp_ref, w_nb_ref, b_nb_ref, w_res_ref, b_res_ref,
               w_cn_ref, b_cn_ref, out_ref, pad_ref, tap_ref):
        # Zero only the halo (top halo rows + lead slack, bottom halo rows + trail
        # slack).  Interior-row halo columns are forced to zero on every activation
        # write below, so every conv sees correct zero padding.
        pad_ref[0:BASE0, :] = jnp.zeros((BASE0, C), jnp.float32)
        pad_ref[BASE0 + No:NFLAT, :] = jnp.zeros((NFLAT - BASE0 - No, C), jnp.float32)

        # Interior-column mask, built once and reused for all activation writes.
        col = lax.broadcasted_iota(jnp.int32, (No, 1), 0) % Wr
        col_mask = ((col >= P) & (col < P + Wq)).astype(jnp.float32)

        def leaky(v):
            return jnp.where(v > 0, v, LEAK * v)

        def put(x):
            # Write activation into interior rows; halo columns zeroed so the next
            # conv's shifted tap reads see correct zero padding.
            pad_ref[BASE0:BASE0 + No, :] = x * col_mask

        def conv3x3(w_block, bias, dil):
            # Pack the 9 shifted windows along K into tap_ref [No, 9*C] (bf16),
            # then a single [No, 288] x [288, Cout] MXU matmul with f32 accumulation.
            for dy in range(3):
                for dx in range(3):
                    k = dy * 3 + dx
                    s = BASE0 + (dy - 1) * dil * Wr + (dx - 1) * dil
                    tap_ref[:, k * C:(k + 1) * C] = \
                        pad_ref[s:s + No, :].astype(jnp.bfloat16)
            return jnp.dot(tap_ref[...], w_block,
                           preferred_element_type=jnp.float32) + bias

        # conv_neighbors: 1x1 conv (160 -> 32) + LeakyReLU(0.2); aug is already bf16.
        x = leaky(jnp.dot(aug_ref[...], w_nb_ref[...],
                          preferred_element_type=jnp.float32) + b_nb_ref[...])

        # residual blocks: conv -> lrelu -> conv, skip add, lrelu
        for r, dil in enumerate(dilations):
            put(x)
            t = leaky(conv3x3(w_res_ref[(2 * r) * 9 * C:(2 * r + 1) * 9 * C, :],
                              b_res_ref[2 * r:2 * r + 1, :], dil))
            put(t)
            x = leaky(x + conv3x3(w_res_ref[(2 * r + 1) * 9 * C:(2 * r + 2) * 9 * C, :],
                                  b_res_ref[2 * r + 1:2 * r + 2, :], dil))

        # convn: 3x3 conv (32 -> 34)
        put(x)
        y = conv3x3(w_cn_ref[...], b_cn_ref[...], 1)

        # hyp_refined = hyp_set + dh (ReLU on channels 0 and 16); w passes through.
        # hyp is zero-padded to 34 channels in the wrapper, so one add + one masked
        # ReLU + one dense full-width store covers both outputs.
        v = y + hyp_ref[...]
        ch = lax.broadcasted_iota(jnp.int32, (1, v.shape[-1]), 1)
        out_ref[...] = jnp.where((ch == 0) | (ch == 16), jnp.maximum(v, 0.0), v)

    return kernel, NFLAT, No


def refine_stack(aug_pad, hyp_pad, params, Hq, Wq, Wr, P, dilations):
    """aug_pad: [B, No, 160] bf16, hyp_pad: [B, No, 34] f32 -> [B, No, 34] f32.
    No = Hq * Wr is the row-padded token count (Wr = row stride with halo)."""
    B, No, cin = aug_pad.shape
    cout = hyp_pad.shape[-1]
    c = 32
    n_conv = params["b_res"].shape[0]
    kernel, NFLAT, _ = _make_refine_kernel(Hq, Wq, Wr, P, tuple(dilations))
    return pl.pallas_call(
        kernel,
        out_shape=jax.ShapeDtypeStruct((B, No, cout), jnp.float32),
        grid=(B,),
        in_specs=[
            pl.BlockSpec((None, No, cin), lambda b: (b, 0, 0)),     # aug (bf16)
            pl.BlockSpec((None, No, cout), lambda b: (b, 0, 0)),    # hyp (f32, 34 ch)
            pl.BlockSpec((cin, c), lambda b: (0, 0)),
            pl.BlockSpec((1, c), lambda b: (0, 0)),
            pl.BlockSpec((n_conv * 9 * c, c), lambda b: (0, 0)),
            pl.BlockSpec((n_conv, c), lambda b: (0, 0)),
            pl.BlockSpec((9 * c, cout), lambda b: (0, 0)),
            pl.BlockSpec((1, cout), lambda b: (0, 0)),
        ],
        out_specs=pl.BlockSpec((None, No, cout), lambda b: (b, 0, 0)),
        scratch_shapes=[pltpu.VMEM((NFLAT, c), jnp.float32),        # padded activations
                        pltpu.VMEM((No, 9 * c), jnp.bfloat16)],     # K-packed taps
        compiler_params=pltpu.CompilerParams(
            dimension_semantics=("parallel",),
            vmem_limit_bytes=48 * 1024 * 1024),
    )(aug_pad, hyp_pad, params["w_nb"], params["b_nb"], params["w_res"],
      params["b_res"], params["w_cn"], params["b_cn"])


# --------------------------- layout plumbing (wrapper) ---------------------------
def to_padded_tokens(x_nchw, Wr, P, dtype):
    """NCHW -> [B, Hq*Wr, C] row-padded tokens (P halo columns each side, zeros)."""
    B, C, Hq, Wq = x_nchw.shape
    x = jnp.transpose(x_nchw, (0, 2, 3, 1))                         # NHWC
    x = jnp.pad(x, ((0, 0), (0, 0), (P, Wr - Wq - P), (0, 0)))
    return x.reshape(B, Hq * Wr, C).astype(dtype)


def from_padded_tokens(tok, Hq, Wq, Wr, P):
    """[B, Hq*Wr, C] row-padded tokens -> NCHW, halo columns dropped."""
    B, _, C = tok.shape
    x = tok.reshape(B, Hq, Wr, C)[:, :, P:P + Wq, :]
    return jnp.transpose(x, (0, 3, 1, 2))


# --------------------------------- plain-JAX glue --------------------------------
def _expand_plane(d, dx, dy, factor, off):
    B, _, Hc, Wc = d.shape
    out = (d[:, :, :, None, :, None]
           + dy[:, :, :, None, :, None] * off[None, None, None, :, None, None]
           + dx[:, :, :, None, :, None] * off[None, None, None, None, None, :])
    return out.reshape(B, 1, Hc * factor, Wc * factor)


def disp_up_tile(d, dx, dy, scale):
    off = jnp.arange(scale, dtype=jnp.float32) - (scale - 1) / 2.0
    return _expand_plane(d, dx, dy, scale, off)


def slant_keep_upsample(d, dx, dy, factor=2, fine_tile_px=4):
    off = (jnp.arange(factor, dtype=jnp.float32) - (factor - 1) / 2.0) * fine_tile_px
    return _expand_plane(d, dx, dy, factor, off)


def upsample_nearest2(x):
    return jnp.repeat(jnp.repeat(x, 2, axis=2), 2, axis=3)


def _grid_sample_x(fea, x_pix, y_pix):
    """F.grid_sample (bilinear, zeros padding); x_pix: [B,H,W], y_pix: [H] pixel coords."""
    B, C, H, W = fea.shape
    fea_t = jnp.transpose(fea, (0, 2, 3, 1))
    ypb = jnp.broadcast_to(y_pix[None, :, None], x_pix.shape)
    x0 = jnp.floor(x_pix)
    y0 = jnp.floor(ypb)
    wx1 = x_pix - x0
    wy1 = ypb - y0
    bidx = jnp.arange(B)[:, None, None]

    def tap(xc, yc, wgt):
        inb = (xc >= 0) & (xc <= W - 1) & (yc >= 0) & (yc <= H - 1)
        xi = jnp.clip(xc, 0, W - 1).astype(jnp.int32)
        yi = jnp.clip(yc, 0, H - 1).astype(jnp.int32)
        g = fea_t[bidx, yi, xi]                              # [B,H,W,C]
        return g * (wgt * inb.astype(fea.dtype))[..., None]

    out = (tap(x0, y0, (1 - wx1) * (1 - wy1))
           + tap(x0 + 1, y0, wx1 * (1 - wy1))
           + tap(x0, y0 + 1, (1 - wx1) * wy1)
           + tap(x0 + 1, y0 + 1, wx1 * wy1))
    return jnp.transpose(out, (0, 3, 1, 2))


def augmented_hypothesis(hyp, fea_l, fea_r, local=1):
    B, C, H, W = fea_l.shape
    Hq, Wq = hyp.shape[2], hyp.shape[3]
    scale = W // Wq
    assert scale == 4
    tile_expand = disp_up_tile(hyp[:, 0:1], hyp[:, 1:2], hyp[:, 2:3], scale)  # [B,1,H,W]
    coef_x = jnp.arange(W, dtype=jnp.float32)
    coef_dx = coef_x[None, None, :] - tile_expand[:, 0]                        # [B,H,W]
    y = jnp.arange(H, dtype=jnp.float32)
    y_norm = 2.0 * y / max(H - 1, 1) - 1.0
    y_pix = ((y_norm + 1.0) * H - 1.0) / 2.0            # align_corners=False unnormalize
    w_scale = max(W - 1, 1)

    costs = [jnp.sum(jnp.abs(fea_l), axis=1)]
    for offset in range(-local, local + 1):
        x_dex = jnp.clip(coef_dx + offset, 0.0, float(W - 1))
        x_norm = 2.0 * x_dex / w_scale - 1.0
        x_pix = ((x_norm + 1.0) * W - 1.0) / 2.0
        warp = _grid_sample_x(fea_r, x_pix, y_pix)
        costs.append(jnp.sum(jnp.abs(fea_l - warp), axis=1))
    aug = jnp.stack(costs, axis=1)                       # [B, 2+2*local, H, W]

    c = aug.shape[1]
    aug = aug.reshape(B, c, Hq, scale, Wq, scale)
    aug = aug.transpose(0, 3, 5, 1, 2, 4)
    return aug.reshape(B, scale * scale * c, Hq, Wq)     # [B, 64, Hq, Wq]


def mid_prop_forward(hyp, fea_l, fea_r, hyp_pre, params,
                     hyp_num=2, local=1, dilation=(1, 1)):
    assert hyp_num == 2 and hyp_pre is not None
    B, _, Hq, Wq = hyp.shape

    aug_hyp = augmented_hypothesis(hyp, fea_l, fea_r, local)            # [B,64,Hq,Wq]

    d_up = slant_keep_upsample(hyp_pre[:, 0:1], hyp_pre[:, 1:2], hyp_pre[:, 2:3],
                               factor=2, fine_tile_px=4)                # [B,1,Hq,Wq]
    dxy_up = upsample_nearest2(hyp_pre[:, 1:3])
    dscrpt_up = upsample_nearest2(hyp_pre[:, 3:])
    hyp_fine = jnp.concatenate([d_up, dxy_up, dscrpt_up], axis=1)       # [B,16,Hq,Wq]

    coarse_aug_hyp = augmented_hypothesis(hyp_fine, fea_l, fea_r, local)
    hyp_set = jnp.concatenate([hyp, hyp_fine], axis=1)                  # [B,32,Hq,Wq]
    aug_hyp_set = jnp.concatenate([aug_hyp, coarse_aug_hyp, hyp_set], axis=1)  # 160 ch

    # Row-padded token layout: P halo columns on each side of every image row,
    # row stride Wr rounded up to a multiple of 8 (sublane aligned shifted reads).
    P = max(1, max(dilation))
    Wr = _round_up(Wq + 2 * P, 8)
    cout = 17 * hyp_num
    aug_pad = to_padded_tokens(aug_hyp_set, Wr, P, jnp.bfloat16)        # bf16 DMA
    hyp34 = jnp.pad(hyp_set, ((0, 0), (0, cout - hyp_set.shape[1]), (0, 0), (0, 0)))
    hyp_pad = to_padded_tokens(hyp34, Wr, P, jnp.float32)

    out_pad = refine_stack(aug_pad, hyp_pad, params, Hq, Wq, Wr, P, dilation)
    out = from_padded_tokens(out_pad, Hq, Wq, Wr, P)                    # [B,34,Hq,Wq]

    hyp_refined = out[:, :16 * hyp_num]
    w = out[:, 16 * hyp_num:]
    return hyp_refined, w


# ----------------------------------- parameters ----------------------------------
def init_params(key, hyp_num=2, res_num=2, local=1):
    aug_c = 16 * (2 + 2 * local)            # 64
    cin = (aug_c + 16) * hyp_num            # 160
    c = 32
    cout = 17 * hyp_num                     # 34
    n_conv = 2 * res_num
    keys = jax.random.split(key, 4 + 2 * n_conv)

    def conv_w(k, co, ci, kh, kw):
        return jax.random.normal(k, (co, ci, kh, kw), jnp.float32) / jnp.sqrt(ci * kh * kw)

    w_nb = conv_w(keys[0], c, cin, 1, 1)
    b_nb = 0.05 * jax.random.normal(keys[1], (c,), jnp.float32)
    res_w, res_b = [], []
    for i in range(n_conv):
        res_w.append(conv_w(keys[2 + 2 * i], c, c, 3, 3))
        res_b.append(0.05 * jax.random.normal(keys[3 + 2 * i], (c,), jnp.float32))
    w_cn = conv_w(keys[2 + 2 * n_conv], cout, c, 3, 3)
    b_cn = 0.05 * jax.random.normal(keys[3 + 2 * n_conv], (cout,), jnp.float32)

    # kernel-friendly layouts: bf16 MXU weights (taps stacked along K), f32 biases
    return {
        "w_nb": jnp.transpose(w_nb.reshape(c, cin)).astype(jnp.bfloat16),       # [160, 32]
        "b_nb": b_nb.reshape(1, c),
        "w_res": jnp.concatenate(
            [w.transpose(2, 3, 1, 0).reshape(9 * c, c) for w in res_w],
            axis=0).astype(jnp.bfloat16),                                       # [n_conv*288, 32]
        "b_res": jnp.stack([b for b in res_b]),                                 # [n_conv, 32]
        "w_cn": w_cn.transpose(2, 3, 1, 0).reshape(9 * c, cout).astype(jnp.bfloat16),  # [288, 34]
        "b_cn": b_cn.reshape(1, cout),
    }


# -------------------------------------- main --------------------------------------
if __name__ == "__main__":
    B, C, H, W = 2, 4, 16, 16
    hyp_num, res_num, local = 2, 2, 1
    Hq, Wq = H // 4, W // 4
    Hp, Wp = Hq // 2, Wq // 2

    key = jax.random.PRNGKey(0)
    kp, k1, k2, k3, k4 = jax.random.split(key, 5)
    params = init_params(kp, hyp_num=hyp_num, res_num=res_num, local=local)
    fea_l = jax.random.normal(k1, (B, C, H, W), jnp.float32)
    fea_r = jax.random.normal(k2, (B, C, H, W), jnp.float32)
    hyp = jax.random.normal(k3, (B, 16, Hq, Wq), jnp.float32)
    hyp = hyp.at[:, 0].set(jnp.abs(hyp[:, 0]) * 3.0)            # positive disparities
    hyp_pre = jax.random.normal(k4, (B, 16, Hp, Wp), jnp.float32)
    hyp_pre = hyp_pre.at[:, 0].set(jnp.abs(hyp_pre[:, 0]) * 3.0)

    fwd = jax.jit(lambda h, fl, fr, hp: mid_prop_forward(
        h, fl, fr, hp, params, hyp_num=hyp_num, local=local, dilation=(1, 1)))
    hyp_refined, w = fwd(hyp, fea_l, fea_r, hyp_pre)
    jax.block_until_ready((hyp_refined, w))

    assert hyp_refined.shape == (B, 16 * hyp_num, Hq, Wq)
    assert w.shape == (B, hyp_num, Hq, Wq)
    print("KERNEL_OK")
</pallas_src>

<mosaic_0001>
module attributes {stable_mosaic.version = 11 : i64} {
  func.func @kernel(%arg0: i32, %arg1: memref<1x32x160xbf16, #tpu.memory_space<vmem>>, %arg2: memref<1x32x34xf32, #tpu.memory_space<vmem>>, %arg3: memref<160x32xbf16, #tpu.memory_space<vmem>>, %arg4: memref<1x32xf32, #tpu.memory_space<vmem>>, %arg5: memref<1152x32xbf16, #tpu.memory_space<vmem>>, %arg6: memref<4x32xf32, #tpu.memory_space<vmem>>, %arg7: memref<288x34xbf16, #tpu.memory_space<vmem>>, %arg8: memref<1x34xf32, #tpu.memory_space<vmem>>, %arg9: memref<1x32x34xf32, #tpu.memory_space<vmem>>, %arg10: memref<64x32xf32, #tpu.memory_space<vmem>>, %arg11: memref<32x288xbf16, #tpu.memory_space<vmem>>) attributes {dimension_semantics = [#tpu.dimension_semantics<parallel>], iteration_bounds = array<i64: 2>, scalar_prefetch = 0 : i64, scratch_operands = 2 : i64, tpu.core_type = #tpu.core_type<tc>, window_params = [{transform_indices = @transform_0, window_bounds = array<i64: 1, 32, 160>}, {transform_indices = @transform_1, window_bounds = array<i64: 1, 32, 34>}, {pipeline_mode = #tpu.pipeline_mode<synchronous>, transform_indices = @transform_2, window_bounds = array<i64: 160, 32>}, {pipeline_mode = #tpu.pipeline_mode<synchronous>, transform_indices = @transform_3, window_bounds = array<i64: 1, 32>}, {pipeline_mode = #tpu.pipeline_mode<synchronous>, transform_indices = @transform_4, window_bounds = array<i64: 1152, 32>}, {pipeline_mode = #tpu.pipeline_mode<synchronous>, transform_indices = @transform_5, window_bounds = array<i64: 4, 32>}, {pipeline_mode = #tpu.pipeline_mode<synchronous>, transform_indices = @transform_6, window_bounds = array<i64: 288, 34>}, {pipeline_mode = #tpu.pipeline_mode<synchronous>, transform_indices = @transform_7, window_bounds = array<i64: 1, 34>}, {transform_indices = @transform_8, window_bounds = array<i64: 1, 32, 34>}]} {
    %cst = arith.constant 0.000000e+00 : f32
    %0 = vector.broadcast %cst : f32 to vector<16x32xf32>
    %c0 = arith.constant 0 : index
    %c0_0 = arith.constant 0 : index
    %1 = vector.load %arg10[%c0, %c0_0] : memref<64x32xf32, #tpu.memory_space<vmem>>, vector<16x32xf32>
    tpu.vector_store %arg10[%c0, %c0_0], %0 {strides = array<i32>} : memref<64x32xf32, #tpu.memory_space<vmem>>, vector<16x32xf32>,
    %cst_1 = arith.constant 0.000000e+00 : f32
    %2 = vector.broadcast %cst_1 : f32 to vector<16x32xf32>
    %c48 = arith.constant 48 : index
    %c0_2 = arith.constant 0 : index
    %3 = vector.load %arg10[%c48, %c0_2] : memref<64x32xf32, #tpu.memory_space<vmem>>, vector<16x32xf32>
    tpu.vector_store %arg10[%c48, %c0_2], %2 {strides = array<i32>} : memref<64x32xf32, #tpu.memory_space<vmem>>, vector<16x32xf32>,
    %4 = tpu.iota {dimensions = array<i32: 0>} : vector<32x1xi32>
    %c8_i32 = arith.constant 8 : i32
    %c0_i32 = arith.constant 0 : i32
    %5 = arith.cmpi eq, %c8_i32, %c0_i32 : i32
    %c1_i32 = arith.constant 1 : i32
    %6 = arith.select %5, %c1_i32, %c8_i32 : i32
    %7 = vector.broadcast %6 : i32 to vector<32x1xi32>
    %8 = arith.remsi %4, %7 : vector<32x1xi32>
    %c0_i32_3 = arith.constant 0 : i32
    %9 = vector.broadcast %c0_i32_3 : i32 to vector<32x1xi32>
    %10 = arith.cmpi ne, %8, %9 : vector<32x1xi32>
    %c0_i32_4 = arith.constant 0 : i32
    %11 = vector.broadcast %c0_i32_4 : i32 to vector<32x1xi32>
    %12 = arith.cmpi slt, %8, %11 : vector<32x1xi32>
    %c0_i32_5 = arith.constant 0 : i32
    %13 = arith.cmpi slt, %6, %c0_i32_5 : i32
    %14 = vector.broadcast %13 : i1 to vector<32x1xi1>
    %15 = vector.broadcast %14 : vector<32x1xi1> to vector<32x1xi1>
    %16 = arith.xori %12, %15 : vector<32x1xi1>
    %17 = arith.andi %16, %10 : vector<32x1xi1>
    %18 = vector.broadcast %6 : i32 to vector<32x1xi32>
    %19 = arith.addi %8, %18 : vector<32x1xi32>
    %20 = arith.select %17, %19, %8 : vector<32x1xi1>, vector<32x1xi32>
    %c1_i32_6 = arith.constant 1 : i32
    %21 = vector.broadcast %c1_i32_6 : i32 to vector<32x1xi32>
    %22 = arith.cmpi sge, %20, %21 : vector<32x1xi32>
    %c5_i32 = arith.constant 5 : i32
    %23 = vector.broadcast %c5_i32 : i32 to vector<32x1xi32>
    %24 = arith.cmpi slt, %20, %23 : vector<32x1xi32>
    %25 = arith.andi %22, %24 : vector<32x1xi1>
    %26 = arith.extui %25 : vector<32x1xi1> to vector<32x1xi32>
    %27 = arith.sitofp %26 : vector<32x1xi32> to vector<32x1xf32>
    %c0_7 = arith.constant 0 : index
    %c0_8 = arith.constant 0 : index
    %c0_9 = arith.constant 0 : index
    %28 = vector.load %arg1[%c0_7, %c0_8, %c0_9] : memref<1x32x160xbf16, #tpu.memory_space<vmem>>, vector<1x32x160xbf16>
    %29 = vector.shape_cast %28 : vector<1x32x160xbf16> to vector<32x160xbf16>
    %c0_10 = arith.constant 0 : index
    %c0_11 = arith.constant 0 : index
    %30 = vector.load %arg3[%c0_10, %c0_11] : memref<160x32xbf16, #tpu.memory_space<vmem>>, vector<160x32xbf16>
    %cst_12 = arith.constant dense<0.000000e+00> : vector<32x32xf32>
    %31 = tpu.matmul %29, %30, %cst_12 {dimension_numbers = #tpu.dot_dimension_numbers<[1], [0], [0], [1], [0, 0, 1, 1], [], []>} : vector<32x160xbf16>, vector<160x32xbf16>, vector<32x32xf32> -> vector<32x32xf32>
    %c0_13 = arith.constant 0 : index
    %c0_14 = arith.constant 0 : index
    %32 = vector.load %arg4[%c0_13, %c0_14] : memref<1x32xf32, #tpu.memory_space<vmem>>, vector<1x32xf32>
    %33 = vector.broadcast %32 : vector<1x32xf32> to vector<32x32xf32>
    %34 = arith.addf %31, %33 : vector<32x32xf32>
    %cst_15 = arith.constant 0.000000e+00 : f32
    %35 = vector.broadcast %cst_15 : f32 to vector<32x32xf32>
    %36 = arith.cmpf ogt, %34, %35 : vector<32x32xf32>
    %cst_16 = arith.constant 2.000000e-01 : f32
    %37 = vector.broadcast %cst_16 : f32 to vector<32x32xf32>
    %38 = arith.mulf %37, %34 : vector<32x32xf32>
    %39 = arith.select %36, %34, %38 : vector<32x32xi1>, vector<32x32xf32>
    %40 = vector.broadcast %27 : vector<32x1xf32> to vector<32x32xf32>
    %41 = arith.mulf %39, %40 : vector<32x32xf32>
    %c16 = arith.constant 16 : index
    %c0_17 = arith.constant 0 : index
    %42 = vector.load %arg10[%c16, %c0_17] : memref<64x32xf32, #tpu.memory_space<vmem>>, vector<32x32xf32>
    tpu.vector_store %arg10[%c16, %c0_17], %41 {strides = array<i32>} : memref<64x32xf32, #tpu.memory_space<vmem>>, vector<32x32xf32>,
    %c0_18 = arith.constant 0 : index
    %c0_19 = arith.constant 0 : index
    %43 = vector.load %arg5[%c0_18, %c0_19] : memref<1152x32xbf16, #tpu.memory_space<vmem>>, vector<288x32xbf16>
    %c0_20 = arith.constant 0 : index
    %c0_21 = arith.constant 0 : index
    %44 = vector.load %arg6[%c0_20, %c0_21] : memref<4x32xf32, #tpu.memory_space<vmem>>, vector<1x32xf32>
    %c7 = arith.constant 7 : index
    %c0_22 = arith.constant 0 : index
    %45 = vector.load %arg10[%c7, %c0_22] : memref<64x32xf32, #tpu.memory_space<vmem>>, vector<32x32xf32>
    %46 = arith.truncf %45 : vector<32x32xf32> to vector<32x32xbf16>
    %c0_23 = arith.constant 0 : index
    %c0_24 = arith.constant 0 : index
    %47 = vector.load %arg11[%c0_23, %c0_24] : memref<32x288xbf16, #tpu.memory_space<vmem>>, vector<32x32xbf16>
    tpu.vector_store %arg11[%c0_23, %c0_24], %46 {strides = array<i32>} : memref<32x288xbf16, #tpu.memory_space<vmem>>, vector<32x32xbf16>,
    %c8 = arith.constant 8 : index
    %c0_25 = arith.constant 0 : index
    %48 = vector.load %arg10[%c8, %c0_25] : memref<64x32xf32, #tpu.memory_space<vmem>>, vector<32x32xf32>
    %49 = arith.truncf %48 : vector<32x32xf32> to vector<32x32xbf16>
    %c0_26 = arith.constant 0 : index
    %c32 = arith.constant 32 : index
    %50 = vector.load %arg11[%c0_26, %c32] : memref<32x288xbf16, #tpu.memory_space<vmem>>, vector<32x32xbf16>
    tpu.vector_store %arg11[%c0_26, %c32], %49 {strides = array<i32>} : memref<32x288xbf16, #tpu.memory_space<vmem>>, vector<32x32xbf16>,
    %c9 = arith.constant 9 : index
    %c0_27 = arith.constant 0 : index
    %51 = vector.load %arg10[%c9, %c0_27] : memref<64x32xf32, #tpu.memory_space<vmem>>, vector<32x32xf32>
    %52 = arith.truncf %51 : vector<32x32xf32> to vector<32x32xbf16>
    %c0_28 = arith.constant 0 : index
    %c64 = arith.constant 64 : index
    %53 = vector.load %arg11[%c0_28, %c64] : memref<32x288xbf16, #tpu.memory_space<vmem>>, vector<32x32xbf16>
    tpu.vector_store %arg11[%c0_28, %c64], %52 {strides = array<i32>} : memref<32x288xbf16, #tpu.memory_space<vmem>>, vector<32x32xbf16>,
    %c15 = arith.constant 15 : index
    %c0_29 = arith.constant 0 : index
    %54 = vector.load %arg10[%c15, %c0_29] : memref<64x32xf32, #tpu.memory_space<vmem>>, vector<32x32xf32>
    %55 = arith.truncf %54 : vector<32x32xf32> to vector<32x32xbf16>
    %c0_30 = arith.constant 0 : index
    %c96 = arith.constant 96 : index
    %56 = vector.load %arg11[%c0_30, %c96] : memref<32x288xbf16, #tpu.memory_space<vmem>>, vector<32x32xbf16>
    tpu.vector_store %arg11[%c0_30, %c96], %55 {strides = array<i32>} : memref<32x288xbf16, #tpu.memory_space<vmem>>, vector<32x32xbf16>,
    %c16_31 = arith.constant 16 : index
    %c0_32 = arith.constant 0 : index
    %57 = vector.load %arg10[%c16_31, %c0_32] : memref<64x32xf32, #tpu.memory_space<vmem>>, vector<32x32xf32>
    %58 = arith.truncf %57 : vector<32x32xf32> to vector<32x32xbf16>
    %c0_33 = arith.constant 0 : index
    %c128 = arith.constant 128 : index
    %59 = vector.load %arg11[%c0_33, %c128] : memref<32x288xbf16, #tpu.memory_space<vmem>>, vector<32x32xbf16>
    tpu.vector_store %arg11[%c0_33, %c128], %58 {strides = array<i32>} : memref<32x288xbf16, #tpu.memory_space<vmem>>, vector<32x32xbf16>,
    %c17 = arith.constant 17 : index
    %c0_34 = arith.constant 0 : index
    %60 = vector.load %arg10[%c17, %c0_34] : memref<64x32xf32, #tpu.memory_space<vmem>>, vector<32x32xf32>
    %61 = arith.truncf %60 : vector<32x32xf32> to vector<32x32xbf16>
    %c0_35 = arith.constant 0 : index
    %c160 = arith.constant 160 : index
    %62 = vector.load %arg11[%c0_35, %c160] : memref<32x288xbf16, #tpu.memory_space<vmem>>, vector<32x32xbf16>
    tpu.vector_store %arg11[%c0_35, %c160], %61 {strides = array<i32>} : memref<32x288xbf16, #tpu.memory_space<vmem>>, vector<32x32xbf16>,
    %c23 = arith.constant 23 : index
    %c0_36 = arith.constant 0 : index
    %63 = vector.load %arg10[%c23, %c0_36] : memref<64x32xf32, #tpu.memory_space<vmem>>, vector<32x32xf32>
    %64 = arith.truncf %63 : vector<32x32xf32> to vector<32x32xbf16>
    %c0_37 = arith.constant 0 : index
    %c192 = arith.constant 192 : index
    %65 = vector.load %arg11[%c0_37, %c192] : memref<32x288xbf16, #tpu.memory_space<vmem>>, vector<32x32xbf16>
    tpu.vector_store %arg11[%c0_37, %c192], %64 {strides = array<i32>} : memref<32x288xbf16, #tpu.memory_space<vmem>>, vector<32x32xbf16>,
    %c24 = arith.constant 24 : index
    %c0_38 = arith.constant 0 : index
    %66 = vector.load %arg10[%c24, %c0_38] : memref<64x32xf32, #tpu.memory_space<vmem>>, vector<32x32xf32>
    %67 = arith.truncf %66 : vector<32x32xf32> to vector<32x32xbf16>
    %c0_39 = arith.constant 0 : index
    %c224 = arith.constant 224 : index
    %68 = vector.load %arg11[%c0_39, %c224] : memref<32x288xbf16, #tpu.memory_space<vmem>>, vector<32x32xbf16>
    tpu.vector_store %arg11[%c0_39, %c224], %67 {strides = array<i32>} : memref<32x288xbf16, #tpu.memory_space<vmem>>, vector<32x32xbf16>,
    %c25 = arith.constant 25 : index
    %c0_40 = arith.constant 0 : index
    %69 = vector.load %arg10[%c25, %c0_40] : memref<64x32xf32, #tpu.memory_space<vmem>>, vector<32x32xf32>
    %70 = arith.truncf %69 : vector<32x32xf32> to vector<32x32xbf16>
    %c0_41 = arith.constant 0 : index
    %c256 = arith.constant 256 : index
    %71 = vector.load %arg11[%c0_41, %c256] : memref<32x288xbf16, #tpu.memory_space<vmem>>, vector<32x32xbf16>
    tpu.vector_store %arg11[%c0_41, %c256], %70 {strides = array<i32>} : memref<32x288xbf16, #tpu.memory_space<vmem>>, vector<32x32xbf16>,
    %c0_42 = arith.constant 0 : index
    %c0_43 = arith.constant 0 : index
    %72 = vector.load %arg11[%c0_42, %c0_43] : memref<32x288xbf16, #tpu.memory_space<vmem>>, vector<32x288xbf16>
    %cst_44 = arith.constant dense<0.000000e+00> : vector<32x32xf32>
    %73 = tpu.matmul %72, %43, %cst_44 {dimension_numbers = #tpu.dot_dimension_numbers<[1], [0], [0], [1], [0, 0, 1, 1], [], []>} : vector<32x288xbf16>, vector<288x32xbf16>, vector<32x32xf32> -> vector<32x32xf32>
    %74 = vector.broadcast %44 : vector<1x32xf32> to vector<32x32xf32>
    %75 = arith.addf %73, %74 : vector<32x32xf32>
    %cst_45 = arith.constant 0.000000e+00 : f32
    %76 = vector.broadcast %cst_45 : f32 to vector<32x32xf32>
    %77 = arith.cmpf ogt, %75, %76 : vector<32x32xf32>
    %cst_46 = arith.constant 2.000000e-01 : f32
    %78 = vector.broadcast %cst_46 : f32 to vector<32x32xf32>
    %79 = arith.mulf %78, %75 : vector<32x32xf32>
    %80 = arith.select %77, %75, %79 : vector<32x32xi1>, vector<32x32xf32>
    %81 = vector.broadcast %27 : vector<32x1xf32> to vector<32x32xf32>
    %82 = arith.mulf %80, %81 : vector<32x32xf32>
    %c16_47 = arith.constant 16 : index
    %c0_48 = arith.constant 0 : index
    %83 = vector.load %arg10[%c16_47, %c0_48] : memref<64x32xf32, #tpu.memory_space<vmem>>, vector<32x32xf32>
    tpu.vector_store %arg10[%c16_47, %c0_48], %82 {strides = array<i32>} : memref<64x32xf32, #tpu.memory_space<vmem>>, vector<32x32xf32>,
    %c288 = arith.constant 288 : index
    %c0_49 = arith.constant 0 : index
    %84 = vector.load %arg5[%c288, %c0_49] : memref<1152x32xbf16, #tpu.memory_space<vmem>>, vector<288x32xbf16>
    %c1 = arith.constant 1 : index
    %c0_50 = arith.constant 0 : index
    %85 = vector.load %arg6[%c1, %c0_50] : memref<4x32xf32, #tpu.memory_space<vmem>>, vector<1x32xf32>
    %c7_51 = arith.constant 7 : index
    %c0_52 = arith.constant 0 : index
    %86 = vector.load %arg10[%c7_51, %c0_52] : memref<64x32xf32, #tpu.memory_space<vmem>>, vector<32x32xf32>
    %87 = arith.truncf %86 : vector<32x32xf32> to vector<32x32xbf16>
    %c0_53 = arith.constant 0 : index
    %c0_54 = arith.constant 0 : index
    %88 = vector.load %arg11[%c0_53, %c0_54] : memref<32x288xbf16, #tpu.memory_space<vmem>>, vector<32x32xbf16>
    tpu.vector_store %arg11[%c0_53, %c0_54], %87 {strides = array<i32>} : memref<32x288xbf16, #tpu.memory_space<vmem>>, vector<32x32xbf16>,
    %c8_55 = arith.constant 8 : index
    %c0_56 = arith.constant 0 : index
    %89 = vector.load %arg10[%c8_55, %c0_56] : memref<64x32xf32, #tpu.memory_space<vmem>>, vector<32x32xf32>
    %90 = arith.truncf %89 : vector<32x32xf32> to vector<32x32xbf16>
    %c0_57 = arith.constant 0 : index
    %c32_58 = arith.constant 32 : index
    %91 = vector.load %arg11[%c0_57, %c32_58] : memref<32x288xbf16, #tpu.memory_space<vmem>>, vector<32x32xbf16>
    tpu.vector_store %arg11[%c0_57, %c32_58], %90 {strides = array<i32>} : memref<32x288xbf16, #tpu.memory_space<vmem>>, vector<32x32xbf16>,
    %c9_59 = arith.constant 9 : index
    %c0_60 = arith.constant 0 : index
    %92 = vector.load %arg10[%c9_59, %c0_60] : memref<64x32xf32, #tpu.memory_space<vmem>>, vector<32x32xf32>
    %93 = arith.truncf %92 : vector<32x32xf32> to vector<32x32xbf16>
    %c0_61 = arith.constant 0 : index
    %c64_62 = arith.constant 64 : index
    %94 = vector.load %arg11[%c0_61, %c64_62] : memref<32x288xbf16, #tpu.memory_space<vmem>>, vector<32x32xbf16>
    tpu.vector_store %arg11[%c0_61, %c64_62], %93 {strides = array<i32>} : memref<32x288xbf16, #tpu.memory_space<vmem>>, vector<32x32xbf16>,
    %c15_63 = arith.constant 15 : index
    %c0_64 = arith.constant 0 : index
    %95 = vector.load %arg10[%c15_63, %c0_64] : memref<64x32xf32, #tpu.memory_space<vmem>>, vector<32x32xf32>
    %96 = arith.truncf %95 : vector<32x32xf32> to vector<32x32xbf16>
    %c0_65 = arith.constant 0 : index
    %c96_66 = arith.constant 96 : index
    %97 = vector.load %arg11[%c0_65, %c96_66] : memref<32x288xbf16, #tpu.memory_space<vmem>>, vector<32x32xbf16>
    tpu.vector_store %arg11[%c0_65, %c96_66], %96 {strides = array<i32>} : memref<32x288xbf16, #tpu.memory_space<vmem>>, vector<32x32xbf16>,
    %c16_67 = arith.constant 16 : index
    %c0_68 = arith.constant 0 : index
    %98 = vector.load %arg10[%c16_67, %c0_68] : memref<64x32xf32, #tpu.memory_space<vmem>>, vector<32x32xf32>
    %99 = arith.truncf %98 : vector<32x32xf32> to vector<32x32xbf16>
    %c0_69 = arith.constant 0 : index
    %c128_70 = arith.constant 128 : index
    %100 = vector.load %arg11[%c0_69, %c128_70] : memref<32x288xbf16, #tpu.memory_space<vmem>>, vector<32x32xbf16>
    tpu.vector_store %arg11[%c0_69, %c128_70], %99 {strides = array<i32>} : memref<32x288xbf16, #tpu.memory_space<vmem>>, vector<32x32xbf16>,
    %c17_71 = arith.constant 17 : index
    %c0_72 = arith.constant 0 : index
    %101 = vector.load %arg10[%c17_71, %c0_72] : memref<64x32xf32, #tpu.memory_space<vmem>>, vector<32x32xf32>
    %102 = arith.truncf %101 : vector<32x32xf32> to vector<32x32xbf16>
    %c0_73 = arith.constant 0 : index
    %c160_74 = arith.constant 160 : index
    %103 = vector.load %arg11[%c0_73, %c160_74] : memref<32x288xbf16, #tpu.memory_space<vmem>>, vector<32x32xbf16>
    tpu.vector_store %arg11[%c0_73, %c160_74], %102 {strides = array<i32>} : memref<32x288xbf16, #tpu.memory_space<vmem>>, vector<32x32xbf16>,
    %c23_75 = arith.constant 23 : index
    %c0_76 = arith.constant 0 : index
    %104 = vector.load %arg10[%c23_75, %c0_76] : memref<64x32xf32, #tpu.memory_space<vmem>>, vector<32x32xf32>
    %105 = arith.truncf %104 : vector<32x32xf32> to vector<32x32xbf16>
    %c0_77 = arith.constant 0 : index
    %c192_78 = arith.constant 192 : index
    %106 = vector.load %arg11[%c0_77, %c192_78] : memref<32x288xbf16, #tpu.memory_space<vmem>>, vector<32x32xbf16>
    tpu.vector_store %arg11[%c0_77, %c192_78], %105 {strides = array<i32>} : memref<32x288xbf16, #tpu.memory_space<vmem>>, vector<32x32xbf16>,
    %c24_79 = arith.constant 24 : index
    %c0_80 = arith.constant 0 : index
    %107 = vector.load %arg10[%c24_79, %c0_80] : memref<64x32xf32, #tpu.memory_space<vmem>>, vector<32x32xf32>
    %108 = arith.truncf %107 : vector<32x32xf32> to vector<32x32xbf16>
    %c0_81 = arith.constant 0 : index
    %c224_82 = arith.constant 224 : index
    %109 = vector.load %arg11[%c0_81, %c224_82] : memref<32x288xbf16, #tpu.memory_space<vmem>>, vector<32x32xbf16>
    tpu.vector_store %arg11[%c0_81, %c224_82], %108 {strides = array<i32>} : memref<32x288xbf16, #tpu.memory_space<vmem>>, vector<32x32xbf16>,
    %c25_83 = arith.constant 25 : index
    %c0_84 = arith.constant 0 : index
    %110 = vector.load %arg10[%c25_83, %c0_84] : memref<64x32xf32, #tpu.memory_space<vmem>>, vector<32x32xf32>
    %111 = arith.truncf %110 : vector<32x32xf32> to vector<32x32xbf16>
    %c0_85 = arith.constant 0 : index
    %c256_86 = arith.constant 256 : index
    %112 = vector.load %arg11[%c0_85, %c256_86] : memref<32x288xbf16, #tpu.memory_space<vmem>>, vector<32x32xbf16>
    tpu.vector_store %arg11[%c0_85, %c256_86], %111 {strides = array<i32>} : memref<32x288xbf16, #tpu.memory_space<vmem>>, vector<32x32xbf16>,
    %c0_87 = arith.constant 0 : index
    %c0_88 = arith.constant 0 : index
    %113 = vector.load %arg11[%c0_87, %c0_88] : memref<32x288xbf16, #tpu.memory_space<vmem>>, vector<32x288xbf16>
    %cst_89 = arith.constant dense<0.000000e+00> : vector<32x32xf32>
    %114 = tpu.matmul %113, %84, %cst_89 {dimension_numbers = #tpu.dot_dimension_numbers<[1], [0], [0], [1], [0, 0, 1, 1], [], []>} : vector<32x288xbf16>, vector<288x32xbf16>, vector<32x32xf32> -> vector<32x32xf32>
    %115 = vector.broadcast %85 : vector<1x32xf32> to vector<32x32xf32>
    %116 = arith.addf %114, %115 : vector<32x32xf32>
    %117 = arith.addf %39, %116 : vector<32x32xf32>
    %cst_90 = arith.constant 0.000000e+00 : f32
    %118 = vector.broadcast %cst_90 : f32 to vector<32x32xf32>
    %119 = arith.cmpf ogt, %117, %118 : vector<32x32xf32>
    %cst_91 = arith.constant 2.000000e-01 : f32
    %120 = vector.broadcast %cst_91 : f32 to vector<32x32xf32>
    %121 = arith.mulf %120, %117 : vector<32x32xf32>
    %122 = arith.select %119, %117, %121 : vector<32x32xi1>, vector<32x32xf32>
    %123 = vector.broadcast %27 : vector<32x1xf32> to vector<32x32xf32>
    %124 = arith.mulf %122, %123 : vector<32x32xf32>
    %c16_92 = arith.constant 16 : index
    %c0_93 = arith.constant 0 : index
    %125 = vector.load %arg10[%c16_92, %c0_93] : memref<64x32xf32, #tpu.memory_space<vmem>>, vector<32x32xf32>
    tpu.vector_store %arg10[%c16_92, %c0_93], %124 {strides = array<i32>} : memref<64x32xf32, #tpu.memory_space<vmem>>, vector<32x32xf32>,
    %c576 = arith.constant 576 : index
    %c0_94 = arith.constant 0 : index
    %126 = vector.load %arg5[%c576, %c0_94] : memref<1152x32xbf16, #tpu.memory_space<vmem>>, vector<288x32xbf16>
    %c2 = arith.constant 2 : index
    %c0_95 = arith.constant 0 : index
    %127 = vector.load %arg6[%c2, %c0_95] : memref<4x32xf32, #tpu.memory_space<vmem>>, vector<1x32xf32>
    %c7_96 = arith.constant 7 : index
    %c0_97 = arith.constant 0 : index
    %128 = vector.load %arg10[%c7_96, %c0_97] : memref<64x32xf32, #tpu.memory_space<vmem>>, vector<32x32xf32>
    %129 = arith.truncf %128 : vector<32x32xf32> to vector<32x32xbf16>
    %c0_98 = arith.constant 0 : index
    %c0_99 = arith.constant 0 : index
    %130 = vector.load %arg11[%c0_98, %c0_99] : memref<32x288xbf16, #tpu.memory_space<vmem>>, vector<32x32xbf16>
    tpu.vector_store %arg11[%c0_98, %c0_99], %129 {strides = array<i32>} : memref<32x288xbf16, #tpu.memory_space<vmem>>, vector<32x32xbf16>,
    %c8_100 = arith.constant 8 : index
    %c0_101 = arith.constant 0 : index
    %131 = vector.load %arg10[%c8_100, %c0_101] : memref<64x32xf32, #tpu.memory_space<vmem>>, vector<32x32xf32>
    %132 = arith.truncf %131 : vector<32x32xf32> to vector<32x32xbf16>
    %c0_102 = arith.constant 0 : index
    %c32_103 = arith.constant 32 : index
    %133 = vector.load %arg11[%c0_102, %c32_103] : memref<32x288xbf16, #tpu.memory_space<vmem>>, vector<32x32xbf16>
    tpu.vector_store %arg11[%c0_102, %c32_103], %132 {strides = array<i32>} : memref<32x288xbf16, #tpu.memory_space<vmem>>, vector<32x32xbf16>,
    %c9_104 = arith.constant 9 : index
    %c0_105 = arith.constant 0 : index
    %134 = vector.load %arg10[%c9_104, %c0_105] : memref<64x32xf32, #tpu.memory_space<vmem>>, vector<32x32xf32>
    %135 = arith.truncf %134 : vector<32x32xf32> to vector<32x32xbf16>
    %c0_106 = arith.constant 0 : index
    %c64_107 = arith.constant 64 : index
    %136 = vector.load %arg11[%c0_106, %c64_107] : memref<32x288xbf16, #tpu.memory_space<vmem>>, vector<32x32xbf16>
    tpu.vector_store %arg11[%c0_106, %c64_107], %135 {strides = array<i32>} : memref<32x288xbf16, #tpu.memory_space<vmem>>, vector<32x32xbf16>,
    %c15_108 = arith.constant 15 : index
    %c0_109 = arith.constant 0 : index
    %137 = vector.load %arg10[%c15_108, %c0_109] : memref<64x32xf32, #tpu.memory_space<vmem>>, vector<32x32xf32>
    %138 = arith.truncf %137 : vector<32x32xf32> to vector<32x32xbf16>
    %c0_110 = arith.constant 0 : index
    %c96_111 = arith.constant 96 : index
    %139 = vector.load %arg11[%c0_110, %c96_111] : memref<32x288xbf16, #tpu.memory_space<vmem>>, vector<32x32xbf16>
    tpu.vector_store %arg11[%c0_110, %c96_111], %138 {strides = array<i32>} : memref<32x288xbf16, #tpu.memory_space<vmem>>, vector<32x32xbf16>,
    %c16_112 = arith.constant 16 : index
    %c0_113 = arith.constant 0 : index
    %140 = vector.load %arg10[%c16_112, %c0_113] : memref<64x32xf32, #tpu.memory_space<vmem>>, vector<32x32xf32>
    %141 = arith.truncf %140 : vector<32x32xf32> to vector<32x32xbf16>
    %c0_114 = arith.constant 0 : index
    %c128_115 = arith.constant 128 : index
    %142 = vector.load %arg11[%c0_114, %c128_115] : memref<32x288xbf16, #tpu.memory_space<vmem>>, vector<32x32xbf16>
    tpu.vector_store %arg11[%c0_114, %c128_115], %141 {strides = array<i32>} : memref<32x288xbf16, #tpu.memory_space<vmem>>, vector<32x32xbf16>,
    %c17_116 = arith.constant 17 : index
    %c0_117 = arith.constant 0 : index
    %143 = vector.load %arg10[%c17_116, %c0_117] : memref<64x32xf32, #tpu.memory_space<vmem>>, vector<32x32xf32>
    %144 = arith.truncf %143 : vector<32x32xf32> to vector<32x32xbf16>
    %c0_118 = arith.constant 0 : index
    %c160_119 = arith.constant 160 : index
    %145 = vector.load %arg11[%c0_118, %c160_119] : memref<32x288xbf16, #tpu.memory_space<vmem>>, vector<32x32xbf16>
    tpu.vector_store %arg11[%c0_118, %c160_119], %144 {strides = array<i32>} : memref<32x288xbf16, #tpu.memory_space<vmem>>, vector<32x32xbf16>,
    %c23_120 = arith.constant 23 : index
    %c0_121 = arith.constant 0 : index
    %146 = vector.load %arg10[%c23_120, %c0_121] : memref<64x32xf32, #tpu.memory_space<vmem>>, vector<32x32xf32>
    %147 = arith.truncf %146 : vector<32x32xf32> to vector<32x32xbf16>
    %c0_122 = arith.constant 0 : index
    %c192_123 = arith.constant 192 : index
    %148 = vector.load %arg11[%c0_122, %c192_123] : memref<32x288xbf16, #tpu.memory_space<vmem>>, vector<32x32xbf16>
    tpu.vector_store %arg11[%c0_122, %c192_123], %147 {strides = array<i32>} : memref<32x288xbf16, #tpu.memory_space<vmem>>, vector<32x32xbf16>,
    %c24_124 = arith.constant 24 : index
    %c0_125 = arith.constant 0 : index
    %149 = vector.load %arg10[%c24_124, %c0_125] : memref<64x32xf32, #tpu.memory_space<vmem>>, vector<32x32xf32>
    %150 = arith.truncf %149 : vector<32x32xf32> to vector<32x32xbf16>
    %c0_126 = arith.constant 0 : index
    %c224_127 = arith.constant 224 : index
    %151 = vector.load %arg11[%c0_126, %c224_127] : memref<32x288xbf16, #tpu.memory_space<vmem>>, vector<32x32xbf16>
    tpu.vector_store %arg11[%c0_126, %c224_127], %150 {strides = array<i32>} : memref<32x288xbf16, #tpu.memory_space<vmem>>, vector<32x32xbf16>,
    %c25_128 = arith.constant 25 : index
    %c0_129 = arith.constant 0 : index
    %152 = vector.load %arg10[%c25_128, %c0_129] : memref<64x32xf32, #tpu.memory_space<vmem>>, vector<32x32xf32>
    %153 = arith.truncf %152 : vector<32x32xf32> to vector<32x32xbf16>
    %c0_130 = arith.constant 0 : index
    %c256_131 = arith.constant 256 : index
    %154 = vector.load %arg11[%c0_130, %c256_131] : memref<32x288xbf16, #tpu.memory_space<vmem>>, vector<32x32xbf16>
    tpu.vector_store %arg11[%c0_130, %c256_131], %153 {strides = array<i32>} : memref<32x288xbf16, #tpu.memory_space<vmem>>, vector<32x32xbf16>,
    %c0_132 = arith.constant 0 : index
    %c0_133 = arith.constant 0 : index
    %155 = vector.load %arg11[%c0_132, %c0_133] : memref<32x288xbf16, #tpu.memory_space<vmem>>, vector<32x288xbf16>
    %cst_134 = arith.constant dense<0.000000e+00> : vector<32x32xf32>
    %156 = tpu.matmul %155, %126, %cst_134 {dimension_numbers = #tpu.dot_dimension_numbers<[1], [0], [0], [1], [0, 0, 1, 1], [], []>} : vector<32x288xbf16>, vector<288x32xbf16>, vector<32x32xf32> -> vector<32x32xf32>
    %157 = vector.broadcast %127 : vector<1x32xf32> to vector<32x32xf32>
    %158 = arith.addf %156, %157 : vector<32x32xf32>
    %cst_135 = arith.constant 0.000000e+00 : f32
    %159 = vector.broadcast %cst_135 : f32 to vector<32x32xf32>
    %160 = arith.cmpf ogt, %158, %159 : vector<32x32xf32>
    %cst_136 = arith.constant 2.000000e-01 : f32
    %161 = vector.broadcast %cst_136 : f32 to vector<32x32xf32>
    %162 = arith.mulf %161, %158 : vector<32x32xf32>
    %163 = arith.select %160, %158, %162 : vector<32x32xi1>, vector<32x32xf32>
    %164 = vector.broadcast %27 : vector<32x1xf32> to vector<32x32xf32>
    %165 = arith.mulf %163, %164 : vector<32x32xf32>
    %c16_137 = arith.constant 16 : index
    %c0_138 = arith.constant 0 : index
    %166 = vector.load %arg10[%c16_137, %c0_138] : memref<64x32xf32, #tpu.memory_space<vmem>>, vector<32x32xf32>
    tpu.vector_store %arg10[%c16_137, %c0_138], %165 {strides = array<i32>} : memref<64x32xf32, #tpu.memory_space<vmem>>, vector<32x32xf32>,
    %c864 = arith.constant 864 : index
    %c0_139 = arith.constant 0 : index
    %167 = vector.load %arg5[%c864, %c0_139] : memref<1152x32xbf16, #tpu.memory_space<vmem>>, vector<288x32xbf16>
    %c3 = arith.constant 3 : index
    %c0_140 = arith.constant 0 : index
    %168 = vector.load %arg6[%c3, %c0_140] : memref<4x32xf32, #tpu.memory_space<vmem>>, vector<1x32xf32>
    %c7_141 = arith.constant 7 : index
    %c0_142 = arith.constant 0 : index
    %169 = vector.load %arg10[%c7_141, %c0_142] : memref<64x32xf32, #tpu.memory_space<vmem>>, vector<32x32xf32>
    %170 = arith.truncf %169 : vector<32x32xf32> to vector<32x32xbf16>
    %c0_143 = arith.constant 0 : index
    %c0_144 = arith.constant 0 : index
    %171 = vector.load %arg11[%c0_143, %c0_144] : memref<32x288xbf16, #tpu.memory_space<vmem>>, vector<32x32xbf16>
    tpu.vector_store %arg11[%c0_143, %c0_144], %170 {strides = array<i32>} : memref<32x288xbf16, #tpu.memory_space<vmem>>, vector<32x32xbf16>,
    %c8_145 = arith.constant 8 : index
    %c0_146 = arith.constant 0 : index
    %172 = vector.load %arg10[%c8_145, %c0_146] : memref<64x32xf32, #tpu.memory_space<vmem>>, vector<32x32xf32>
    %173 = arith.truncf %172 : vector<32x32xf32> to vector<32x32xbf16>
    %c0_147 = arith.constant 0 : index
    %c32_148 = arith.constant 32 : index
    %174 = vector.load %arg11[%c0_147, %c32_148] : memref<32x288xbf16, #tpu.memory_space<vmem>>, vector<32x32xbf16>
    tpu.vector_store %arg11[%c0_147, %c32_148], %173 {strides = array<i32>} : memref<32x288xbf16, #tpu.memory_space<vmem>>, vector<32x32xbf16>,
    %c9_149 = arith.constant 9 : index
    %c0_150 = arith.constant 0 : index
    %175 = vector.load %arg10[%c9_149, %c0_150] : memref<64x32xf32, #tpu.memory_space<vmem>>, vector<32x32xf32>
    %176 = arith.truncf %175 : vector<32x32xf32> to vector<32x32xbf16>
    %c0_151 = arith.constant 0 : index
    %c64_152 = arith.constant 64 : index
    %177 = vector.load %arg11[%c0_151, %c64_152] : memref<32x288xbf16, #tpu.memory_space<vmem>>, vector<32x32xbf16>
    tpu.vector_store %arg11[%c0_151, %c64_152], %176 {strides = array<i32>} : memref<32x288xbf16, #tpu.memory_space<vmem>>, vector<32x32xbf16>,
    %c15_153 = arith.constant 15 : index
    %c0_154 = arith.constant 0 : index
    %178 = vector.load %arg10[%c15_153, %c0_154] : memref<64x32xf32, #tpu.memory_space<vmem>>, vector<32x32xf32>
    %179 = arith.truncf %178 : vector<32x32xf32> to vector<32x32xbf16>
    %c0_155 = arith.constant 0 : index
    %c96_156 = arith.constant 96 : index
    %180 = vector.load %arg11[%c0_155, %c96_156] : memref<32x288xbf16, #tpu.memory_space<vmem>>, vector<32x32xbf16>
    tpu.vector_store %arg11[%c0_155, %c96_156], %179 {strides = array<i32>} : memref<32x288xbf16, #tpu.memory_space<vmem>>, vector<32x32xbf16>,
    %c16_157 = arith.constant 16 : index
    %c0_158 = arith.constant 0 : index
    %181 = vector.load %arg10[%c16_157, %c0_158] : memref<64x32xf32, #tpu.memory_space<vmem>>, vector<32x32xf32>
    %182 = arith.truncf %181 : vector<32x32xf32> to vector<32x32xbf16>
    %c0_159 = arith.constant 0 : index
    %c128_160 = arith.constant 128 : index
    %183 = vector.load %arg11[%c0_159, %c128_160] : memref<32x288xbf16, #tpu.memory_space<vmem>>, vector<32x32xbf16>
    tpu.vector_store %arg11[%c0_159, %c128_160], %182 {strides = array<i32>} : memref<32x288xbf16, #tpu.memory_space<vmem>>, vector<32x32xbf16>,
    %c17_161 = arith.constant 17 : index
    %c0_162 = arith.constant 0 : index
    %184 = vector.load %arg10[%c17_161, %c0_162] : memref<64x32xf32, #tpu.memory_space<vmem>>, vector<32x32xf32>
    %185 = arith.truncf %184 : vector<32x32xf32> to vector<32x32xbf16>
    %c0_163 = arith.constant 0 : index
    %c160_164 = arith.constant 160 : index
    %186 = vector.load %arg11[%c0_163, %c160_164] : memref<32x288xbf16, #tpu.memory_space<vmem>>, vector<32x32xbf16>
    tpu.vector_store %arg11[%c0_163, %c160_164], %185 {strides = array<i32>} : memref<32x288xbf16, #tpu.memory_space<vmem>>, vector<32x32xbf16>,
    %c23_165 = arith.constant 23 : index
    %c0_166 = arith.constant 0 : index
    %187 = vector.load %arg10[%c23_165, %c0_166] : memref<64x32xf32, #tpu.memory_space<vmem>>, vector<32x32xf32>
    %188 = arith.truncf %187 : vector<32x32xf32> to vector<32x32xbf16>
    %c0_167 = arith.constant 0 : index
    %c192_168 = arith.constant 192 : index
    %189 = vector.load %arg11[%c0_167, %c192_168] : memref<32x288xbf16, #tpu.memory_space<vmem>>, vector<32x32xbf16>
    tpu.vector_store %arg11[%c0_167, %c192_168], %188 {strides = array<i32>} : memref<32x288xbf16, #tpu.memory_space<vmem>>, vector<32x32xbf16>,
    %c24_169 = arith.constant 24 : index
    %c0_170 = arith.constant 0 : index
    %190 = vector.load %arg10[%c24_169, %c0_170] : memref<64x32xf32, #tpu.memory_space<vmem>>, vector<32x32xf32>
    %191 = arith.truncf %190 : vector<32x32xf32> to vector<32x32xbf16>
    %c0_171 = arith.constant 0 : index
    %c224_172 = arith.constant 224 : index
    %192 = vector.load %arg11[%c0_171, %c224_172] : memref<32x288xbf16, #tpu.memory_space<vmem>>, vector<32x32xbf16>
    tpu.vector_store %arg11[%c0_171, %c224_172], %191 {strides = array<i32>} : memref<32x288xbf16, #tpu.memory_space<vmem>>, vector<32x32xbf16>,
    %c25_173 = arith.constant 25 : index
    %c0_174 = arith.constant 0 : index
    %193 = vector.load %arg10[%c25_173, %c0_174] : memref<64x32xf32, #tpu.memory_space<vmem>>, vector<32x32xf32>
    %194 = arith.truncf %193 : vector<32x32xf32> to vector<32x32xbf16>
    %c0_175 = arith.constant 0 : index
    %c256_176 = arith.constant 256 : index
    %195 = vector.load %arg11[%c0_175, %c256_176] : memref<32x288xbf16, #tpu.memory_space<vmem>>, vector<32x32xbf16>
    tpu.vector_store %arg11[%c0_175, %c256_176], %194 {strides = array<i32>} : memref<32x288xbf16, #tpu.memory_space<vmem>>, vector<32x32xbf16>,
    %c0_177 = arith.constant 0 : index
    %c0_178 = arith.constant 0 : index
    %196 = vector.load %arg11[%c0_177, %c0_178] : memref<32x288xbf16, #tpu.memory_space<vmem>>, vector<32x288xbf16>
    %cst_179 = arith.constant dense<0.000000e+00> : vector<32x32xf32>
    %197 = tpu.matmul %196, %167, %cst_179 {dimension_numbers = #tpu.dot_dimension_numbers<[1], [0], [0], [1], [0, 0, 1, 1], [], []>} : vector<32x288xbf16>, vector<288x32xbf16>, vector<32x32xf32> -> vector<32x32xf32>
    %198 = vector.broadcast %168 : vector<1x32xf32> to vector<32x32xf32>
    %199 = arith.addf %197, %198 : vector<32x32xf32>
    %200 = arith.addf %122, %199 : vector<32x32xf32>
    %cst_180 = arith.constant 0.000000e+00 : f32
    %201 = vector.broadcast %cst_180 : f32 to vector<32x32xf32>
    %202 = arith.cmpf ogt, %200, %201 : vector<32x32xf32>
    %cst_181 = arith.constant 2.000000e-01 : f32
    %203 = vector.broadcast %cst_181 : f32 to vector<32x32xf32>
    %204 = arith.mulf %203, %200 : vector<32x32xf32>
    %205 = arith.select %202, %200, %204 : vector<32x32xi1>, vector<32x32xf32>
    %206 = vector.broadcast %27 : vector<32x1xf32> to vector<32x32xf32>
    %207 = arith.mulf %205, %206 : vector<32x32xf32>
    %c16_182 = arith.constant 16 : index
    %c0_183 = arith.constant 0 : index
    %208 = vector.load %arg10[%c16_182, %c0_183] : memref<64x32xf32, #tpu.memory_space<vmem>>, vector<32x32xf32>
    tpu.vector_store %arg10[%c16_182, %c0_183], %207 {strides = array<i32>} : memref<64x32xf32, #tpu.memory_space<vmem>>, vector<32x32xf32>,
    %c0_184 = arith.constant 0 : index
    %c0_185 = arith.constant 0 : index
    %209 = vector.load %arg7[%c0_184, %c0_185] : memref<288x34xbf16, #tpu.memory_space<vmem>>, vector<288x34xbf16>
    %c0_186 = arith.constant 0 : index
    %c0_187 = arith.constant 0 : index
    %210 = vector.load %arg8[%c0_186, %c0_187] : memref<1x34xf32, #tpu.memory_space<vmem>>, vector<1x34xf32>
    %c7_188 = arith.constant 7 : index
    %c0_189 = arith.constant 0 : index
    %211 = vector.load %arg10[%c7_188, %c0_189] : memref<64x32xf32, #tpu.memory_space<vmem>>, vector<32x32xf32>
    %212 = arith.truncf %211 : vector<32x32xf32> to vector<32x32xbf16>
    %c0_190 = arith.constant 0 : index
    %c0_191 = arith.constant 0 : index
    %213 = vector.load %arg11[%c0_190, %c0_191] : memref<32x288xbf16, #tpu.memory_space<vmem>>, vector<32x32xbf16>
    tpu.vector_store %arg11[%c0_190, %c0_191], %212 {strides = array<i32>} : memref<32x288xbf16, #tpu.memory_space<vmem>>, vector<32x32xbf16>,
    %c8_192 = arith.constant 8 : index
    %c0_193 = arith.constant 0 : index
    %214 = vector.load %arg10[%c8_192, %c0_193] : memref<64x32xf32, #tpu.memory_space<vmem>>, vector<32x32xf32>
    %215 = arith.truncf %214 : vector<32x32xf32> to vector<32x32xbf16>
    %c0_194 = arith.constant 0 : index
    %c32_195 = arith.constant 32 : index
    %216 = vector.load %arg11[%c0_194, %c32_195] : memref<32x288xbf16, #tpu.memory_space<vmem>>, vector<32x32xbf16>
    tpu.vector_store %arg11[%c0_194, %c32_195], %215 {strides = array<i32>} : memref<32x288xbf16, #tpu.memory_space<vmem>>, vector<32x32xbf16>,
    %c9_196 = arith.constant 9 : index
    %c0_197 = arith.constant 0 : index
    %217 = vector.load %arg10[%c9_196, %c0_197] : memref<64x32xf32, #tpu.memory_space<vmem>>, vector<32x32xf32>
    %218 = arith.truncf %217 : vector<32x32xf32> to vector<32x32xbf16>
    %c0_198 = arith.constant 0 : index
    %c64_199 = arith.constant 64 : index
    %219 = vector.load %arg11[%c0_198, %c64_199] : memref<32x288xbf16, #tpu.memory_space<vmem>>, vector<32x32xbf16>
    tpu.vector_store %arg11[%c0_198, %c64_199], %218 {strides = array<i32>} : memref<32x288xbf16, #tpu.memory_space<vmem>>, vector<32x32xbf16>,
    %c15_200 = arith.constant 15 : index
    %c0_201 = arith.constant 0 : index
    %220 = vector.load %arg10[%c15_200, %c0_201] : memref<64x32xf32, #tpu.memory_space<vmem>>, vector<32x32xf32>
    %221 = arith.truncf %220 : vector<32x32xf32> to vector<32x32xbf16>
    %c0_202 = arith.constant 0 : index
    %c96_203 = arith.constant 96 : index
    %222 = vector.load %arg11[%c0_202, %c96_203] : memref<32x288xbf16, #tpu.memory_space<vmem>>, vector<32x32xbf16>
    tpu.vector_store %arg11[%c0_202, %c96_203], %221 {strides = array<i32>} : memref<32x288xbf16, #tpu.memory_space<vmem>>, vector<32x32xbf16>,
    %c16_204 = arith.constant 16 : index
    %c0_205 = arith.constant 0 : index
    %223 = vector.load %arg10[%c16_204, %c0_205] : memref<64x32xf32, #tpu.memory_space<vmem>>, vector<32x32xf32>
    %224 = arith.truncf %223 : vector<32x32xf32> to vector<32x32xbf16>
    %c0_206 = arith.constant 0 : index
    %c128_207 = arith.constant 128 : index
    %225 = vector.load %arg11[%c0_206, %c128_207] : memref<32x288xbf16, #tpu.memory_space<vmem>>, vector<32x32xbf16>
    tpu.vector_store %arg11[%c0_206, %c128_207], %224 {strides = array<i32>} : memref<32x288xbf16, #tpu.memory_space<vmem>>, vector<32x32xbf16>,
    %c17_208 = arith.constant 17 : index
    %c0_209 = arith.constant 0 : index
    %226 = vector.load %arg10[%c17_208, %c0_209] : memref<64x32xf32, #tpu.memory_space<vmem>>, vector<32x32xf32>
    %227 = arith.truncf %226 : vector<32x32xf32> to vector<32x32xbf16>
    %c0_210 = arith.constant 0 : index
    %c160_211 = arith.constant 160 : index
    %228 = vector.load %arg11[%c0_210, %c160_211] : memref<32x288xbf16, #tpu.memory_space<vmem>>, vector<32x32xbf16>
    tpu.vector_store %arg11[%c0_210, %c160_211], %227 {strides = array<i32>} : memref<32x288xbf16, #tpu.memory_space<vmem>>, vector<32x32xbf16>,
    %c23_212 = arith.constant 23 : index
    %c0_213 = arith.constant 0 : index
    %229 = vector.load %arg10[%c23_212, %c0_213] : memref<64x32xf32, #tpu.memory_space<vmem>>, vector<32x32xf32>
    %230 = arith.truncf %229 : vector<32x32xf32> to vector<32x32xbf16>
    %c0_214 = arith.constant 0 : index
    %c192_215 = arith.constant 192 : index
    %231 = vector.load %arg11[%c0_214, %c192_215] : memref<32x288xbf16, #tpu.memory_space<vmem>>, vector<32x32xbf16>
    tpu.vector_store %arg11[%c0_214, %c192_215], %230 {strides = array<i32>} : memref<32x288xbf16, #tpu.memory_space<vmem>>, vector<32x32xbf16>,
    %c24_216 = arith.constant 24 : index
    %c0_217 = arith.constant 0 : index
    %232 = vector.load %arg10[%c24_216, %c0_217] : memref<64x32xf32, #tpu.memory_space<vmem>>, vector<32x32xf32>
    %233 = arith.truncf %232 : vector<32x32xf32> to vector<32x32xbf16>
    %c0_218 = arith.constant 0 : index
    %c224_219 = arith.constant 224 : index
    %234 = vector.load %arg11[%c0_218, %c224_219] : memref<32x288xbf16, #tpu.memory_space<vmem>>, vector<32x32xbf16>
    tpu.vector_store %arg11[%c0_218, %c224_219], %233 {strides = array<i32>} : memref<32x288xbf16, #tpu.memory_space<vmem>>, vector<32x32xbf16>,
    %c25_220 = arith.constant 25 : index
    %c0_221 = arith.constant 0 : index
    %235 = vector.load %arg10[%c25_220, %c0_221] : memref<64x32xf32, #tpu.memory_space<vmem>>, vector<32x32xf32>
    %236 = arith.truncf %235 : vector<32x32xf32> to vector<32x32xbf16>
    %c0_222 = arith.constant 0 : index
    %c256_223 = arith.constant 256 : index
    %237 = vector.load %arg11[%c0_222, %c256_223] : memref<32x288xbf16, #tpu.memory_space<vmem>>, vector<32x32xbf16>
    tpu.vector_store %arg11[%c0_222, %c256_223], %236 {strides = array<i32>} : memref<32x288xbf16, #tpu.memory_space<vmem>>, vector<32x32xbf16>,
    %c0_224 = arith.constant 0 : index
    %c0_225 = arith.constant 0 : index
    %238 = vector.load %arg11[%c0_224, %c0_225] : memref<32x288xbf16, #tpu.memory_space<vmem>>, vector<32x288xbf16>
    %cst_226 = arith.constant dense<0.000000e+00> : vector<32x34xf32>
    %239 = tpu.matmul %238, %209, %cst_226 {dimension_numbers = #tpu.dot_dimension_numbers<[1], [0], [0], [1], [0, 0, 1, 1], [], []>} : vector<32x288xbf16>, vector<288x34xbf16>, vector<32x34xf32> -> vector<32x34xf32>
    %240 = vector.broadcast %210 : vector<1x34xf32> to vector<32x34xf32>
    %241 = arith.addf %239, %240 : vector<32x34xf32>
    %c0_227 = arith.constant 0 : index
    %c0_228 = arith.constant 0 : index
    %c0_229 = arith.constant 0 : index
    %242 = vector.load %arg2[%c0_227, %c0_228, %c0_229] : memref<1x32x34xf32, #tpu.memory_space<vmem>>, vector<1x32x34xf32>
    %243 = vector.shape_cast %242 : vector<1x32x34xf32> to vector<32x34xf32>
    %244 = arith.addf %241, %243 : vector<32x34xf32>
    %245 = tpu.iota {dimensions = array<i32: 1>} : vector<1x34xi32>
    %c0_i32_230 = arith.constant 0 : i32
    %246 = vector.broadcast %c0_i32_230 : i32 to vector<1x34xi32>
    %247 = arith.cmpi eq, %245, %246 : vector<1x34xi32>
    %c16_i32 = arith.constant 16 : i32
    %248 = vector.broadcast %c16_i32 : i32 to vector<1x34xi32>
    %249 = arith.cmpi eq, %245, %248 : vector<1x34xi32>
    %250 = arith.ori %247, %249 : vector<1x34xi1>
    %cst_231 = arith.constant 0.000000e+00 : f32
    %251 = vector.broadcast %cst_231 : f32 to vector<32x34xf32>
    %252 = arith.maximumf %244, %251 : vector<32x34xf32>
    %253 = vector.shape_cast %250 : vector<1x34xi1> to vector<1x34xi1>
    %254 = vector.broadcast %253 : vector<1x34xi1> to vector<32x34xi1>
    %255 = arith.select %254, %252, %244 : vector<32x34xi1>, vector<32x34xf32>
    %c0_232 = arith.constant 0 : index
    %c0_233 = arith.constant 0 : index
    %c0_234 = arith.constant 0 : index
    %256 = vector.load %arg9[%c0_232, %c0_233, %c0_234] : memref<1x32x34xf32, #tpu.memory_space<vmem>>, vector<1x32x34xf32>
    %257 = vector.shape_cast %256 : vector<1x32x34xf32> to vector<32x34xf32>
    %258 = vector.shape_cast %255 : vector<32x34xf32> to vector<1x32x34xf32>
    tpu.vector_store %arg9[%c0_232, %c0_233, %c0_234], %258 {strides = array<i32>} : memref<1x32x34xf32, #tpu.memory_space<vmem>>, vector<1x32x34xf32>,
    return
  }
  func.func @transform_0(%arg0: i32) -> (i32, i32, i32) {
    %c0_i32 = arith.constant 0 : i32
    %c0_i32_0 = arith.constant 0 : i32
    %c0_i32_1 = arith.constant 0 : i32
    return %arg0, %c0_i32, %c0_i32_0 : i32, i32, i32
  }
  func.func @transform_1(%arg0: i32) -> (i32, i32, i32) {
    %c0_i32 = arith.constant 0 : i32
    %c0_i32_0 = arith.constant 0 : i32
    %c0_i32_1 = arith.constant 0 : i32
    return %arg0, %c0_i32, %c0_i32_0 : i32, i32, i32
  }
  func.func @transform_2(%arg0: i32) -> (i32, i32) {
    %c0_i32 = arith.constant 0 : i32
    %c0_i32_0 = arith.constant 0 : i32
    %c0_i32_1 = arith.constant 0 : i32
    return %c0_i32, %c0_i32_0 : i32, i32
  }
  func.func @transform_3(%arg0: i32) -> (i32, i32) {
    %c0_i32 = arith.constant 0 : i32
    %c0_i32_0 = arith.constant 0 : i32
    %c0_i32_1 = arith.constant 0 : i32
    return %c0_i32, %c0_i32_0 : i32, i32
  }
  func.func @transform_4(%arg0: i32) -> (i32, i32) {
    %c0_i32 = arith.constant 0 : i32
    %c0_i32_0 = arith.constant 0 : i32
    %c0_i32_1 = arith.constant 0 : i32
    return %c0_i32, %c0_i32_0 : i32, i32
  }
  func.func @transform_5(%arg0: i32) -> (i32, i32) {
    %c0_i32 = arith.constant 0 : i32
    %c0_i32_0 = arith.constant 0 : i32
    %c0_i32_1 = arith.constant 0 : i32
    return %c0_i32, %c0_i32_0 : i32, i32
  }
  func.func @transform_6(%arg0: i32) -> (i32, i32) {
    %c0_i32 = arith.constant 0 : i32
    %c0_i32_0 = arith.constant 0 : i32
    %c0_i32_1 = arith.constant 0 : i32
    return %c0_i32, %c0_i32_0 : i32, i32
  }
  func.func @transform_7(%arg0: i32) -> (i32, i32) {
    %c0_i32 = arith.constant 0 : i32
    %c0_i32_0 = arith.constant 0 : i32
    %c0_i32_1 = arith.constant 0 : i32
    return %c0_i32, %c0_i32_0 : i32, i32
  }
  func.func @transform_8(%arg0: i32) -> (i32, i32, i32) {
    %c0_i32 = arith.constant 0 : i32
    %c0_i32_0 = arith.constant 0 : i32
    %c0_i32_1 = arith.constant 0 : i32
    return %arg0, %c0_i32, %c0_i32_0 : i32, i32, i32
  }
}

</mosaic_0001>

<llo_original>
// kernel: _lambda_.1
$region0: #{_lambda_.1}
  #allocation0 [shape = 'u32[]', space=smem, size = 0x4, offset = 0x4, fixed_abs, tag = 'smem constant byte address 0x4 - core index']
  #allocation1 [shape = 'u32[144,128]{1,0:T(1,128)}', space=vmem, size = 0x12000, scoped, tag = 'internal scratch']
  #allocation2 [shape = 'f32[64,32]{1,0:T(8,128)}', space=vmem, size = 0x8000, scoped, tag = 'scratch operand']
  #allocation3 [shape = 'bf16[32,288]{1,0:T(16,128)(2,1)}', space=vmem, size = 0x6000, scoped, tag = 'scratch operand']
  %s0 = inlined_call_operand.vmem [shape: bf16[2,32,160], index: 0, kind: input, shape index: {}]
  %s1 = inlined_call_operand.vmem [shape: f32[2,32,34], index: 1, kind: input, shape index: {}]
  %s2 = inlined_call_operand.vmem [shape: bf16[160,32], index: 2, kind: input, shape index: {}]
  %s3 = inlined_call_operand.vmem [shape: f32[1,32], index: 3, kind: input, shape index: {}]
  %s4 = inlined_call_operand.vmem [shape: bf16[1152,32], index: 4, kind: input, shape index: {}]
  %s5 = inlined_call_operand.vmem [shape: f32[4,32], index: 5, kind: input, shape index: {}]
  %s6 = inlined_call_operand.vmem [shape: bf16[288,34], index: 6, kind: input, shape index: {}]
  %s7 = inlined_call_operand.vmem [shape: f32[1,34], index: 7, kind: input, shape index: {}]
  %s8 = inlined_call_operand.vmem [shape: f32[2,32,34], index: 8, kind: output, shape index: {}]
  %s9 = sld [smem:[#allocation0]]
  $region65: #{_lambda_.1} parent=0
    _
  %s11 = ssub.s32 1, %s9
  %s12 = scalar_select 0, %s11, %s9
  loop: start=0, step=1, limit=4
  $region2: #{_lambda_.1} parent=0 // loop_pre_header
    _
  $region3: #{_lambda_.1} parent=0 // loop_header
    %s14 = sphi 0, %s18
    %p15 = scmp.ge.s32.totalorder %s14, 4
    %s24 = sphi 0, %s26
    %s27 = sphi 0, %s24
    %s28 = sphi 0, %s27
    %s44 = sphi 0, %s28
    %s50 = sphi 0, %s52
    %s53 = sphi 0, %s50
    %s54 = sphi 0, %s53
    %s70 = sphi 0, %s54
    %s74 = sphi 0, %s74
    %s76 = sphi 0, %s74
    %s77 = sphi 0, %s76
    %s91 = sphi 0, %s77
    %s95 = sphi 0, %s95
    %s97 = sphi 0, %s95
    %s98 = sphi 0, %s97
    %s112 = sphi 0, %s98
    %s116 = sphi 0, %s116
    %s118 = sphi 0, %s116
    %s119 = sphi 0, %s118
    %s133 = sphi 0, %s119
    %s137 = sphi 0, %s137
    %s139 = sphi 0, %s137
    %s140 = sphi 0, %s139
    %s154 = sphi 0, %s140
    %s158 = sphi 0, %s158
    %s160 = sphi 0, %s158
    %s161 = sphi 0, %s160
    %s175 = sphi 0, %s161
    %s179 = sphi 0, %s179
    %s181 = sphi 0, %s179
    %s182 = sphi 0, %s181
    %s196 = sphi 0, %s182
    %s202 = sphi 0, %s204
    %s205 = sphi 0, %s202
    %s206 = sphi 0, %s205
    %s222 = sphi 0, %s206
  $region4: #{_lambda_.1} parent=0 // loop_header_branch
    %17 = sbr.rel (%p15) target = $region8
  $region5: #{_lambda_.1} parent=0 // loop_body
    %s19 = ssub.s32 %s14, 1
    %s20 = ssub.s32 %s14, 2
    %s21 = sadd.s32 %s14, 1
    %s22 = ssub.s32 %s14, %s21
    %p23 = scmp.eq.s32.totalorder %s22, 0
    %s25 = sadd.s32 %s24, 1
    %s26 = scalar_select %p23, %s24, %s25
    %p29 = pneg %p23
    %p30 = scmp.eq.s32.totalorder %s14, 1
    %p31 = por %p29, %p30
    %p32 = scmp.ne.s32.totalorder %s24, %s27
    %p33 = scmp.eq.s32.totalorder %s14, 0
    %p34 = por %p32, %p33
    %p35 = scmp.ne.s32.totalorder %s24, %s27
    %p36 = scmp.eq.s32.totalorder %s19, 1
    %p37 = por %p35, %p36
    %p38 = scmp.ne.s32.totalorder %s27, %s28
    %p39 = scmp.eq.s32.totalorder %s19, 0
    %p40 = por %p38, %p39
    %p41 = scmp.ne.s32.totalorder %s27, %s28
    %p42 = scmp.eq.s32.totalorder %s20, 1
    %p43 = por %p41, %p42
    %p45 = scmp.ne.s32.totalorder %s28, %s44
    %p46 = scmp.eq.s32.totalorder %s20, 0
    %p47 = por %p45, %p46
    %s48 = ssub.s32 %s14, %s21
    %p49 = scmp.eq.s32.totalorder %s48, 0
    %s51 = sadd.s32 %s50, 1
    %s52 = scalar_select %p49, %s50, %s51
    %p55 = pneg %p49
    %p56 = scmp.eq.s32.totalorder %s14, 1
    %p57 = por %p55, %p56
    %p58 = scmp.ne.s32.totalorder %s50, %s53
    %p59 = scmp.eq.s32.totalorder %s14, 0
    %p60 = por %p58, %p59
    %p61 = scmp.ne.s32.totalorder %s50, %s53
    %p62 = scmp.eq.s32.totalorder %s19, 1
    %p63 = por %p61, %p62
    %p64 = scmp.ne.s32.totalorder %s53, %s54
    %p65 = scmp.eq.s32.totalorder %s19, 0
    %p66 = por %p64, %p65
    %p67 = scmp.ne.s32.totalorder %s53, %s54
    %p68 = scmp.eq.s32.totalorder %s20, 1
    %p69 = por %p67, %p68
    %p71 = scmp.ne.s32.totalorder %s54, %s70
    %p72 = scmp.eq.s32.totalorder %s20, 0
    %p73 = por %p71, %p72
    %s75 = sadd.s32 %s74, 1
    %p78 = scmp.eq.s32.totalorder %s14, 1
    %p79 = scmp.ne.s32.totalorder %s74, %s76
    %p80 = scmp.eq.s32.totalorder %s14, 0
    %p81 = por %p79, %p80
    %p82 = scmp.ne.s32.totalorder %s74, %s76
    %p83 = scmp.eq.s32.totalorder %s19, 1
    %p84 = por %p82, %p83
    %p85 = scmp.ne.s32.totalorder %s76, %s77
    %p86 = scmp.eq.s32.totalorder %s19, 0
    %p87 = por %p85, %p86
    %p88 = scmp.ne.s32.totalorder %s76, %s77
    %p89 = scmp.eq.s32.totalorder %s20, 1
    %p90 = por %p88, %p89
    %p92 = scmp.ne.s32.totalorder %s77, %s91
    %p93 = scmp.eq.s32.totalorder %s20, 0
    %p94 = por %p92, %p93
    %s96 = sadd.s32 %s95, 1
    %p99 = scmp.eq.s32.totalorder %s14, 1
    %p100 = scmp.ne.s32.totalorder %s95, %s97
    %p101 = scmp.eq.s32.totalorder %s14, 0
    %p102 = por %p100, %p101
    %p103 = scmp.ne.s32.totalorder %s95, %s97
    %p104 = scmp.eq.s32.totalorder %s19, 1
    %p105 = por %p103, %p104
    %p106 = scmp.ne.s32.totalorder %s97, %s98
    %p107 = scmp.eq.s32.totalorder %s19, 0
    %p108 = por %p106, %p107
    %p109 = scmp.ne.s32.totalorder %s97, %s98
    %p110 = scmp.eq.s32.totalorder %s20, 1
    %p111 = por %p109, %p110
    %p113 = scmp.ne.s32.totalorder %s98, %s112
    %p114 = scmp.eq.s32.totalorder %s20, 0
    %p115 = por %p113, %p114
    %s117 = sadd.s32 %s116, 1
    %p120 = scmp.eq.s32.totalorder %s14, 1
    %p121 = scmp.ne.s32.totalorder %s116, %s118
    %p122 = scmp.eq.s32.totalorder %s14, 0
    %p123 = por %p121, %p122
    %p124 = scmp.ne.s32.totalorder %s116, %s118
    %p125 = scmp.eq.s32.totalorder %s19, 1
    %p126 = por %p124, %p125
    %p127 = scmp.ne.s32.totalorder %s118, %s119
    %p128 = scmp.eq.s32.totalorder %s19, 0
    %p129 = por %p127, %p128
    %p130 = scmp.ne.s32.totalorder %s118, %s119
    %p131 = scmp.eq.s32.totalorder %s20, 1
    %p132 = por %p130, %p131
    %p134 = scmp.ne.s32.totalorder %s119, %s133
    %p135 = scmp.eq.s32.totalorder %s20, 0
    %p136 = por %p134, %p135
    %s138 = sadd.s32 %s137, 1
    %p141 = scmp.eq.s32.totalorder %s14, 1
    %p142 = scmp.ne.s32.totalorder %s137, %s139
    %p143 = scmp.eq.s32.totalorder %s14, 0
    %p144 = por %p142, %p143
    %p145 = scmp.ne.s32.totalorder %s137, %s139
    %p146 = scmp.eq.s32.totalorder %s19, 1
    %p147 = por %p145, %p146
    %p148 = scmp.ne.s32.totalorder %s139, %s140
    %p149 = scmp.eq.s32.totalorder %s19, 0
    %p150 = por %p148, %p149
    %p151 = scmp.ne.s32.totalorder %s139, %s140
    %p152 = scmp.eq.s32.totalorder %s20, 1
    %p153 = por %p151, %p152
    %p155 = scmp.ne.s32.totalorder %s140, %s154
    %p156 = scmp.eq.s32.totalorder %s20, 0
    %p157 = por %p155, %p156
    %s159 = sadd.s32 %s158, 1
    %p162 = scmp.eq.s32.totalorder %s14, 1
    %p163 = scmp.ne.s32.totalorder %s158, %s160
    %p164 = scmp.eq.s32.totalorder %s14, 0
    %p165 = por %p163, %p164
    %p166 = scmp.ne.s32.totalorder %s158, %s160
    %p167 = scmp.eq.s32.totalorder %s19, 1
    %p168 = por %p166, %p167
    %p169 = scmp.ne.s32.totalorder %s160, %s161
    %p170 = scmp.eq.s32.totalorder %s19, 0
    %p171 = por %p169, %p170
    %p172 = scmp.ne.s32.totalorder %s160, %s161
    %p173 = scmp.eq.s32.totalorder %s20, 1
    %p174 = por %p172, %p173
    %p176 = scmp.ne.s32.totalorder %s161, %s175
    %p177 = scmp.eq.s32.totalorder %s20, 0
    %p178 = por %p176, %p177
    %s180 = sadd.s32 %s179, 1
    %p183 = scmp.eq.s32.totalorder %s14, 1
    %p184 = scmp.ne.s32.totalorder %s179, %s181
    %p185 = scmp.eq.s32.totalorder %s14, 0
    %p186 = por %p184, %p185
    %p187 = scmp.ne.s32.totalorder %s179, %s181
    %p188 = scmp.eq.s32.totalorder %s19, 1
    %p189 = por %p187, %p188
    %p190 = scmp.ne.s32.totalorder %s181, %s182
    %p191 = scmp.eq.s32.totalorder %s19, 0
    %p192 = por %p190, %p191
    %p193 = scmp.ne.s32.totalorder %s181, %s182
    %p194 = scmp.eq.s32.totalorder %s20, 1
    %p195 = por %p193, %p194
    %p197 = scmp.ne.s32.totalorder %s182, %s196
    %p198 = scmp.eq.s32.totalorder %s20, 0
    %p199 = por %p197, %p198
    %s200 = ssub.s32 %s14, %s21
    %p201 = scmp.eq.s32.totalorder %s200, 0
    %s203 = sadd.s32 %s202, 1
    %s204 = scalar_select %p201, %s202, %s203
    %p207 = pneg %p201
    %p208 = scmp.eq.s32.totalorder %s14, 1
    %p209 = por %p207, %p208
    %p210 = scmp.ne.s32.totalorder %s202, %s205
    %p211 = scmp.eq.s32.totalorder %s14, 0
    %p212 = por %p210, %p211
    %p213 = scmp.ne.s32.totalorder %s202, %s205
    %p214 = scmp.eq.s32.totalorder %s19, 1
    %p215 = por %p213, %p214
    %p216 = scmp.ne.s32.totalorder %s205, %s206
    %p217 = scmp.eq.s32.totalorder %s19, 0
    %p218 = por %p216, %p217
    %p219 = scmp.ne.s32.totalorder %s205, %s206
    %p220 = scmp.eq.s32.totalorder %s20, 1
    %p221 = por %p219, %p220
    %p223 = scmp.ne.s32.totalorder %s206, %s222
    %p224 = scmp.eq.s32.totalorder %s20, 0
    %p225 = por %p223, %p224
    %p226 = scmp.le.s32.totalorder 1, %s14
    %p227 = scmp.lt.s32.totalorder %s14, 3
    %p228 = pnand %p226, %p227
    %p229 = pneg %p228
    // Predicated region
    $region9: #{_lambda_.1} parent=5 // pred_check
      _
    $region10: #{_lambda_.1} parent=5 // pred_check_branch
      %231 = sbr.rel (%p228) target = $region12
    $region11: #{_lambda_.1} parent=5 // pred_region
      %s232 = ssub.s32 %s14, 1
      // Predicated region
      $region13: #{_lambda_.1} parent=11 // pred_check
        %p233 = pneg %p87
      $region14: #{_lambda_.1} parent=11 // pred_check_branch
        %235 = sbr.rel (%p233) target = $region16
      $region15: #{_lambda_.1} parent=11 // pred_region
        _
      $region16: #{_lambda_.1} parent=11 // pred_fallthru
        _
      // Predicated region
      $region17: #{_lambda_.1} parent=11 // pred_check
        %p236 = pneg %p108
      $region18: #{_lambda_.1} parent=11 // pred_check_branch
        %238 = sbr.rel (%p236) target = $region20
      $region19: #{_lambda_.1} parent=11 // pred_region
        _
      $region20: #{_lambda_.1} parent=11 // pred_fallthru
        _
      // Predicated region
      $region21: #{_lambda_.1} parent=11 // pred_check
        %p239 = pneg %p129
      $region22: #{_lambda_.1} parent=11 // pred_check_branch
        %241 = sbr.rel (%p239) target = $region24
      $region23: #{_lambda_.1} parent=11 // pred_region
        _
      $region24: #{_lambda_.1} parent=11 // pred_fallthru
        _
      // Predicated region
      $region25: #{_lambda_.1} parent=11 // pred_check
        %p242 = pneg %p150
      $region26: #{_lambda_.1} parent=11 // pred_check_branch
        %244 = sbr.rel (%p242) target = $region28
      $region27: #{_lambda_.1} parent=11 // pred_region
        _
      $region28: #{_lambda_.1} parent=11 // pred_fallthru
        _
      // Predicated region
      $region29: #{_lambda_.1} parent=11 // pred_check
        %p245 = pneg %p171
      $region30: #{_lambda_.1} parent=11 // pred_check_branch
        %247 = sbr.rel (%p245) target = $region32
      $region31: #{_lambda_.1} parent=11 // pred_region
        _
      $region32: #{_lambda_.1} parent=11 // pred_fallthru
        _
      // Predicated region
      $region33: #{_lambda_.1} parent=11 // pred_check
        %p248 = pneg %p192
      $region34: #{_lambda_.1} parent=11 // pred_check_branch
        %250 = sbr.rel (%p248) target = $region36
      $region35: #{_lambda_.1} parent=11 // pred_region
        _
      $region36: #{_lambda_.1} parent=11 // pred_fallthru
        _
    $region12: #{_lambda_.1} parent=5 // pred_fallthru
      _
    %p251 = scmp.lt.s32.totalorder %s14, 2
    // Predicated region
    $region37: #{_lambda_.1} parent=5 // pred_check
      %p252 = pneg %p251
    $region38: #{_lambda_.1} parent=5 // pred_check_branch
      %254 = sbr.rel (%p252) target = $region40
    $region39: #{_lambda_.1} parent=5 // pred_region
      // Predicated region
      $region41: #{_lambda_.1} parent=39 // pred_check
        %p255 = pneg %p34
      $region42: #{_lambda_.1} parent=39 // pred_check_branch
        %257 = sbr.rel (%p255) target = $region44
      $region43: #{_lambda_.1} parent=39 // pred_region
        %p258 = scmp.lt.s32.totalorder %s14, 1
        %s259 = scalar_select %p258, %s14, 1
        %s260 = smul.addr %s259, 8
        %s261 = smul.addr %s260, 4
        %s262 = scalar_lea.vmem %s0, %s261
      $region44: #{_lambda_.1} parent=39 // pred_fallthru
        _
      // Predicated region
      $region45: #{_lambda_.1} parent=39 // pred_check
        %p263 = pneg %p60
      $region46: #{_lambda_.1} parent=39 // pred_check_branch
        %265 = sbr.rel (%p263) target = $region48
      $region47: #{_lambda_.1} parent=39 // pred_region
        %p266 = scmp.lt.s32.totalorder %s14, 1
        %s267 = scalar_select %p266, %s14, 1
        %s268 = smul.addr %s267, 4
        %s269 = smul.addr %s268, 8
        %s270 = scalar_lea.vmem %s1, %s269
      $region48: #{_lambda_.1} parent=39 // pred_fallthru
        _
    $region40: #{_lambda_.1} parent=5 // pred_fallthru
      _
    %p271 = scmp.le.s32.totalorder 1, %s14
    %p272 = scmp.lt.s32.totalorder %s14, 3
    %p273 = pnand %p271, %p272
    %p274 = pneg %p273
    // Predicated region
    $region49: #{_lambda_.1} parent=5 // pred_check
      _
    $region50: #{_lambda_.1} parent=5 // pred_check_branch
      %276 = sbr.rel (%p273) target = $region52
    $region51: #{_lambda_.1} parent=5 // pred_region
      %s277 = ssub.s32 %s14, 1
      %p278 = scmp.lt.s32.totalorder %s19, 1
      %s279 = scalar_select %p278, %s19, 1
      %s280 = smul.addr %s279, 8
      %s281 = smul.addr %s280, 4
      %s282 = scalar_lea.vmem %s0, %s281
      %p283 = pneg %p40
      %p284 = pneg %p37
      %p285 = scmp.lt.s32.totalorder %s19, 1
      %s286 = scalar_select %p285, %s19, 1
      %s287 = smul.addr %s286, 4
      %s288 = smul.addr %s287, 8
      %s289 = scalar_lea.vmem %s1, %s288
      %p290 = pneg %p66
      %p291 = pneg %p63
      %p292 = pneg %p87
      %p293 = pneg %p84
      %p294 = pneg %p108
      %p295 = pneg %p105
      %p296 = pneg %p129
      %p297 = pneg %p126
      %p298 = pneg %p150
      %p299 = pneg %p147
      %p300 = pneg %p171
      %p301 = pneg %p168
      %p302 = pneg %p192
      %p303 = pneg %p189
      %p304 = pneg %p218
      %p305 = pneg %p215
      %p306 = scmp.lt.s32.totalorder %s19, 1
      %s307 = scalar_select %p306, %s19, 1
      %s308 = smul.addr %s307, 4
      %s309 = smul.addr %s308, 8
      %s310 = scalar_lea.vmem %s8, %s309
      %p311 = scmp.lt.s32.totalorder %s19, 1
      %s312 = scalar_select %p311, %s19, 1
      %s313 = smul.addr %s312, 8
      %s314 = smul.addr %s313, 4
      %s315 = scalar_lea.vmem %s0, %s314
      %p316 = scmp.lt.s32.totalorder %s19, 1
      %s317 = scalar_select %p316, %s19, 1
      %s318 = smul.addr %s317, 4
      %s319 = smul.addr %s318, 8
      %s320 = scalar_lea.vmem %s1, %s319
      %p321 = scmp.lt.s32.totalorder %s19, 1
      %s322 = scalar_select %p321, %s19, 1
      %s323 = smul.addr %s322, 4
      %s324 = smul.addr %s323, 8
      %s325 = scalar_lea.vmem %s8, %s324
      %vm327 = vcmask 261120
      %328 = vst.msk [vmem:[#allocation2] sm:$0xff] %vm327, 0.0
      %329 = vst.msk [vmem:[#allocation2 + $0x8] sm:$0xff] %vm327, 0.0
      %330 = vst.msk [vmem:[#allocation2 + $0x30] sm:$0xff] %vm327, 0.0
      %331 = vst.msk [vmem:[#allocation2 + $0x38] sm:$0xff] %vm327, 0.0
      %v332 = vlaneseq
      %v333 = vshrl.u32 %v332, 7
      %v334 = vadd.s32 %v333, 8
      %v335 = vadd.s32 %v333, 16
      %v336 = vadd.s32 %v333, 24
      %vm337 = vcmp.lt.s32.totalorder %v333, 0
      %v338 = vsub.s32 0, %v333
      %v339 = vsel %vm337, %v338, %v333
      %v340 = vshrl.u32 %v339, 3
      %v341 = vand.u32 %v339, 7
      %v342 = vsub.s32 0, %v341
      %v343 = vsel %vm337, %v342, %v341
      %vm344 = vcmp.lt.s32.totalorder %v334, 0
      %v345 = vsub.s32 0, %v334
      %v346 = vsel %vm344, %v345, %v334
      %v347 = vshrl.u32 %v346, 3
      %v348 = vand.u32 %v346, 7
      %v349 = vsub.s32 0, %v348
      %v350 = vsel %vm344, %v349, %v348
      %vm351 = vcmp.lt.s32.totalorder %v335, 0
      %v352 = vsub.s32 0, %v335
      %v353 = vsel %vm351, %v352, %v335
      %v354 = vshrl.u32 %v353, 3
      %v355 = vand.u32 %v353, 7
      %v356 = vsub.s32 0, %v355
      %v357 = vsel %vm351, %v356, %v355
      %vm358 = vcmp.lt.s32.totalorder %v336, 0
      %v359 = vsub.s32 0, %v336
      %v360 = vsel %vm358, %v359, %v336
      %v361 = vshrl.u32 %v360, 3
      %v362 = vand.u32 %v360, 7
      %v363 = vsub.s32 0, %v362
      %v364 = vsel %vm358, %v363, %v362
      %vm365 = vcmp.ne.s32.totalorder %v343, 0
      %vm366 = vcmp.ne.s32.totalorder %v350, 0
      %vm367 = vcmp.ne.s32.totalorder %v357, 0
      %vm368 = vcmp.ne.s32.totalorder %v364, 0
      %vm369 = vcmp.lt.s32.totalorder %v343, 0
      %vm370 = vcmp.lt.s32.totalorder %v350, 0
      %vm371 = vcmp.lt.s32.totalorder %v357, 0
      %vm372 = vcmp.lt.s32.totalorder %v364, 0
      %vm373 = vmand %vm369, %vm365
      %vm374 = vmand %vm370, %vm366
      %vm375 = vmand %vm371, %vm367
      %vm376 = vmand %vm372, %vm368
      %v377 = vadd.s32 %v343, 8
      %v378 = vadd.s32 %v350, 8
      %v379 = vadd.s32 %v357, 8
      %v380 = vadd.s32 %v364, 8
      %v381 = vsel %vm373, %v377, %v343
      %v382 = vsel %vm374, %v378, %v350
      %v383 = vsel %vm375, %v379, %v357
      %v384 = vsel %vm376, %v380, %v364
      %vm385 = vcmp.ge.s32.totalorder %v381, 1
      %vm386 = vcmp.ge.s32.totalorder %v382, 1
      %vm387 = vcmp.ge.s32.totalorder %v383, 1
      %vm388 = vcmp.ge.s32.totalorder %v384, 1
      %vm389 = vcmp.lt.s32.totalorder %v381, 5
      %vm390 = vcmp.lt.s32.totalorder %v382, 5
      %vm391 = vcmp.lt.s32.totalorder %v383, 5
      %vm392 = vcmp.lt.s32.totalorder %v384, 5
      %vm393 = vmand %vm385, %vm389
      %vm394 = vmand %vm386, %vm390
      %vm395 = vmand %vm387, %vm391
      %vm396 = vmand %vm388, %vm392
      %v397 = vsel %vm393, 1, 0
      %v398 = vsel %vm394, 1, 0
      %v399 = vsel %vm395, 1, 0
      %v400 = vsel %vm396, 1, 0
      %v401 = vcvt.s32.f32 %v397
      %v402 = vcvt.s32.f32 %v398
      %v403 = vcvt.s32.f32 %v399
      %v404 = vcvt.s32.f32 %v400
      %v405 = vld [vmem:[%s315] sm:$0xff]
      %v406 = vld [vmem:[%s315 + $0x8] sm:$0xff]
      %v407 = vld [vmem:[%s315 + $0x10] sm:$0xff]
      %v408 = vld [vmem:[%s315 + $0x18] sm:$0xff]
      %v409 = vld [vmem:[%s2] sm:$0xf]
      %v410 = vld [vmem:[%s2 + $0x4] sm:$0xf]
      %v411 = vld [vmem:[%s2 + $0x8] sm:$0xf]
      %v412 = vld [vmem:[%s2 + $0xc] sm:$0xf]
      %v413 = vld [vmem:[%s2 + $0x10] sm:$0xf]
      %v414 = vld [vmem:[%s2 + $0x14] sm:$0xf]
      %v415 = vld [vmem:[%s2 + $0x18] sm:$0xf]
      %v416 = vld [vmem:[%s2 + $0x1c] sm:$0xf]
      %v417 = vld [vmem:[%s2 + $0x20] sm:$0xf]
      %v418 = vld [vmem:[%s2 + $0x24] sm:$0xf]
      %v419 = vld [vmem:[%s2 + $0x28] sm:$0xf]
      %v420 = vld [vmem:[%s2 + $0x2c] sm:$0xf]
      %v421 = vld [vmem:[%s2 + $0x30] sm:$0xf]
      %v422 = vld [vmem:[%s2 + $0x34] sm:$0xf]
      %v423 = vld [vmem:[%s2 + $0x38] sm:$0xf]
      %v424 = vld [vmem:[%s2 + $0x3c] sm:$0xf]
      %v425 = vld [vmem:[%s2 + $0x40] sm:$0xf]
      %v426 = vld [vmem:[%s2 + $0x44] sm:$0xf]
      %v427 = vld [vmem:[%s2 + $0x48] sm:$0xf]
      %v428 = vld [vmem:[%s2 + $0x4c] sm:$0xf]
      %v429 = vld [vmem:[%s3] sm:$0x1]
      %v431 = vlaneseq
      %v432 = vshrl.u32 %v431, 7
      %v433 = vsub.s32 0, %v432
      %v434 = vrot.slane %v429, %v433
      %v440 = vunpack.c.l.b16 %v405
      %v441 = vunpack.c.h.b16 %v405
      %v442 = vunpack.c.l.b16 %v406
      %v443 = vunpack.c.h.b16 %v406
      %v444 = vunpack.c.l.b16 %v407
      %v445 = vunpack.c.h.b16 %v407
      %v446 = vunpack.c.l.b16 %v408
      %v447 = vunpack.c.h.b16 %v408
      %v448 = vpack.c.b16 %v442, %v440
      %v449 = vpack.c.b16 %v443, %v441
      %v450 = vpack.c.b16 %v446, %v444
      %v451 = vpack.c.b16 %v447, %v445
      %v474 = vunpack.c.l.b16 %v409
      %v475 = vunpack.c.l.b16 %v410
      %v476 = vunpack.c.l.b16 %v411
      %v477 = vunpack.c.l.b16 %v412
      %v478 = vunpack.c.l.b16 %v413
      %v479 = vunpack.c.l.b16 %v414
      %v480 = vunpack.c.l.b16 %v415
      %v481 = vunpack.c.l.b16 %v416
      %v482 = vunpack.c.l.b16 %v417
      %v483 = vunpack.c.l.b16 %v418
      %v484 = vunpack.c.l.b16 %v419
      %v485 = vunpack.c.l.b16 %v420
      %v486 = vunpack.c.l.b16 %v421
      %v487 = vunpack.c.l.b16 %v422
      %v488 = vunpack.c.l.b16 %v423
      %v489 = vunpack.c.l.b16 %v424
      %v490 = vunpack.c.l.b16 %v425
      %v491 = vunpack.c.l.b16 %v426
      %v492 = vunpack.c.l.b16 %v427
      %v493 = vunpack.c.l.b16 %v428
      %v494 = vpack.c.b16 %v475, %v474
      %v495 = vpack.c.b16 %v477, %v476
      %v496 = vpack.c.b16 %v479, %v478
      %v497 = vpack.c.b16 %v481, %v480
      %v498 = vpack.c.b16 %v483, %v482
      %v499 = vpack.c.b16 %v485, %v484
      %v500 = vpack.c.b16 %v487, %v486
      %v501 = vpack.c.b16 %v489, %v488
      %v502 = vpack.c.b16 %v491, %v490
      %v503 = vpack.c.b16 %v493, %v492
      %v515 = vsel %vm327, %v449, 0
      %v518 = vsel %vm327, %v451, 0
      %520 = vmatprep.subr.bf16.mxu0 0
      %521 = vmatpush1.bf16.msra.mxu0 %v494
      %522 = vmatprep.subr.bf16.mxu0 0
      %523 = vmatpush1.bf16.msra.mxu0 %v495
      %524 = vmatprep.subr.bf16.mxu0 0
      %525 = vmatpush1.bf16.msra.mxu0 %v496
      %526 = vmatprep.subr.bf16.mxu0 0
      %527 = vmatpush1.bf16.msra.mxu0 %v497
      %528 = vmatprep.subr.bf16.mxu0 0
      %529 = vmatpush1.bf16.msra.mxu0 %v498
      %530 = vmatprep.subr.bf16.mxu0 0
      %531 = vmatpush1.bf16.msra.mxu0 %v499
      %532 = vmatprep.subr.bf16.mxu0 0
      %533 = vmatpush1.bf16.msra.mxu0 %v500
      %534 = vmatprep.subr.bf16.mxu0 0
      %535 = vmatpush1.bf16.msra.mxu0 %v501
      %536 = vmatprep.subr.bf16.mxu0 0
      %537 = vmatpush1.bf16.msra.mxu0 %v502
      %538 = vmatprep.subr.bf16.mxu0 0
      %539 = vmatpush1.bf16.msra.mxu0 %v503
      %540 = vmatprep.subr.bf16.mxu0 0
      %541 = vmatpush1.bf16.msra.mxu0 0
      %542 = vmatprep.subr.bf16.mxu0 0
      %543 = vmatpush1.bf16.msra.mxu0 0
      %544 = vmatprep.subr.bf16.mxu0 0
      %545 = vmatpush1.bf16.msra.mxu0 0
      %546 = vmatprep.subr.bf16.mxu0 0
      %547 = vmatpush1.bf16.msra.mxu0 0
      %548 = vmatprep.subr.bf16.mxu0 0
      %549 = vmatpush1.bf16.msra.mxu0 0
      %550 = vmatprep.subr.bf16.mxu0 0
      %551 = vmatpush1.bf16.msra.mxu0 0
      %552 = vmatprep.mubr.bf16.mxu0 %v515
      %553 = vmatmul.mubr.bf16.gmra.mrb[0].mxu0 %v448
      %v554 = vpop.f32.mrb[0].mxu0
      %v555 = vadd.f32 %v434, %v554
      %v556 = vpop.f32.mrb[0].mxu0
      %v557 = vpop.f32.mrb[0].mxu0
      %v558 = vadd.f32 %v434, %v557
      %v559 = vpop.f32.mrb[0].mxu0
      %560 = vmatprep.mubr.bf16.mxu0 %v518
      %561 = vmatmul.mubr.bf16.gmra.mrb[0].mxu0 %v450
      %v562 = vpop.f32.mrb[0].mxu0
      %v563 = vadd.f32 %v434, %v562
      %v564 = vpop.f32.mrb[0].mxu0
      %v565 = vpop.f32.mrb[0].mxu0
      %v566 = vadd.f32 %v434, %v565
      %v567 = vpop.f32.mrb[0].mxu0
      %568 = vdwg.mxu0
      %vm569 = vcmp.gt.f32.partialorder %v555, 0.0
      %vm570 = vcmp.gt.f32.partialorder %v558, 0.0
      %vm571 = vcmp.gt.f32.partialorder %v563, 0.0
      %vm572 = vcmp.gt.f32.partialorder %v566, 0.0
      %v573 = vmul.f32 %v555, 0.2
      %v574 = vmul.f32 %v558, 0.2
      %v575 = vmul.f32 %v563, 0.2
      %v576 = vmul.f32 %v566, 0.2
      %v577 = vsel %vm569, %v555, %v573
      %v578 = vsel %vm570, %v558, %v574
      %v579 = vsel %vm571, %v563, %v575
      %v580 = vsel %vm572, %v566, %v576
      %v581 = vmul.f32 %v577, %v401
      %v582 = vmul.f32 %v578, %v402
      %v583 = vmul.f32 %v579, %v403
      %v584 = vmul.f32 %v580, %v404
      %585 = vst.msk [vmem:[#allocation2 + $0x10] sm:$0xff] %vm327, %v581
      %586 = vst.msk [vmem:[#allocation2 + $0x18] sm:$0xff] %vm327, %v582
      %587 = vst.msk [vmem:[#allocation2 + $0x20] sm:$0xff] %vm327, %v583
      %588 = vst.msk [vmem:[#allocation2 + $0x28] sm:$0xff] %vm327, %v584
      %v589 = vld [vmem:[%s4] sm:$0xf]
      %v590 = vld [vmem:[%s4 + $0x4] sm:$0xf]
      %v591 = vld [vmem:[%s4 + $0x8] sm:$0xf]
      %v592 = vld [vmem:[%s4 + $0xc] sm:$0xf]
      %v593 = vld [vmem:[%s4 + $0x10] sm:$0xf]
      %v594 = vld [vmem:[%s4 + $0x14] sm:$0xf]
      %v595 = vld [vmem:[%s4 + $0x18] sm:$0xf]
      %v596 = vld [vmem:[%s4 + $0x1c] sm:$0xf]
      %v597 = vld [vmem:[%s4 + $0x20] sm:$0xf]
      %v598 = vld [vmem:[%s4 + $0x24] sm:$0xf]
      %v599 = vld [vmem:[%s4 + $0x28] sm:$0xf]
      %v600 = vld [vmem:[%s4 + $0x2c] sm:$0xf]
      %v601 = vld [vmem:[%s4 + $0x30] sm:$0xf]
      %v602 = vld [vmem:[%s4 + $0x34] sm:$0xf]
      %v603 = vld [vmem:[%s4 + $0x38] sm:$0xf]
      %v604 = vld [vmem:[%s4 + $0x3c] sm:$0xf]
      %v605 = vld [vmem:[%s4 + $0x40] sm:$0xf]
      %v606 = vld [vmem:[%s4 + $0x44] sm:$0xf]
      %v607 = vld [vmem:[%s4 + $0x48] sm:$0xf]
      %v608 = vld [vmem:[%s4 + $0x4c] sm:$0xf]
      %v609 = vld [vmem:[%s4 + $0x50] sm:$0xf]
      %v610 = vld [vmem:[%s4 + $0x54] sm:$0xf]
      %v611 = vld [vmem:[%s4 + $0x58] sm:$0xf]
      %v612 = vld [vmem:[%s4 + $0x5c] sm:$0xf]
      %v613 = vld [vmem:[%s4 + $0x60] sm:$0xf]
      %v614 = vld [vmem:[%s4 + $0x64] sm:$0xf]
      %v615 = vld [vmem:[%s4 + $0x68] sm:$0xf]
      %v616 = vld [vmem:[%s4 + $0x6c] sm:$0xf]
      %v617 = vld [vmem:[%s4 + $0x70] sm:$0xf]
      %v618 = vld [vmem:[%s4 + $0x74] sm:$0xf]
      %v619 = vld [vmem:[%s4 + $0x78] sm:$0xf]
      %v620 = vld [vmem:[%s4 + $0x7c] sm:$0xf]
      %v621 = vld [vmem:[%s4 + $0x80] sm:$0xf]
      %v622 = vld [vmem:[%s4 + $0x84] sm:$0xf]
      %v623 = vld [vmem:[%s4 + $0x88] sm:$0xf]
      %v624 = vld [vmem:[%s4 + $0x8c] sm:$0xf]
      %v625 = vld [vmem:[%s5] sm:$0x1]
      %v626 = vld [vmem:[#allocation2 + $0x7] sm:$0xff]
      %v627 = vld [vmem:[#allocation2 + $0xf] sm:$0xff]
      %v628 = vld [vmem:[#allocation2 + $0x17] sm:$0xff]
      %v629 = vld [vmem:[#allocation2 + $0x1f] sm:$0xff]
      %v630 = vpack.c.bf16 %v627, %v626
      %v631 = vpack.c.bf16 %v629, %v628
      %632 = vst.msk [vmem:[#allocation3] sm:$0xff] %vm327, %v630
      %633 = vst.msk [vmem:[#allocation3 + $0x18] sm:$0xff] %vm327, %v631
      %v634 = vld [vmem:[#allocation2 + $0x8] sm:$0xff]
      %v635 = vld [vmem:[#allocation2 + $0x10] sm:$0xff]
      %v636 = vld [vmem:[#allocation2 + $0x18] sm:$0xff]
      %v637 = vld [vmem:[#allocation2 + $0x20] sm:$0xff]
      %v638 = vpack.c.bf16 %v635, %v634
      %v639 = vpack.c.bf16 %v637, %v636
      %642 = vrot.lane.b32.xlu0 %v638, 32
      %v643 = vpop.permute.xlu0 %642
      %644 = vrot.lane.b32.xlu0 %v639, 32
      %v645 = vpop.permute.xlu0 %644
      %vm648 = vcmask 523520
      %649 = vst.msk [vmem:[#allocation3] sm:$0xff] %vm648, %v643
      %650 = vst.msk [vmem:[#allocation3 + $0x18] sm:$0xff] %vm648, %v645
      %v651 = vld [vmem:[#allocation2 + $0x9] sm:$0xff]
      %v652 = vld [vmem:[#allocation2 + $0x11] sm:$0xff]
      %v653 = vld [vmem:[#allocation2 + $0x19] sm:$0xff]
      %v654 = vld [vmem:[#allocation2 + $0x21] sm:$0xff]
      %v655 = vpack.c.bf16 %v652, %v651
      %v656 = vpack.c.bf16 %v654, %v653
      %659 = vrot.lane.b32.xlu0 %v655, 64
      %v660 = vpop.permute.xlu0 %659
      %661 = vrot.lane.b32.xlu0 %v656, 64
      %v662 = vpop.permute.xlu0 %661
      %vm665 = vcmask 785920
      %666 = vst.msk [vmem:[#allocation3] sm:$0xff] %vm665, %v660
      %667 = vst.msk [vmem:[#allocation3 + $0x18] sm:$0xff] %vm665, %v662
      %v668 = vld [vmem:[#allocation2 + $0xf] sm:$0xff]
      %v669 = vld [vmem:[#allocation2 + $0x17] sm:$0xff]
      %v670 = vld [vmem:[#allocation2 + $0x1f] sm:$0xff]
      %v671 = vld [vmem:[#allocation2 + $0x27] sm:$0xff]
      %v672 = vpack.c.bf16 %v669, %v668
      %v673 = vpack.c.bf16 %v671, %v670
      %676 = vrot.lane.b32.xlu0 %v672, 96
      %v677 = vpop.permute.xlu0 %676
      %678 = vrot.lane.b32.xlu0 %v673, 96
      %v679 = vpop.permute.xlu0 %678
      %vm682 = vcmask 1048320
      %683 = vst.msk [vmem:[#allocation3] sm:$0xff] %vm682, %v677
      %684 = vst.msk [vmem:[#allocation3 + $0x18] sm:$0xff] %vm682, %v679
      %v685 = vld [vmem:[#allocation2 + $0x10] sm:$0xff]
      %v686 = vld [vmem:[#allocation2 + $0x18] sm:$0xff]
      %v687 = vld [vmem:[#allocation2 + $0x20] sm:$0xff]
      %v688 = vld [vmem:[#allocation2 + $0x28] sm:$0xff]
      %v689 = vpack.c.bf16 %v686, %v685
      %v690 = vpack.c.bf16 %v688, %v687
      %691 = vst.msk [vmem:[#allocation3 + $0x8] sm:$0xff] %vm327, %v689
      %692 = vst.msk [vmem:[#allocation3 + $0x20] sm:$0xff] %vm327, %v690
      %v693 = vld [vmem:[#allocation2 + $0x11] sm:$0xff]
      %v694 = vld [vmem:[#allocation2 + $0x19] sm:$0xff]
      %v695 = vld [vmem:[#allocation2 + $0x21] sm:$0xff]
      %v696 = vld [vmem:[#allocation2 + $0x29] sm:$0xff]
      %v697 = vpack.c.bf16 %v694, %v693
      %v698 = vpack.c.bf16 %v696, %v695
      %701 = vrot.lane.b32.xlu0 %v697, 32
      %v702 = vpop.permute.xlu0 %701
      %703 = vrot.lane.b32.xlu0 %v698, 32
      %v704 = vpop.permute.xlu0 %703
      %707 = vst.msk [vmem:[#allocation3 + $0x8] sm:$0xff] %vm648, %v702
      %708 = vst.msk [vmem:[#allocation3 + $0x20] sm:$0xff] %vm648, %v704
      %v709 = vld [vmem:[#allocation2 + $0x17] sm:$0xff]
      %v710 = vld [vmem:[#allocation2 + $0x1f] sm:$0xff]
      %v711 = vld [vmem:[#allocation2 + $0x27] sm:$0xff]
      %v712 = vld [vmem:[#allocation2 + $0x2f] sm:$0xff]
      %v713 = vpack.c.bf16 %v710, %v709
      %v714 = vpack.c.bf16 %v712, %v711
      %717 = vrot.lane.b32.xlu0 %v713, 64
      %v718 = vpop.permute.xlu0 %717
      %719 = vrot.lane.b32.xlu0 %v714, 64
      %v720 = vpop.permute.xlu0 %719
      %723 = vst.msk [vmem:[#allocation3 + $0x8] sm:$0xff] %vm665, %v718
      %724 = vst.msk [vmem:[#allocation3 + $0x20] sm:$0xff] %vm665, %v720
      %v725 = vld [vmem:[#allocation2 + $0x18] sm:$0xff]
      %v726 = vld [vmem:[#allocation2 + $0x20] sm:$0xff]
      %v727 = vld [vmem:[#allocation2 + $0x28] sm:$0xff]
      %v728 = vld [vmem:[#allocation2 + $0x30] sm:$0xff]
      %v729 = vpack.c.bf16 %v726, %v725
      %v730 = vpack.c.bf16 %v728, %v727
      %733 = vrot.lane.b32.xlu0 %v729, 96
      %v734 = vpop.permute.xlu0 %733
      %735 = vrot.lane.b32.xlu0 %v730, 96
      %v736 = vpop.permute.xlu0 %735
      %739 = vst.msk [vmem:[#allocation3 + $0x8] sm:$0xff] %vm682, %v734
      %740 = vst.msk [vmem:[#allocation3 + $0x20] sm:$0xff] %vm682, %v736
      %v741 = vld [vmem:[#allocation2 + $0x19] sm:$0xff]
      %v742 = vld [vmem:[#allocation2 + $0x21] sm:$0xff]
      %v743 = vld [vmem:[#allocation2 + $0x29] sm:$0xff]
      %v744 = vld [vmem:[#allocation2 + $0x31] sm:$0xff]
      %v745 = vpack.c.bf16 %v742, %v741
      %v746 = vpack.c.bf16 %v744, %v743
      %747 = vst.msk [vmem:[#allocation3 + $0x10] sm:$0xff] %vm327, %v745
      %748 = vst.msk [vmem:[#allocation3 + $0x28] sm:$0xff] %vm327, %v746
      %v749 = vld [vmem:[#allocation3] sm:$0xff]
      %v750 = vld [vmem:[#allocation3 + $0x8] sm:$0xff]
      %v751 = vld [vmem:[#allocation3 + $0x10] sm:$0xff]
      %v752 = vld [vmem:[#allocation3 + $0x18] sm:$0xff]
      %v753 = vld [vmem:[#allocation3 + $0x20] sm:$0xff]
      %v754 = vld [vmem:[#allocation3 + $0x28] sm:$0xff]
      %v755 = vlaneseq
      %v756 = vshrl.u32 %v755, 7
      %v757 = vsub.s32 0, %v756
      %v758 = vrot.slane %v625, %v757
      %v795 = vunpack.c.l.b16 %v589
      %v796 = vunpack.c.l.b16 %v590
      %v797 = vunpack.c.l.b16 %v591
      %v798 = vunpack.c.l.b16 %v592
      %v799 = vunpack.c.l.b16 %v593
      %v800 = vunpack.c.l.b16 %v594
      %v801 = vunpack.c.l.b16 %v595
      %v802 = vunpack.c.l.b16 %v596
      %v803 = vunpack.c.l.b16 %v597
      %v804 = vunpack.c.l.b16 %v598
      %v805 = vunpack.c.l.b16 %v599
      %v806 = vunpack.c.l.b16 %v600
      %v807 = vunpack.c.l.b16 %v601
      %v808 = vunpack.c.l.b16 %v602
      %v809 = vunpack.c.l.b16 %v603
      %v810 = vunpack.c.l.b16 %v604
      %v811 = vunpack.c.l.b16 %v605
      %v812 = vunpack.c.l.b16 %v606
      %v813 = vunpack.c.l.b16 %v607
      %v814 = vunpack.c.l.b16 %v608
      %v815 = vunpack.c.l.b16 %v609
      %v816 = vunpack.c.l.b16 %v610
      %v817 = vunpack.c.l.b16 %v611
      %v818 = vunpack.c.l.b16 %v612
      %v819 = vunpack.c.l.b16 %v613
      %v820 = vunpack.c.l.b16 %v614
      %v821 = vunpack.c.l.b16 %v615
      %v822 = vunpack.c.l.b16 %v616
      %v823 = vunpack.c.l.b16 %v617
      %v824 = vunpack.c.l.b16 %v618
      %v825 = vunpack.c.l.b16 %v619
      %v826 = vunpack.c.l.b16 %v620
      %v827 = vunpack.c.l.b16 %v621
      %v828 = vunpack.c.l.b16 %v622
      %v829 = vunpack.c.l.b16 %v623
      %v830 = vunpack.c.l.b16 %v624
      %v831 = vpack.c.b16 %v796, %v795
      %v832 = vpack.c.b16 %v798, %v797
      %v833 = vpack.c.b16 %v800, %v799
      %v834 = vpack.c.b16 %v802, %v801
      %v835 = vpack.c.b16 %v804, %v803
      %v836 = vpack.c.b16 %v806, %v805
      %v837 = vpack.c.b16 %v808, %v807
      %v838 = vpack.c.b16 %v810, %v809
      %v839 = vpack.c.b16 %v812, %v811
      %v840 = vpack.c.b16 %v814, %v813
      %v841 = vpack.c.b16 %v816, %v815
      %v842 = vpack.c.b16 %v818, %v817
      %v843 = vpack.c.b16 %v820, %v819
      %v844 = vpack.c.b16 %v822, %v821
      %v845 = vpack.c.b16 %v824, %v823
      %v846 = vpack.c.b16 %v826, %v825
      %v847 = vpack.c.b16 %v828, %v827
      %v848 = vpack.c.b16 %v830, %v829
      %v868 = vsel %vm327, %v751, 0
      %v871 = vsel %vm327, %v754, 0
      %873 = vmatprep.subr.bf16.mxu0 0
      %874 = vmatpush1.bf16.msra.mxu0 %v831
      %875 = vmatprep.subr.bf16.mxu0 0
      %876 = vmatpush1.bf16.msra.mxu0 %v832
      %877 = vmatprep.subr.bf16.mxu0 0
      %878 = vmatpush1.bf16.msra.mxu0 %v833
      %879 = vmatprep.subr.bf16.mxu0 0
      %880 = vmatpush1.bf16.msra.mxu0 %v834
      %881 = vmatprep.subr.bf16.mxu0 0
      %882 = vmatpush1.bf16.msra.mxu0 %v835
      %883 = vmatprep.subr.bf16.mxu0 0
      %884 = vmatpush1.bf16.msra.mxu0 %v836
      %885 = vmatprep.subr.bf16.mxu0 0
      %886 = vmatpush1.bf16.msra.mxu0 %v837
      %887 = vmatprep.subr.bf16.mxu0 0
      %888 = vmatpush1.bf16.msra.mxu0 %v838
      %889 = vmatprep.subr.bf16.mxu0 0
      %890 = vmatpush1.bf16.msra.mxu0 %v839
      %891 = vmatprep.subr.bf16.mxu0 0
      %892 = vmatpush1.bf16.msra.mxu0 %v840
      %893 = vmatprep.subr.bf16.mxu0 0
      %894 = vmatpush1.bf16.msra.mxu0 %v841
      %895 = vmatprep.subr.bf16.mxu0 0
      %896 = vmatpush1.bf16.msra.mxu0 %v842
      %897 = vmatprep.subr.bf16.mxu0 0
      %898 = vmatpush1.bf16.msra.mxu0 %v843
      %899 = vmatprep.subr.bf16.mxu0 0
      %900 = vmatpush1.bf16.msra.mxu0 %v844
      %901 = vmatprep.subr.bf16.mxu0 0
      %902 = vmatpush1.bf16.msra.mxu0 %v845
      %903 = vmatprep.subr.bf16.mxu0 0
      %904 = vmatpush1.bf16.msra.mxu0 %v846
      %905 = vmatprep.mubr.bf16.mxu0 %v750
      %906 = vmatmul.mubr.bf16.gmra.mrb[0].mxu0 %v749
      %v907 = vpop.f32.mrb[0].mxu0
      %v908 = vadd.f32 %v758, %v907
      %v909 = vpop.f32.mrb[0].mxu0
      %v910 = vpop.f32.mrb[0].mxu0
      %v911 = vadd.f32 %v758, %v910
      %v912 = vpop.f32.mrb[0].mxu0
      %913 = vmatprep.mubr.bf16.mxu0 %v753
      %914 = vmatmul.mubr.bf16.gmra.mrb[0].mxu0 %v752
      %v915 = vpop.f32.mrb[0].mxu0
      %v916 = vadd.f32 %v758, %v915
      %v917 = vpop.f32.mrb[0].mxu0
      %v918 = vpop.f32.mrb[0].mxu0
      %v919 = vadd.f32 %v758, %v918
      %v920 = vpop.f32.mrb[0].mxu0
      %921 = vdwg.mxu0
      %922 = vmatprep.subr.bf16.mxu0 0
      %923 = vmatpush1.bf16.msra.mxu0 %v847
      %924 = vmatprep.subr.bf16.mxu0 0
      %925 = vmatpush1.bf16.msra.mxu0 %v848
      %926 = vmatprep.subr.bf16.mxu0 0
      %927 = vmatpush1.bf16.msra.mxu0 0
      %928 = vmatprep.subr.bf16.mxu0 0
      %929 = vmatpush1.bf16.msra.mxu0 0
      %930 = vmatprep.subr.bf16.mxu0 0
      %931 = vmatpush1.bf16.msra.mxu0 0
      %932 = vmatprep.subr.bf16.mxu0 0
      %933 = vmatpush1.bf16.msra.mxu0 0
      %934 = vmatprep.subr.bf16.mxu0 0
      %935 = vmatpush1.bf16.msra.mxu0 0
      %936 = vmatprep.subr.bf16.mxu0 0
      %937 = vmatpush1.bf16.msra.mxu0 0
      %938 = vmatprep.subr.bf16.mxu0 0
      %939 = vmatpush1.bf16.msra.mxu0 0
      %940 = vmatprep.subr.bf16.mxu0 0
      %941 = vmatpush1.bf16.msra.mxu0 0
      %942 = vmatprep.subr.bf16.mxu0 0
      %943 = vmatpush1.bf16.msra.mxu0 0
      %944 = vmatprep.subr.bf16.mxu0 0
      %945 = vmatpush1.bf16.msra.mxu0 0
      %946 = vmatprep.subr.bf16.mxu0 0
      %947 = vmatpush1.bf16.msra.mxu0 0
      %948 = vmatprep.subr.bf16.mxu0 0
      %949 = vmatpush1.bf16.msra.mxu0 0
      %950 = vmatprep.subr.bf16.mxu0 0
      %951 = vmatpush1.bf16.msra.mxu0 0
      %952 = vmatprep.subr.bf16.mxu0 0
      %953 = vmatpush1.bf16.msra.mxu0 0
      %954 = vmatprep.mubr.bf16.mxu0 0
      %955 = vmatmul.mubr.bf16.gmra.mrb[0].mxu0 %v868
      %v956 = vpop.f32.mrb[0].mxu0
      %v957 = vadd.f32 %v908, %v956
      %v958 = vpop.f32.mrb[0].mxu0
      %v959 = vpop.f32.mrb[0].mxu0
      %v960 = vadd.f32 %v911, %v959
      %v961 = vpop.f32.mrb[0].mxu0
      %962 = vmatprep.mubr.bf16.mxu0 0
      %963 = vmatmul.mubr.bf16.gmra.mrb[0].mxu0 %v871
      %v964 = vpop.f32.mrb[0].mxu0
      %v965 = vadd.f32 %v916, %v964
      %v966 = vpop.f32.mrb[0].mxu0
      %v967 = vpop.f32.mrb[0].mxu0
      %v968 = vadd.f32 %v919, %v967
      %v969 = vpop.f32.mrb[0].mxu0
      %970 = vdwg.mxu0
      %vm971 = vcmp.gt.f32.partialorder %v957, 0.0
      %vm972 = vcmp.gt.f32.partialorder %v960, 0.0
      %vm973 = vcmp.gt.f32.partialorder %v965, 0.0
      %vm974 = vcmp.gt.f32.partialorder %v968, 0.0
      %v975 = vmul.f32 %v957, 0.2
      %v976 = vmul.f32 %v960, 0.2
      %v977 = vmul.f32 %v965, 0.2
      %v978 = vmul.f32 %v968, 0.2
      %v979 = vsel %vm971, %v957, %v975
      %v980 = vsel %vm972, %v960, %v976
      %v981 = vsel %vm973, %v965, %v977
      %v982 = vsel %vm974, %v968, %v978
      %v983 = vmul.f32 %v979, %v401
      %v984 = vmul.f32 %v980, %v402
      %v985 = vmul.f32 %v981, %v403
      %v986 = vmul.f32 %v982, %v404
      %987 = vst.msk [vmem:[#allocation2 + $0x10] sm:$0xff] %vm327, %v983
      %988 = vst.msk [vmem:[#allocation2 + $0x18] sm:$0xff] %vm327, %v984
      %989 = vst.msk [vmem:[#allocation2 + $0x20] sm:$0xff] %vm327, %v985
      %990 = vst.msk [vmem:[#allocation2 + $0x28] sm:$0xff] %vm327, %v986
      %v991 = vld [vmem:[%s4 + $0x90] sm:$0xf]
      %v992 = vld [vmem:[%s4 + $0x94] sm:$0xf]
      %v993 = vld [vmem:[%s4 + $0x98] sm:$0xf]
      %v994 = vld [vmem:[%s4 + $0x9c] sm:$0xf]
      %v995 = vld [vmem:[%s4 + $0xa0] sm:$0xf]
      %v996 = vld [vmem:[%s4 + $0xa4] sm:$0xf]
      %v997 = vld [vmem:[%s4 + $0xa8] sm:$0xf]
      %v998 = vld [vmem:[%s4 + $0xac] sm:$0xf]
      %v999 = vld [vmem:[%s4 + $0xb0] sm:$0xf]
      %v1000 = vld [vmem:[%s4 + $0xb4] sm:$0xf]
      %v1001 = vld [vmem:[%s4 + $0xb8] sm:$0xf]
      %v1002 = vld [vmem:[%s4 + $0xbc] sm:$0xf]
      %v1003 = vld [vmem:[%s4 + $0xc0] sm:$0xf]
      %v1004 = vld [vmem:[%s4 + $0xc4] sm:$0xf]
      %v1005 = vld [vmem:[%s4 + $0xc8] sm:$0xf]
      %v1006 = vld [vmem:[%s4 + $0xcc] sm:$0xf]
      %v1007 = vld [vmem:[%s4 + $0xd0] sm:$0xf]
      %v1008 = vld [vmem:[%s4 + $0xd4] sm:$0xf]
      %v1009 = vld [vmem:[%s4 + $0xd8] sm:$0xf]
      %v1010 = vld [vmem:[%s4 + $0xdc] sm:$0xf]
      %v1011 = vld [vmem:[%s4 + $0xe0] sm:$0xf]
      %v1012 = vld [vmem:[%s4 + $0xe4] sm:$0xf]
      %v1013 = vld [vmem:[%s4 + $0xe8] sm:$0xf]
      %v1014 = vld [vmem:[%s4 + $0xec] sm:$0xf]
      %v1015 = vld [vmem:[%s4 + $0xf0] sm:$0xf]
      %v1016 = vld [vmem:[%s4 + $0xf4] sm:$0xf]
      %v1017 = vld [vmem:[%s4 + $0xf8] sm:$0xf]
      %v1018 = vld [vmem:[%s4 + $0xfc] sm:$0xf]
      %v1019 = vld [vmem:[%s4 + $0x100] sm:$0xf]
      %v1020 = vld [vmem:[%s4 + $0x104] sm:$0xf]
      %v1021 = vld [vmem:[%s4 + $0x108] sm:$0xf]
      %v1022 = vld [vmem:[%s4 + $0x10c] sm:$0xf]
      %v1023 = vld [vmem:[%s4 + $0x110] sm:$0xf]
      %v1024 = vld [vmem:[%s4 + $0x114] sm:$0xf]
      %v1025 = vld [vmem:[%s4 + $0x118] sm:$0xf]
      %v1026 = vld [vmem:[%s4 + $0x11c] sm:$0xf]
      %v1027 = vld [vmem:[%s5 + $0x1] sm:$0x1]
      %v1028 = vld [vmem:[#allocation2 + $0x7] sm:$0xff]
      %v1029 = vld [vmem:[#allocation2 + $0xf] sm:$0xff]
      %v1030 = vld [vmem:[#allocation2 + $0x17] sm:$0xff]
      %v1031 = vld [vmem:[#allocation2 + $0x1f] sm:$0xff]
      %v1032 = vpack.c.bf16 %v1029, %v1028
      %v1033 = vpack.c.bf16 %v1031, %v1030
      %1034 = vst.msk [vmem:[#allocation3] sm:$0xff] %vm327, %v1032
      %1035 = vst.msk [vmem:[#allocation3 + $0x18] sm:$0xff] %vm327, %v1033
      %v1036 = vld [vmem:[#allocation2 + $0x8] sm:$0xff]
      %v1037 = vld [vmem:[#allocation2 + $0x10] sm:$0xff]
      %v1038 = vld [vmem:[#allocation2 + $0x18] sm:$0xff]
      %v1039 = vld [vmem:[#allocation2 + $0x20] sm:$0xff]
      %v1040 = vpack.c.bf16 %v1037, %v1036
      %v1041 = vpack.c.bf16 %v1039, %v1038
      %1044 = vrot.lane.b32.xlu0 %v1040, 32
      %v1045 = vpop.permute.xlu0 %1044
      %1046 = vrot.lane.b32.xlu0 %v1041, 32
      %v1047 = vpop.permute.xlu0 %1046
      %1050 = vst.msk [vmem:[#allocation3] sm:$0xff] %vm648, %v1045
      %1051 = vst.msk [vmem:[#allocation3 + $0x18] sm:$0xff] %vm648, %v1047
      %v1052 = vld [vmem:[#allocation2 + $0x9] sm:$0xff]
      %v1053 = vld [vmem:[#allocation2 + $0x11] sm:$0xff]
      %v1054 = vld [vmem:[#allocation2 + $0x19] sm:$0xff]
      %v1055 = vld [vmem:[#allocation2 + $0x21] sm:$0xff]
      %v1056 = vpack.c.bf16 %v1053, %v1052
      %v1057 = vpack.c.bf16 %v1055, %v1054
      %1060 = vrot.lane.b32.xlu0 %v1056, 64
      %v1061 = vpop.permute.xlu0 %1060
      %1062 = vrot.lane.b32.xlu0 %v1057, 64
      %v1063 = vpop.permute.xlu0 %1062
      %1066 = vst.msk [vmem:[#allocation3] sm:$0xff] %vm665, %v1061
      %1067 = vst.msk [vmem:[#allocation3 + $0x18] sm:$0xff] %vm665, %v1063
      %v1068 = vld [vmem:[#allocation2 + $0xf] sm:$0xff]
      %v1069 = vld [vmem:[#allocation2 + $0x17] sm:$0xff]
      %v1070 = vld [vmem:[#allocation2 + $0x1f] sm:$0xff]
      %v1071 = vld [vmem:[#allocation2 + $0x27] sm:$0xff]
      %v1072 = vpack.c.bf16 %v1069, %v1068
      %v1073 = vpack.c.bf16 %v1071, %v1070
      %1076 = vrot.lane.b32.xlu0 %v1072, 96
      %v1077 = vpop.permute.xlu0 %1076
      %1078 = vrot.lane.b32.xlu0 %v1073, 96
      %v1079 = vpop.permute.xlu0 %1078
      %1082 = vst.msk [vmem:[#allocation3] sm:$0xff] %vm682, %v1077
      %1083 = vst.msk [vmem:[#allocation3 + $0x18] sm:$0xff] %vm682, %v1079
      %v1084 = vld [vmem:[#allocation2 + $0x10] sm:$0xff]
      %v1085 = vld [vmem:[#allocation2 + $0x18] sm:$0xff]
      %v1086 = vld [vmem:[#allocation2 + $0x20] sm:$0xff]
      %v1087 = vld [vmem:[#allocation2 + $0x28] sm:$0xff]
      %v1088 = vpack.c.bf16 %v1085, %v1084
      %v1089 = vpack.c.bf16 %v1087, %v1086
      %1090 = vst.msk [vmem:[#allocation3 + $0x8] sm:$0xff] %vm327, %v1088
      %1091 = vst.msk [vmem:[#allocation3 + $0x20] sm:$0xff] %vm327, %v1089
      %v1092 = vld [vmem:[#allocation2 + $0x11] sm:$0xff]
      %v1093 = vld [vmem:[#allocation2 + $0x19] sm:$0xff]
      %v1094 = vld [vmem:[#allocation2 + $0x21] sm:$0xff]
      %v1095 = vld [vmem:[#allocation2 + $0x29] sm:$0xff]
      %v1096 = vpack.c.bf16 %v1093, %v1092
      %v1097 = vpack.c.bf16 %v1095, %v1094
      %1100 = vrot.lane.b32.xlu0 %v1096, 32
      %v1101 = vpop.permute.xlu0 %1100
      %1102 = vrot.lane.b32.xlu0 %v1097, 32
      %v1103 = vpop.permute.xlu0 %1102
      %1106 = vst.msk [vmem:[#allocation3 + $0x8] sm:$0xff] %vm648, %v1101
      %1107 = vst.msk [vmem:[#allocation3 + $0x20] sm:$0xff] %vm648, %v1103
      %v1108 = vld [vmem:[#allocation2 + $0x17] sm:$0xff]
      %v1109 = vld [vmem:[#allocation2 + $0x1f] sm:$0xff]
      %v1110 = vld [vmem:[#allocation2 + $0x27] sm:$0xff]
      %v1111 = vld [vmem:[#allocation2 + $0x2f] sm:$0xff]
      %v1112 = vpack.c.bf16 %v1109, %v1108
      %v1113 = vpack.c.bf16 %v1111, %v1110
      %1116 = vrot.lane.b32.xlu0 %v1112, 64
      %v1117 = vpop.permute.xlu0 %1116
      %1118 = vrot.lane.b32.xlu0 %v1113, 64
      %v1119 = vpop.permute.xlu0 %1118
      %1122 = vst.msk [vmem:[#allocation3 + $0x8] sm:$0xff] %vm665, %v1117
      %1123 = vst.msk [vmem:[#allocation3 + $0x20] sm:$0xff] %vm665, %v1119
      %v1124 = vld [vmem:[#allocation2 + $0x18] sm:$0xff]
      %v1125 = vld [vmem:[#allocation2 + $0x20] sm:$0xff]
      %v1126 = vld [vmem:[#allocation2 + $0x28] sm:$0xff]
      %v1127 = vld [vmem:[#allocation2 + $0x30] sm:$0xff]
      %v1128 = vpack.c.bf16 %v1125, %v1124
      %v1129 = vpack.c.bf16 %v1127, %v1126
      %1132 = vrot.lane.b32.xlu0 %v1128, 96
      %v1133 = vpop.permute.xlu0 %1132
      %1134 = vrot.lane.b32.xlu0 %v1129, 96
      %v1135 = vpop.permute.xlu0 %1134
      %1138 = vst.msk [vmem:[#allocation3 + $0x8] sm:$0xff] %vm682, %v1133
      %1139 = vst.msk [vmem:[#allocation3 + $0x20] sm:$0xff] %vm682, %v1135
      %v1140 = vld [vmem:[#allocation2 + $0x19] sm:$0xff]
      %v1141 = vld [vmem:[#allocation2 + $0x21] sm:$0xff]
      %v1142 = vld [vmem:[#allocation2 + $0x29] sm:$0xff]
      %v1143 = vld [vmem:[#allocation2 + $0x31] sm:$0xff]
      %v1144 = vpack.c.bf16 %v1141, %v1140
      %v1145 = vpack.c.bf16 %v1143, %v1142
      %1146 = vst.msk [vmem:[#allocation3 + $0x10] sm:$0xff] %vm327, %v1144
      %1147 = vst.msk [vmem:[#allocation3 + $0x28] sm:$0xff] %vm327, %v1145
      %v1148 = vld [vmem:[#allocation3] sm:$0xff]
      %v1149 = vld [vmem:[#allocation3 + $0x8] sm:$0xff]
      %v1150 = vld [vmem:[#allocation3 + $0x10] sm:$0xff]
      %v1151 = vld [vmem:[#allocation3 + $0x18] sm:$0xff]
      %v1152 = vld [vmem:[#allocation3 + $0x20] sm:$0xff]
      %v1153 = vld [vmem:[#allocation3 + $0x28] sm:$0xff]
      %v1154 = vlaneseq
      %v1155 = vshrl.u32 %v1154, 7
      %v1156 = vsub.s32 0, %v1155
      %v1157 = vrot.slane %v1027, %v1156
      %v1194 = vunpack.c.l.b16 %v991
      %v1195 = vunpack.c.l.b16 %v992
      %v1196 = vunpack.c.l.b16 %v993
      %v1197 = vunpack.c.l.b16 %v994
      %v1198 = vunpack.c.l.b16 %v995
      %v1199 = vunpack.c.l.b16 %v996
      %v1200 = vunpack.c.l.b16 %v997
      %v1201 = vunpack.c.l.b16 %v998
      %v1202 = vunpack.c.l.b16 %v999
      %v1203 = vunpack.c.l.b16 %v1000
      %v1204 = vunpack.c.l.b16 %v1001
      %v1205 = vunpack.c.l.b16 %v1002
      %v1206 = vunpack.c.l.b16 %v1003
      %v1207 = vunpack.c.l.b16 %v1004
      %v1208 = vunpack.c.l.b16 %v1005
      %v1209 = vunpack.c.l.b16 %v1006
      %v1210 = vunpack.c.l.b16 %v1007
      %v1211 = vunpack.c.l.b16 %v1008
      %v1212 = vunpack.c.l.b16 %v1009
      %v1213 = vunpack.c.l.b16 %v1010
      %v1214 = vunpack.c.l.b16 %v1011
      %v1215 = vunpack.c.l.b16 %v1012
      %v1216 = vunpack.c.l.b16 %v1013
      %v1217 = vunpack.c.l.b16 %v1014
      %v1218 = vunpack.c.l.b16 %v1015
      %v1219 = vunpack.c.l.b16 %v1016
      %v1220 = vunpack.c.l.b16 %v1017
      %v1221 = vunpack.c.l.b16 %v1018
      %v1222 = vunpack.c.l.b16 %v1019
      %v1223 = vunpack.c.l.b16 %v1020
      %v1224 = vunpack.c.l.b16 %v1021
      %v1225 = vunpack.c.l.b16 %v1022
      %v1226 = vunpack.c.l.b16 %v1023
      %v1227 = vunpack.c.l.b16 %v1024
      %v1228 = vunpack.c.l.b16 %v1025
      %v1229 = vunpack.c.l.b16 %v1026
      %v1230 = vpack.c.b16 %v1195, %v1194
      %v1231 = vpack.c.b16 %v1197, %v1196
      %v1232 = vpack.c.b16 %v1199, %v1198
      %v1233 = vpack.c.b16 %v1201, %v1200
      %v1234 = vpack.c.b16 %v1203, %v1202
      %v1235 = vpack.c.b16 %v1205, %v1204
      %v1236 = vpack.c.b16 %v1207, %v1206
      %v1237 = vpack.c.b16 %v1209, %v1208
      %v1238 = vpack.c.b16 %v1211, %v1210
      %v1239 = vpack.c.b16 %v1213, %v1212
      %v1240 = vpack.c.b16 %v1215, %v1214
      %v1241 = vpack.c.b16 %v1217, %v1216
      %v1242 = vpack.c.b16 %v1219, %v1218
      %v1243 = vpack.c.b16 %v1221, %v1220
      %v1244 = vpack.c.b16 %v1223, %v1222
      %v1245 = vpack.c.b16 %v1225, %v1224
      %v1246 = vpack.c.b16 %v1227, %v1226
      %v1247 = vpack.c.b16 %v1229, %v1228
      %v1267 = vsel %vm327, %v1150, 0
      %v1270 = vsel %vm327, %v1153, 0
      %1272 = vmatprep.subr.bf16.mxu0 0
      %1273 = vmatpush1.bf16.msra.mxu0 %v1230
      %1274 = vmatprep.subr.bf16.mxu0 0
      %1275 = vmatpush1.bf16.msra.mxu0 %v1231
      %1276 = vmatprep.subr.bf16.mxu0 0
      %1277 = vmatpush1.bf16.msra.mxu0 %v1232
      %1278 = vmatprep.subr.bf16.mxu0 0
      %1279 = vmatpush1.bf16.msra.mxu0 %v1233
      %1280 = vmatprep.subr.bf16.mxu0 0
      %1281 = vmatpush1.bf16.msra.mxu0 %v1234
      %1282 = vmatprep.subr.bf16.mxu0 0
      %1283 = vmatpush1.bf16.msra.mxu0 %v1235
      %1284 = vmatprep.subr.bf16.mxu0 0
      %1285 = vmatpush1.bf16.msra.mxu0 %v1236
      %1286 = vmatprep.subr.bf16.mxu0 0
      %1287 = vmatpush1.bf16.msra.mxu0 %v1237
      %1288 = vmatprep.subr.bf16.mxu0 0
      %1289 = vmatpush1.bf16.msra.mxu0 %v1238
      %1290 = vmatprep.subr.bf16.mxu0 0
      %1291 = vmatpush1.bf16.msra.mxu0 %v1239
      %1292 = vmatprep.subr.bf16.mxu0 0
      %1293 = vmatpush1.bf16.msra.mxu0 %v1240
      %1294 = vmatprep.subr.bf16.mxu0 0
      %1295 = vmatpush1.bf16.msra.mxu0 %v1241
      %1296 = vmatprep.subr.bf16.mxu0 0
      %1297 = vmatpush1.bf16.msra.mxu0 %v1242
      %1298 = vmatprep.subr.bf16.mxu0 0
      %1299 = vmatpush1.bf16.msra.mxu0 %v1243
      %1300 = vmatprep.subr.bf16.mxu0 0
      %1301 = vmatpush1.bf16.msra.mxu0 %v1244
      %1302 = vmatprep.subr.bf16.mxu0 0
      %1303 = vmatpush1.bf16.msra.mxu0 %v1245
      %1304 = vmatprep.mubr.bf16.mxu0 %v1149
      %1305 = vmatmul.mubr.bf16.gmra.mrb[0].mxu0 %v1148
      %v1306 = vpop.f32.mrb[0].mxu0
      %v1307 = vadd.f32 %v1157, %v1306
      %v1308 = vpop.f32.mrb[0].mxu0
      %v1309 = vpop.f32.mrb[0].mxu0
      %v1310 = vadd.f32 %v1157, %v1309
      %v1311 = vpop.f32.mrb[0].mxu0
      %1312 = vmatprep.mubr.bf16.mxu0 %v1152
      %1313 = vmatmul.mubr.bf16.gmra.mrb[0].mxu0 %v1151
      %v1314 = vpop.f32.mrb[0].mxu0
      %v1315 = vadd.f32 %v1157, %v1314
      %v1316 = vpop.f32.mrb[0].mxu0
      %v1317 = vpop.f32.mrb[0].mxu0
      %v1318 = vadd.f32 %v1157, %v1317
      %v1319 = vpop.f32.mrb[0].mxu0
      %1320 = vdwg.mxu0
      %1321 = vmatprep.subr.bf16.mxu0 0
      %1322 = vmatpush1.bf16.msra.mxu0 %v1246
      %1323 = vmatprep.subr.bf16.mxu0 0
      %1324 = vmatpush1.bf16.msra.mxu0 %v1247
      %1325 = vmatprep.subr.bf16.mxu0 0
      %1326 = vmatpush1.bf16.msra.mxu0 0
      %1327 = vmatprep.subr.bf16.mxu0 0
      %1328 = vmatpush1.bf16.msra.mxu0 0
      %1329 = vmatprep.subr.bf16.mxu0 0
      %1330 = vmatpush1.bf16.msra.mxu0 0
      %1331 = vmatprep.subr.bf16.mxu0 0
      %1332 = vmatpush1.bf16.msra.mxu0 0
      %1333 = vmatprep.subr.bf16.mxu0 0
      %1334 = vmatpush1.bf16.msra.mxu0 0
      %1335 = vmatprep.subr.bf16.mxu0 0
      %1336 = vmatpush1.bf16.msra.mxu0 0
      %1337 = vmatprep.subr.bf16.mxu0 0
      %1338 = vmatpush1.bf16.msra.mxu0 0
      %1339 = vmatprep.subr.bf16.mxu0 0
      %1340 = vmatpush1.bf16.msra.mxu0 0
      %1341 = vmatprep.subr.bf16.mxu0 0
      %1342 = vmatpush1.bf16.msra.mxu0 0
      %1343 = vmatprep.subr.bf16.mxu0 0
      %1344 = vmatpush1.bf16.msra.mxu0 0
      %1345 = vmatprep.subr.bf16.mxu0 0
      %1346 = vmatpush1.bf16.msra.mxu0 0
      %1347 = vmatprep.subr.bf16.mxu0 0
      %1348 = vmatpush1.bf16.msra.mxu0 0
      %1349 = vmatprep.subr.bf16.mxu0 0
      %1350 = vmatpush1.bf16.msra.mxu0 0
      %1351 = vmatprep.subr.bf16.mxu0 0
      %1352 = vmatpush1.bf16.msra.mxu0 0
      %1353 = vmatprep.mubr.bf16.mxu0 0
      %1354 = vmatmul.mubr.bf16.gmra.mrb[0].mxu0 %v1267
      %v1355 = vpop.f32.mrb[0].mxu0
      %v1356 = vadd.f32 %v1307, %v1355
      %v1357 = vpop.f32.mrb[0].mxu0
      %v1358 = vpop.f32.mrb[0].mxu0
      %v1359 = vadd.f32 %v1310, %v1358
      %v1360 = vpop.f32.mrb[0].mxu0
      %1361 = vmatprep.mubr.bf16.mxu0 0
      %1362 = vmatmul.mubr.bf16.gmra.mrb[0].mxu0 %v1270
      %v1363 = vpop.f32.mrb[0].mxu0
      %v1364 = vadd.f32 %v1315, %v1363
      %v1365 = vpop.f32.mrb[0].mxu0
      %v1366 = vpop.f32.mrb[0].mxu0
      %v1367 = vadd.f32 %v1318, %v1366
      %v1368 = vpop.f32.mrb[0].mxu0
      %1369 = vdwg.mxu0
      %v1370 = vadd.f32 %v577, %v1356
      %v1371 = vadd.f32 %v578, %v1359
      %v1372 = vadd.f32 %v579, %v1364
      %v1373 = vadd.f32 %v580, %v1367
      %vm1374 = vcmp.gt.f32.partialorder %v1370, 0.0
      %vm1375 = vcmp.gt.f32.partialorder %v1371, 0.0
      %vm1376 = vcmp.gt.f32.partialorder %v1372, 0.0
      %vm1377 = vcmp.gt.f32.partialorder %v1373, 0.0
      %v1378 = vmul.f32 %v1370, 0.2
      %v1379 = vmul.f32 %v1371, 0.2
      %v1380 = vmul.f32 %v1372, 0.2
      %v1381 = vmul.f32 %v1373, 0.2
      %v1382 = vsel %vm1374, %v1370, %v1378
      %v1383 = vsel %vm1375, %v1371, %v1379
      %v1384 = vsel %vm1376, %v1372, %v1380
      %v1385 = vsel %vm1377, %v1373, %v1381
      %v1386 = vmul.f32 %v1382, %v401
      %v1387 = vmul.f32 %v1383, %v402
      %v1388 = vmul.f32 %v1384, %v403
      %v1389 = vmul.f32 %v1385, %v404
      %1390 = vst.msk [vmem:[#allocation2 + $0x10] sm:$0xff] %vm327, %v1386
      %1391 = vst.msk [vmem:[#allocation2 + $0x18] sm:$0xff] %vm327, %v1387
      %1392 = vst.msk [vmem:[#allocation2 + $0x20] sm:$0xff] %vm327, %v1388
      %1393 = vst.msk [vmem:[#allocation2 + $0x28] sm:$0xff] %vm327, %v1389
      %v1394 = vld [vmem:[%s4 + $0x120] sm:$0xf]
      %v1395 = vld [vmem:[%s4 + $0x124] sm:$0xf]
      %v1396 = vld [vmem:[%s4 + $0x128] sm:$0xf]
      %v1397 = vld [vmem:[%s4 + $0x12c] sm:$0xf]
      %v1398 = vld [vmem:[%s4 + $0x130] sm:$0xf]
      %v1399 = vld [vmem:[%s4 + $0x134] sm:$0xf]
      %v1400 = vld [vmem:[%s4 + $0x138] sm:$0xf]
      %v1401 = vld [vmem:[%s4 + $0x13c] sm:$0xf]
      %v1402 = vld [vmem:[%s4 + $0x140] sm:$0xf]
      %v1403 = vld [vmem:[%s4 + $0x144] sm:$0xf]
      %v1404 = vld [vmem:[%s4 + $0x148] sm:$0xf]
      %v1405 = vld [vmem:[%s4 + $0x14c] sm:$0xf]
      %v1406 = vld [vmem:[%s4 + $0x150] sm:$0xf]
      %v1407 = vld [vmem:[%s4 + $0x154] sm:$0xf]
      %v1408 = vld [vmem:[%s4 + $0x158] sm:$0xf]
      %v1409 = vld [vmem:[%s4 + $0x15c] sm:$0xf]
      %v1410 = vld [vmem:[%s4 + $0x160] sm:$0xf]
      %v1411 = vld [vmem:[%s4 + $0x164] sm:$0xf]
      %v1412 = vld [vmem:[%s4 + $0x168] sm:$0xf]
      %v1413 = vld [vmem:[%s4 + $0x16c] sm:$0xf]
      %v1414 = vld [vmem:[%s4 + $0x170] sm:$0xf]
      %v1415 = vld [vmem:[%s4 + $0x174] sm:$0xf]
      %v1416 = vld [vmem:[%s4 + $0x178] sm:$0xf]
      %v1417 = vld [vmem:[%s4 + $0x17c] sm:$0xf]
      %v1418 = vld [vmem:[%s4 + $0x180] sm:$0xf]
      %v1419 = vld [vmem:[%s4 + $0x184] sm:$0xf]
      %v1420 = vld [vmem:[%s4 + $0x188] sm:$0xf]
      %v1421 = vld [vmem:[%s4 + $0x18c] sm:$0xf]
      %v1422 = vld [vmem:[%s4 + $0x190] sm:$0xf]
      %v1423 = vld [vmem:[%s4 + $0x194] sm:$0xf]
      %v1424 = vld [vmem:[%s4 + $0x198] sm:$0xf]
      %v1425 = vld [vmem:[%s4 + $0x19c] sm:$0xf]
      %v1426 = vld [vmem:[%s4 + $0x1a0] sm:$0xf]
      %v1427 = vld [vmem:[%s4 + $0x1a4] sm:$0xf]
      %v1428 = vld [vmem:[%s4 + $0x1a8] sm:$0xf]
      %v1429 = vld [vmem:[%s4 + $0x1ac] sm:$0xf]
      %v1430 = vld [vmem:[%s5 + $0x2] sm:$0x1]
      %v1431 = vld [vmem:[#allocation2 + $0x7] sm:$0xff]
      %v1432 = vld [vmem:[#allocation2 + $0xf] sm:$0xff]
      %v1433 = vld [vmem:[#allocation2 + $0x17] sm:$0xff]
      %v1434 = vld [vmem:[#allocation2 + $0x1f] sm:$0xff]
      %v1435 = vpack.c.bf16 %v1432, %v1431
      %v1436 = vpack.c.bf16 %v1434, %v1433
      %1437 = vst.msk [vmem:[#allocation3] sm:$0xff] %vm327, %v1435
      %1438 = vst.msk [vmem:[#allocation3 + $0x18] sm:$0xff] %vm327, %v1436
      %v1439 = vld [vmem:[#allocation2 + $0x8] sm:$0xff]
      %v1440 = vld [vmem:[#allocation2 + $0x10] sm:$0xff]
      %v1441 = vld [vmem:[#allocation2 + $0x18] sm:$0xff]
      %v1442 = vld [vmem:[#allocation2 + $0x20] sm:$0xff]
      %v1443 = vpack.c.bf16 %v1440, %v1439
      %v1444 = vpack.c.bf16 %v1442, %v1441
      %1447 = vrot.lane.b32.xlu0 %v1443, 32
      %v1448 = vpop.permute.xlu0 %1447
      %1449 = vrot.lane.b32.xlu0 %v1444, 32
      %v1450 = vpop.permute.xlu0 %1449
      %1453 = vst.msk [vmem:[#allocation3] sm:$0xff] %vm648, %v1448
      %1454 = vst.msk [vmem:[#allocation3 + $0x18] sm:$0xff] %vm648, %v1450
      %v1455 = vld [vmem:[#allocation2 + $0x9] sm:$0xff]
      %v1456 = vld [vmem:[#allocation2 + $0x11] sm:$0xff]
      %v1457 = vld [vmem:[#allocation2 + $0x19] sm:$0xff]
      %v1458 = vld [vmem:[#allocation2 + $0x21] sm:$0xff]
      %v1459 = vpack.c.bf16 %v1456, %v1455
      %v1460 = vpack.c.bf16 %v1458, %v1457
      %1463 = vrot.lane.b32.xlu0 %v1459, 64
      %v1464 = vpop.permute.xlu0 %1463
      %1465 = vrot.lane.b32.xlu0 %v1460, 64
      %v1466 = vpop.permute.xlu0 %1465
      %1469 = vst.msk [vmem:[#allocation3] sm:$0xff] %vm665, %v1464
      %1470 = vst.msk [vmem:[#allocation3 + $0x18] sm:$0xff] %vm665, %v1466
      %v1471 = vld [vmem:[#allocation2 + $0xf] sm:$0xff]
      %v1472 = vld [vmem:[#allocation2 + $0x17] sm:$0xff]
      %v1473 = vld [vmem:[#allocation2 + $0x1f] sm:$0xff]
      %v1474 = vld [vmem:[#allocation2 + $0x27] sm:$0xff]
      %v1475 = vpack.c.bf16 %v1472, %v1471
      %v1476 = vpack.c.bf16 %v1474, %v1473
      %1479 = vrot.lane.b32.xlu0 %v1475, 96
      %v1480 = vpop.permute.xlu0 %1479
      %1481 = vrot.lane.b32.xlu0 %v1476, 96
      %v1482 = vpop.permute.xlu0 %1481
      %1485 = vst.msk [vmem:[#allocation3] sm:$0xff] %vm682, %v1480
      %1486 = vst.msk [vmem:[#allocation3 + $0x18] sm:$0xff] %vm682, %v1482
      %v1487 = vld [vmem:[#allocation2 + $0x10] sm:$0xff]
      %v1488 = vld [vmem:[#allocation2 + $0x18] sm:$0xff]
      %v1489 = vld [vmem:[#allocation2 + $0x20] sm:$0xff]
      %v1490 = vld [vmem:[#allocation2 + $0x28] sm:$0xff]
      %v1491 = vpack.c.bf16 %v1488, %v1487
      %v1492 = vpack.c.bf16 %v1490, %v1489
      %1493 = vst.msk [vmem:[#allocation3 + $0x8] sm:$0xff] %vm327, %v1491
      %1494 = vst.msk [vmem:[#allocation3 + $0x20] sm:$0xff] %vm327, %v1492
      %v1495 = vld [vmem:[#allocation2 + $0x11] sm:$0xff]
      %v1496 = vld [vmem:[#allocation2 + $0x19] sm:$0xff]
      %v1497 = vld [vmem:[#allocation2 + $0x21] sm:$0xff]
      %v1498 = vld [vmem:[#allocation2 + $0x29] sm:$0xff]
      %v1499 = vpack.c.bf16 %v1496, %v1495
      %v1500 = vpack.c.bf16 %v1498, %v1497
      %1503 = vrot.lane.b32.xlu0 %v1499, 32
      %v1504 = vpop.permute.xlu0 %1503
      %1505 = vrot.lane.b32.xlu0 %v1500, 32
      %v1506 = vpop.permute.xlu0 %1505
      %1509 = vst.msk [vmem:[#allocation3 + $0x8] sm:$0xff] %vm648, %v1504
      %1510 = vst.msk [vmem:[#allocation3 + $0x20] sm:$0xff] %vm648, %v1506
      %v1511 = vld [vmem:[#allocation2 + $0x17] sm:$0xff]
      %v1512 = vld [vmem:[#allocation2 + $0x1f] sm:$0xff]
      %v1513 = vld [vmem:[#allocation2 + $0x27] sm:$0xff]
      %v1514 = vld [vmem:[#allocation2 + $0x2f] sm:$0xff]
      %v1515 = vpack.c.bf16 %v1512, %v1511
      %v1516 = vpack.c.bf16 %v1514, %v1513
      %1519 = vrot.lane.b32.xlu0 %v1515, 64
      %v1520 = vpop.permute.xlu0 %1519
      %1521 = vrot.lane.b32.xlu0 %v1516, 64
      %v1522 = vpop.permute.xlu0 %1521
      %1525 = vst.msk [vmem:[#allocation3 + $0x8] sm:$0xff] %vm665, %v1520
      %1526 = vst.msk [vmem:[#allocation3 + $0x20] sm:$0xff] %vm665, %v1522
      %v1527 = vld [vmem:[#allocation2 + $0x18] sm:$0xff]
      %v1528 = vld [vmem:[#allocation2 + $0x20] sm:$0xff]
      %v1529 = vld [vmem:[#allocation2 + $0x28] sm:$0xff]
      %v1530 = vld [vmem:[#allocation2 + $0x30] sm:$0xff]
      %v1531 = vpack.c.bf16 %v1528, %v1527
      %v1532 = vpack.c.bf16 %v1530, %v1529
      %1535 = vrot.lane.b32.xlu0 %v1531, 96
      %v1536 = vpop.permute.xlu0 %1535
      %1537 = vrot.lane.b32.xlu0 %v1532, 96
      %v1538 = vpop.permute.xlu0 %1537
      %1541 = vst.msk [vmem:[#allocation3 + $0x8] sm:$0xff] %vm682, %v1536
      %1542 = vst.msk [vmem:[#allocation3 + $0x20] sm:$0xff] %vm682, %v1538
      %v1543 = vld [vmem:[#allocation2 + $0x19] sm:$0xff]
      %v1544 = vld [vmem:[#allocation2 + $0x21] sm:$0xff]
      %v1545 = vld [vmem:[#allocation2 + $0x29] sm:$0xff]
      %v1546 = vld [vmem:[#allocation2 + $0x31] sm:$0xff]
      %v1547 = vpack.c.bf16 %v1544, %v1543
      %v1548 = vpack.c.bf16 %v1546, %v1545
      %1549 = vst.msk [vmem:[#allocation3 + $0x10] sm:$0xff] %vm327, %v1547
      %1550 = vst.msk [vmem:[#allocation3 + $0x28] sm:$0xff] %vm327, %v1548
      %v1551 = vld [vmem:[#allocation3] sm:$0xff]
      %v1552 = vld [vmem:[#allocation3 + $0x8] sm:$0xff]
      %v1553 = vld [vmem:[#allocation3 + $0x10] sm:$0xff]
      %v1554 = vld [vmem:[#allocation3 + $0x18] sm:$0xff]
      %v1555 = vld [vmem:[#allocation3 + $0x20] sm:$0xff]
      %v1556 = vld [vmem:[#allocation3 + $0x28] sm:$0xff]
      %v1557 = vlaneseq
      %v1558 = vshrl.u32 %v1557, 7
      %v1559 = vsub.s32 0, %v1558
      %v1560 = vrot.slane %v1430, %v1559
      %v1597 = vunpack.c.l.b16 %v1394
      %v1598 = vunpack.c.l.b16 %v1395
      %v1599 = vunpack.c.l.b16 %v1396
      %v1600 = vunpack.c.l.b16 %v1397
      %v1601 = vunpack.c.l.b16 %v1398
      %v1602 = vunpack.c.l.b16 %v1399
      %v1603 = vunpack.c.l.b16 %v1400
      %v1604 = vunpack.c.l.b16 %v1401
      %v1605 = vunpack.c.l.b16 %v1402
      %v1606 = vunpack.c.l.b16 %v1403
      %v1607 = vunpack.c.l.b16 %v1404
      %v1608 = vunpack.c.l.b16 %v1405
      %v1609 = vunpack.c.l.b16 %v1406
      %v1610 = vunpack.c.l.b16 %v1407
      %v1611 = vunpack.c.l.b16 %v1408
      %v1612 = vunpack.c.l.b16 %v1409
      %v1613 = vunpack.c.l.b16 %v1410
      %v1614 = vunpack.c.l.b16 %v1411
      %v1615 = vunpack.c.l.b16 %v1412
      %v1616 = vunpack.c.l.b16 %v1413
      %v1617 = vunpack.c.l.b16 %v1414
      %v1618 = vunpack.c.l.b16 %v1415
      %v1619 = vunpack.c.l.b16 %v1416
      %v1620 = vunpack.c.l.b16 %v1417
      %v1621 = vunpack.c.l.b16 %v1418
      %v1622 = vunpack.c.l.b16 %v1419
      %v1623 = vunpack.c.l.b16 %v1420
      %v1624 = vunpack.c.l.b16 %v1421
      %v1625 = vunpack.c.l.b16 %v1422
      %v1626 = vunpack.c.l.b16 %v1423
      %v1627 = vunpack.c.l.b16 %v1424
      %v1628 = vunpack.c.l.b16 %v1425
      %v1629 = vunpack.c.l.b16 %v1426
      %v1630 = vunpack.c.l.b16 %v1427
      %v1631 = vunpack.c.l.b16 %v1428
      %v1632 = vunpack.c.l.b16 %v1429
      %v1633 = vpack.c.b16 %v1598, %v1597
      %v1634 = vpack.c.b16 %v1600, %v1599
      %v1635 = vpack.c.b16 %v1602, %v1601
      %v1636 = vpack.c.b16 %v1604, %v1603
      %v1637 = vpack.c.b16 %v1606, %v1605
      %v1638 = vpack.c.b16 %v1608, %v1607
      %v1639 = vpack.c.b16 %v1610, %v1609
      %v1640 = vpack.c.b16 %v1612, %v1611
      %v1641 = vpack.c.b16 %v1614, %v1613
      %v1642 = vpack.c.b16 %v1616, %v1615
      %v1643 = vpack.c.b16 %v1618, %v1617
      %v1644 = vpack.c.b16 %v1620, %v1619
      %v1645 = vpack.c.b16 %v1622, %v1621
      %v1646 = vpack.c.b16 %v1624, %v1623
      %v1647 = vpack.c.b16 %v1626, %v1625
      %v1648 = vpack.c.b16 %v1628, %v1627
      %v1649 = vpack.c.b16 %v1630, %v1629
      %v1650 = vpack.c.b16 %v1632, %v1631
      %v1670 = vsel %vm327, %v1553, 0
      %v1673 = vsel %vm327, %v1556, 0
      %1675 = vmatprep.subr.bf16.mxu0 0
      %1676 = vmatpush1.bf16.msra.mxu0 %v1633
      %1677 = vmatprep.subr.bf16.mxu0 0
      %1678 = vmatpush1.bf16.msra.mxu0 %v1634
      %1679 = vmatprep.subr.bf16.mxu0 0
      %1680 = vmatpush1.bf16.msra.mxu0 %v1635
      %1681 = vmatprep.subr.bf16.mxu0 0
      %1682 = vmatpush1.bf16.msra.mxu0 %v1636
      %1683 = vmatprep.subr.bf16.mxu0 0
      %1684 = vmatpush1.bf16.msra.mxu0 %v1637
      %1685 = vmatprep.subr.bf16.mxu0 0
      %1686 = vmatpush1.bf16.msra.mxu0 %v1638
      %1687 = vmatprep.subr.bf16.mxu0 0
      %1688 = vmatpush1.bf16.msra.mxu0 %v1639
      %1689 = vmatprep.subr.bf16.mxu0 0
      %1690 = vmatpush1.bf16.msra.mxu0 %v1640
      %1691 = vmatprep.subr.bf16.mxu0 0
      %1692 = vmatpush1.bf16.msra.mxu0 %v1641
      %1693 = vmatprep.subr.bf16.mxu0 0
      %1694 = vmatpush1.bf16.msra.mxu0 %v1642
      %1695 = vmatprep.subr.bf16.mxu0 0
      %1696 = vmatpush1.bf16.msra.mxu0 %v1643
      %1697 = vmatprep.subr.bf16.mxu0 0
      %1698 = vmatpush1.bf16.msra.mxu0 %v1644
      %1699 = vmatprep.subr.bf16.mxu0 0
      %1700 = vmatpush1.bf16.msra.mxu0 %v1645
      %1701 = vmatprep.subr.bf16.mxu0 0
      %1702 = vmatpush1.bf16.msra.mxu0 %v1646
      %1703 = vmatprep.subr.bf16.mxu0 0
      %1704 = vmatpush1.bf16.msra.mxu0 %v1647
      %1705 = vmatprep.subr.bf16.mxu0 0
      %1706 = vmatpush1.bf16.msra.mxu0 %v1648
      %1707 = vmatprep.mubr.bf16.mxu0 %v1552
      %1708 = vmatmul.mubr.bf16.gmra.mrb[0].mxu0 %v1551
      %v1709 = vpop.f32.mrb[0].mxu0
      %v1710 = vadd.f32 %v1560, %v1709
      %v1711 = vpop.f32.mrb[0].mxu0
      %v1712 = vpop.f32.mrb[0].mxu0
      %v1713 = vadd.f32 %v1560, %v1712
      %v1714 = vpop.f32.mrb[0].mxu0
      %1715 = vmatprep.mubr.bf16.mxu0 %v1555
      %1716 = vmatmul.mubr.bf16.gmra.mrb[0].mxu0 %v1554
      %v1717 = vpop.f32.mrb[0].mxu0
      %v1718 = vadd.f32 %v1560, %v1717
      %v1719 = vpop.f32.mrb[0].mxu0
      %v1720 = vpop.f32.mrb[0].mxu0
      %v1721 = vadd.f32 %v1560, %v1720
      %v1722 = vpop.f32.mrb[0].mxu0
      %1723 = vdwg.mxu0
      %1724 = vmatprep.subr.bf16.mxu0 0
      %1725 = vmatpush1.bf16.msra.mxu0 %v1649
      %1726 = vmatprep.subr.bf16.mxu0 0
      %1727 = vmatpush1.bf16.msra.mxu0 %v1650
      %1728 = vmatprep.subr.bf16.mxu0 0
      %1729 = vmatpush1.bf16.msra.mxu0 0
      %1730 = vmatprep.subr.bf16.mxu0 0
      %1731 = vmatpush1.bf16.msra.mxu0 0
      %1732 = vmatprep.subr.bf16.mxu0 0
      %1733 = vmatpush1.bf16.msra.mxu0 0
      %1734 = vmatprep.subr.bf16.mxu0 0
      %1735 = vmatpush1.bf16.msra.mxu0 0
      %1736 = vmatprep.subr.bf16.mxu0 0
      %1737 = vmatpush1.bf16.msra.mxu0 0
      %1738 = vmatprep.subr.bf16.mxu0 0
      %1739 = vmatpush1.bf16.msra.mxu0 0
      %1740 = vmatprep.subr.bf16.mxu0 0
      %1741 = vmatpush1.bf16.msra.mxu0 0
      %1742 = vmatprep.subr.bf16.mxu0 0
      %1743 = vmatpush1.bf16.msra.mxu0 0
      %1744 = vmatprep.subr.bf16.mxu0 0
      %1745 = vmatpush1.bf16.msra.mxu0 0
      %1746 = vmatprep.subr.bf16.mxu0 0
      %1747 = vmatpush1.bf16.msra.mxu0 0
      %1748 = vmatprep.subr.bf16.mxu0 0
      %1749 = vmatpush1.bf16.msra.mxu0 0
      %1750 = vmatprep.subr.bf16.mxu0 0
      %1751 = vmatpush1.bf16.msra.mxu0 0
      %1752 = vmatprep.subr.bf16.mxu0 0
      %1753 = vmatpush1.bf16.msra.mxu0 0
      %1754 = vmatprep.subr.bf16.mxu0 0
      %1755 = vmatpush1.bf16.msra.mxu0 0
      %1756 = vmatprep.mubr.bf16.mxu0 0
      %1757 = vmatmul.mubr.bf16.gmra.mrb[0].mxu0 %v1670
      %v1758 = vpop.f32.mrb[0].mxu0
      %v1759 = vadd.f32 %v1710, %v1758
      %v1760 = vpop.f32.mrb[0].mxu0
      %v1761 = vpop.f32.mrb[0].mxu0
      %v1762 = vadd.f32 %v1713, %v1761
      %v1763 = vpop.f32.mrb[0].mxu0
      %1764 = vmatprep.mubr.bf16.mxu0 0
      %1765 = vmatmul.mubr.bf16.gmra.mrb[0].mxu0 %v1673
      %v1766 = vpop.f32.mrb[0].mxu0
      %v1767 = vadd.f32 %v1718, %v1766
      %v1768 = vpop.f32.mrb[0].mxu0
      %v1769 = vpop.f32.mrb[0].mxu0
      %v1770 = vadd.f32 %v1721, %v1769
      %v1771 = vpop.f32.mrb[0].mxu0
      %1772 = vdwg.mxu0
      %vm1773 = vcmp.gt.f32.partialorder %v1759, 0.0
      %vm1774 = vcmp.gt.f32.partialorder %v1762, 0.0
      %vm1775 = vcmp.gt.f32.partialorder %v1767, 0.0
      %vm1776 = vcmp.gt.f32.partialorder %v1770, 0.0
      %v1777 = vmul.f32 %v1759, 0.2
      %v1778 = vmul.f32 %v1762, 0.2
      %v1779 = vmul.f32 %v1767, 0.2
      %v1780 = vmul.f32 %v1770, 0.2
      %v1781 = vsel %vm1773, %v1759, %v1777
      %v1782 = vsel %vm1774, %v1762, %v1778
      %v1783 = vsel %vm1775, %v1767, %v1779
      %v1784 = vsel %vm1776, %v1770, %v1780
      %v1785 = vmul.f32 %v1781, %v401
      %v1786 = vmul.f32 %v1782, %v402
      %v1787 = vmul.f32 %v1783, %v403
      %v1788 = vmul.f32 %v1784, %v404
      %1789 = vst.msk [vmem:[#allocation2 + $0x10] sm:$0xff] %vm327, %v1785
      %1790 = vst.msk [vmem:[#allocation2 + $0x18] sm:$0xff] %vm327, %v1786
      %1791 = vst.msk [vmem:[#allocation2 + $0x20] sm:$0xff] %vm327, %v1787
      %1792 = vst.msk [vmem:[#allocation2 + $0x28] sm:$0xff] %vm327, %v1788
      %v1793 = vld [vmem:[%s4 + $0x1b0] sm:$0xf]
      %v1794 = vld [vmem:[%s4 + $0x1b4] sm:$0xf]
      %v1795 = vld [vmem:[%s4 + $0x1b8] sm:$0xf]
      %v1796 = vld [vmem:[%s4 + $0x1bc] sm:$0xf]
      %v1797 = vld [vmem:[%s4 + $0x1c0] sm:$0xf]
      %v1798 = vld [vmem:[%s4 + $0x1c4] sm:$0xf]
      %v1799 = vld [vmem:[%s4 + $0x1c8] sm:$0xf]
      %v1800 = vld [vmem:[%s4 + $0x1cc] sm:$0xf]
      %v1801 = vld [vmem:[%s4 + $0x1d0] sm:$0xf]
      %v1802 = vld [vmem:[%s4 + $0x1d4] sm:$0xf]
      %v1803 = vld [vmem:[%s4 + $0x1d8] sm:$0xf]
      %v1804 = vld [vmem:[%s4 + $0x1dc] sm:$0xf]
      %v1805 = vld [vmem:[%s4 + $0x1e0] sm:$0xf]
      %v1806 = vld [vmem:[%s4 + $0x1e4] sm:$0xf]
      %v1807 = vld [vmem:[%s4 + $0x1e8] sm:$0xf]
      %v1808 = vld [vmem:[%s4 + $0x1ec] sm:$0xf]
      %v1809 = vld [vmem:[%s4 + $0x1f0] sm:$0xf]
      %v1810 = vld [vmem:[%s4 + $0x1f4] sm:$0xf]
      %v1811 = vld [vmem:[%s4 + $0x1f8] sm:$0xf]
      %v1812 = vld [vmem:[%s4 + $0x1fc] sm:$0xf]
      %v1813 = vld [vmem:[%s4 + $0x200] sm:$0xf]
      %v1814 = vld [vmem:[%s4 + $0x204] sm:$0xf]
      %v1815 = vld [vmem:[%s4 + $0x208] sm:$0xf]
      %v1816 = vld [vmem:[%s4 + $0x20c] sm:$0xf]
      %v1817 = vld [vmem:[%s4 + $0x210] sm:$0xf]
      %v1818 = vld [vmem:[%s4 + $0x214] sm:$0xf]
      %v1819 = vld [vmem:[%s4 + $0x218] sm:$0xf]
      %v1820 = vld [vmem:[%s4 + $0x21c] sm:$0xf]
      %v1821 = vld [vmem:[%s4 + $0x220] sm:$0xf]
      %v1822 = vld [vmem:[%s4 + $0x224] sm:$0xf]
      %v1823 = vld [vmem:[%s4 + $0x228] sm:$0xf]
      %v1824 = vld [vmem:[%s4 + $0x22c] sm:$0xf]
      %v1825 = vld [vmem:[%s4 + $0x230] sm:$0xf]
      %v1826 = vld [vmem:[%s4 + $0x234] sm:$0xf]
      %v1827 = vld [vmem:[%s4 + $0x238] sm:$0xf]
      %v1828 = vld [vmem:[%s4 + $0x23c] sm:$0xf]
      %v1829 = vld [vmem:[%s5 + $0x3] sm:$0x1]
      %v1830 = vld [vmem:[#allocation2 + $0x7] sm:$0xff]
      %v1831 = vld [vmem:[#allocation2 + $0xf] sm:$0xff]
      %v1832 = vld [vmem:[#allocation2 + $0x17] sm:$0xff]
      %v1833 = vld [vmem:[#allocation2 + $0x1f] sm:$0xff]
      %v1834 = vpack.c.bf16 %v1831, %v1830
      %v1835 = vpack.c.bf16 %v1833, %v1832
      %1836 = vst.msk [vmem:[#allocation3] sm:$0xff] %vm327, %v1834
      %1837 = vst.msk [vmem:[#allocation3 + $0x18] sm:$0xff] %vm327, %v1835
      %v1838 = vld [vmem:[#allocation2 + $0x8] sm:$0xff]
      %v1839 = vld [vmem:[#allocation2 + $0x10] sm:$0xff]
      %v1840 = vld [vmem:[#allocation2 + $0x18] sm:$0xff]
      %v1841 = vld [vmem:[#allocation2 + $0x20] sm:$0xff]
      %v1842 = vpack.c.bf16 %v1839, %v1838
      %v1843 = vpack.c.bf16 %v1841, %v1840
      %1846 = vrot.lane.b32.xlu0 %v1842, 32
      %v1847 = vpop.permute.xlu0 %1846
      %1848 = vrot.lane.b32.xlu0 %v1843, 32
      %v1849 = vpop.permute.xlu0 %1848
      %1852 = vst.msk [vmem:[#allocation3] sm:$0xff] %vm648, %v1847
      %1853 = vst.msk [vmem:[#allocation3 + $0x18] sm:$0xff] %vm648, %v1849
      %v1854 = vld [vmem:[#allocation2 + $0x9] sm:$0xff]
      %v1855 = vld [vmem:[#allocation2 + $0x11] sm:$0xff]
      %v1856 = vld [vmem:[#allocation2 + $0x19] sm:$0xff]
      %v1857 = vld [vmem:[#allocation2 + $0x21] sm:$0xff]
      %v1858 = vpack.c.bf16 %v1855, %v1854
      %v1859 = vpack.c.bf16 %v1857, %v1856
      %1862 = vrot.lane.b32.xlu0 %v1858, 64
      %v1863 = vpop.permute.xlu0 %1862
      %1864 = vrot.lane.b32.xlu0 %v1859, 64
      %v1865 = vpop.permute.xlu0 %1864
      %1868 = vst.msk [vmem:[#allocation3] sm:$0xff] %vm665, %v1863
      %1869 = vst.msk [vmem:[#allocation3 + $0x18] sm:$0xff] %vm665, %v1865
      %v1870 = vld [vmem:[#allocation2 + $0xf] sm:$0xff]
      %v1871 = vld [vmem:[#allocation2 + $0x17] sm:$0xff]
      %v1872 = vld [vmem:[#allocation2 + $0x1f] sm:$0xff]
      %v1873 = vld [vmem:[#allocation2 + $0x27] sm:$0xff]
      %v1874 = vpack.c.bf16 %v1871, %v1870
      %v1875 = vpack.c.bf16 %v1873, %v1872
      %1878 = vrot.lane.b32.xlu0 %v1874, 96
      %v1879 = vpop.permute.xlu0 %1878
      %1880 = vrot.lane.b32.xlu0 %v1875, 96
      %v1881 = vpop.permute.xlu0 %1880
      %1884 = vst.msk [vmem:[#allocation3] sm:$0xff] %vm682, %v1879
      %1885 = vst.msk [vmem:[#allocation3 + $0x18] sm:$0xff] %vm682, %v1881
      %v1886 = vld [vmem:[#allocation2 + $0x10] sm:$0xff]
      %v1887 = vld [vmem:[#allocation2 + $0x18] sm:$0xff]
      %v1888 = vld [vmem:[#allocation2 + $0x20] sm:$0xff]
      %v1889 = vld [vmem:[#allocation2 + $0x28] sm:$0xff]
      %v1890 = vpack.c.bf16 %v1887, %v1886
      %v1891 = vpack.c.bf16 %v1889, %v1888
      %1892 = vst.msk [vmem:[#allocation3 + $0x8] sm:$0xff] %vm327, %v1890
      %1893 = vst.msk [vmem:[#allocation3 + $0x20] sm:$0xff] %vm327, %v1891
      %v1894 = vld [vmem:[#allocation2 + $0x11] sm:$0xff]
      %v1895 = vld [vmem:[#allocation2 + $0x19] sm:$0xff]
      %v1896 = vld [vmem:[#allocation2 + $0x21] sm:$0xff]
      %v1897 = vld [vmem:[#allocation2 + $0x29] sm:$0xff]
      %v1898 = vpack.c.bf16 %v1895, %v1894
      %v1899 = vpack.c.bf16 %v1897, %v1896
      %1902 = vrot.lane.b32.xlu0 %v1898, 32
      %v1903 = vpop.permute.xlu0 %1902
      %1904 = vrot.lane.b32.xlu0 %v1899, 32
      %v1905 = vpop.permute.xlu0 %1904
      %1908 = vst.msk [vmem:[#allocation3 + $0x8] sm:$0xff] %vm648, %v1903
      %1909 = vst.msk [vmem:[#allocation3 + $0x20] sm:$0xff] %vm648, %v1905
      %v1910 = vld [vmem:[#allocation2 + $0x17] sm:$0xff]
      %v1911 = vld [vmem:[#allocation2 + $0x1f] sm:$0xff]
      %v1912 = vld [vmem:[#allocation2 + $0x27] sm:$0xff]
      %v1913 = vld [vmem:[#allocation2 + $0x2f] sm:$0xff]
      %v1914 = vpack.c.bf16 %v1911, %v1910
      %v1915 = vpack.c.bf16 %v1913, %v1912
      %1918 = vrot.lane.b32.xlu0 %v1914, 64
      %v1919 = vpop.permute.xlu0 %1918
      %1920 = vrot.lane.b32.xlu0 %v1915, 64
      %v1921 = vpop.permute.xlu0 %1920
      %1924 = vst.msk [vmem:[#allocation3 + $0x8] sm:$0xff] %vm665, %v1919
      %1925 = vst.msk [vmem:[#allocation3 + $0x20] sm:$0xff] %vm665, %v1921
      %v1926 = vld [vmem:[#allocation2 + $0x18] sm:$0xff]
      %v1927 = vld [vmem:[#allocation2 + $0x20] sm:$0xff]
      %v1928 = vld [vmem:[#allocation2 + $0x28] sm:$0xff]
      %v1929 = vld [vmem:[#allocation2 + $0x30] sm:$0xff]
      %v1930 = vpack.c.bf16 %v1927, %v1926
      %v1931 = vpack.c.bf16 %v1929, %v1928
      %1934 = vrot.lane.b32.xlu0 %v1930, 96
      %v1935 = vpop.permute.xlu0 %1934
      %1936 = vrot.lane.b32.xlu0 %v1931, 96
      %v1937 = vpop.permute.xlu0 %1936
      %1940 = vst.msk [vmem:[#allocation3 + $0x8] sm:$0xff] %vm682, %v1935
      %1941 = vst.msk [vmem:[#allocation3 + $0x20] sm:$0xff] %vm682, %v1937
      %v1942 = vld [vmem:[#allocation2 + $0x19] sm:$0xff]
      %v1943 = vld [vmem:[#allocation2 + $0x21] sm:$0xff]
      %v1944 = vld [vmem:[#allocation2 + $0x29] sm:$0xff]
      %v1945 = vld [vmem:[#allocation2 + $0x31] sm:$0xff]
      %v1946 = vpack.c.bf16 %v1943, %v1942
      %v1947 = vpack.c.bf16 %v1945, %v1944
      %1948 = vst.msk [vmem:[#allocation3 + $0x10] sm:$0xff] %vm327, %v1946
      %1949 = vst.msk [vmem:[#allocation3 + $0x28] sm:$0xff] %vm327, %v1947
      %v1950 = vld [vmem:[#allocation3] sm:$0xff]
      %v1951 = vld [vmem:[#allocation3 + $0x8] sm:$0xff]
      %v1952 = vld [vmem:[#allocation3 + $0x10] sm:$0xff]
      %v1953 = vld [vmem:[#allocation3 + $0x18] sm:$0xff]
      %v1954 = vld [vmem:[#allocation3 + $0x20] sm:$0xff]
      %v1955 = vld [vmem:[#allocation3 + $0x28] sm:$0xff]
      %v1956 = vlaneseq
      %v1957 = vshrl.u32 %v1956, 7
      %v1958 = vsub.s32 0, %v1957
      %v1959 = vrot.slane %v1829, %v1958
      %v1996 = vunpack.c.l.b16 %v1793
      %v1997 = vunpack.c.l.b16 %v1794
      %v1998 = vunpack.c.l.b16 %v1795
      %v1999 = vunpack.c.l.b16 %v1796
      %v2000 = vunpack.c.l.b16 %v1797
      %v2001 = vunpack.c.l.b16 %v1798
      %v2002 = vunpack.c.l.b16 %v1799
      %v2003 = vunpack.c.l.b16 %v1800
      %v2004 = vunpack.c.l.b16 %v1801
      %v2005 = vunpack.c.l.b16 %v1802
      %v2006 = vunpack.c.l.b16 %v1803
      %v2007 = vunpack.c.l.b16 %v1804
      %v2008 = vunpack.c.l.b16 %v1805
      %v2009 = vunpack.c.l.b16 %v1806
      %v2010 = vunpack.c.l.b16 %v1807
      %v2011 = vunpack.c.l.b16 %v1808
      %v2012 = vunpack.c.l.b16 %v1809
      %v2013 = vunpack.c.l.b16 %v1810
      %v2014 = vunpack.c.l.b16 %v1811
      %v2015 = vunpack.c.l.b16 %v1812
      %v2016 = vunpack.c.l.b16 %v1813
      %v2017 = vunpack.c.l.b16 %v1814
      %v2018 = vunpack.c.l.b16 %v1815
      %v2019 = vunpack.c.l.b16 %v1816
      %v2020 = vunpack.c.l.b16 %v1817
      %v2021 = vunpack.c.l.b16 %v1818
      %v2022 = vunpack.c.l.b16 %v1819
      %v2023 = vunpack.c.l.b16 %v1820
      %v2024 = vunpack.c.l.b16 %v1821
      %v2025 = vunpack.c.l.b16 %v1822
      %v2026 = vunpack.c.l.b16 %v1823
      %v2027 = vunpack.c.l.b16 %v1824
      %v2028 = vunpack.c.l.b16 %v1825
      %v2029 = vunpack.c.l.b16 %v1826
      %v2030 = vunpack.c.l.b16 %v1827
      %v2031 = vunpack.c.l.b16 %v1828
      %v2032 = vpack.c.b16 %v1997, %v1996
      %v2033 = vpack.c.b16 %v1999, %v1998
      %v2034 = vpack.c.b16 %v2001, %v2000
      %v2035 = vpack.c.b16 %v2003, %v2002
      %v2036 = vpack.c.b16 %v2005, %v2004
      %v2037 = vpack.c.b16 %v2007, %v2006
      %v2038 = vpack.c.b16 %v2009, %v2008
      %v2039 = vpack.c.b16 %v2011, %v2010
      %v2040 = vpack.c.b16 %v2013, %v2012
      %v2041 = vpack.c.b16 %v2015, %v2014
      %v2042 = vpack.c.b16 %v2017, %v2016
      %v2043 = vpack.c.b16 %v2019, %v2018
      %v2044 = vpack.c.b16 %v2021, %v2020
      %v2045 = vpack.c.b16 %v2023, %v2022
      %v2046 = vpack.c.b16 %v2025, %v2024
      %v2047 = vpack.c.b16 %v2027, %v2026
      %v2048 = vpack.c.b16 %v2029, %v2028
      %v2049 = vpack.c.b16 %v2031, %v2030
      %v2069 = vsel %vm327, %v1952, 0
      %v2072 = vsel %vm327, %v1955, 0
      %2074 = vmatprep.subr.bf16.mxu0 0
      %2075 = vmatpush1.bf16.msra.mxu0 %v2032
      %2076 = vmatprep.subr.bf16.mxu0 0
      %2077 = vmatpush1.bf16.msra.mxu0 %v2033
      %2078 = vmatprep.subr.bf16.mxu0 0
      %2079 = vmatpush1.bf16.msra.mxu0 %v2034
      %2080 = vmatprep.subr.bf16.mxu0 0
      %2081 = vmatpush1.bf16.msra.mxu0 %v2035
      %2082 = vmatprep.subr.bf16.mxu0 0
      %2083 = vmatpush1.bf16.msra.mxu0 %v2036
      %2084 = vmatprep.subr.bf16.mxu0 0
      %2085 = vmatpush1.bf16.msra.mxu0 %v2037
      %2086 = vmatprep.subr.bf16.mxu0 0
      %2087 = vmatpush1.bf16.msra.mxu0 %v2038
      %2088 = vmatprep.subr.bf16.mxu0 0
      %2089 = vmatpush1.bf16.msra.mxu0 %v2039
      %2090 = vmatprep.subr.bf16.mxu0 0
      %2091 = vmatpush1.bf16.msra.mxu0 %v2040
      %2092 = vmatprep.subr.bf16.mxu0 0
      %2093 = vmatpush1.bf16.msra.mxu0 %v2041
      %2094 = vmatprep.subr.bf16.mxu0 0
      %2095 = vmatpush1.bf16.msra.mxu0 %v2042
      %2096 = vmatprep.subr.bf16.mxu0 0
      %2097 = vmatpush1.bf16.msra.mxu0 %v2043
      %2098 = vmatprep.subr.bf16.mxu0 0
      %2099 = vmatpush1.bf16.msra.mxu0 %v2044
      %2100 = vmatprep.subr.bf16.mxu0 0
      %2101 = vmatpush1.bf16.msra.mxu0 %v2045
      %2102 = vmatprep.subr.bf16.mxu0 0
      %2103 = vmatpush1.bf16.msra.mxu0 %v2046
      %2104 = vmatprep.subr.bf16.mxu0 0
      %2105 = vmatpush1.bf16.msra.mxu0 %v2047
      %2106 = vmatprep.mubr.bf16.mxu0 %v1951
      %2107 = vmatmul.mubr.bf16.gmra.mrb[0].mxu0 %v1950
      %v2108 = vpop.f32.mrb[0].mxu0
      %v2109 = vadd.f32 %v1959, %v2108
      %v2110 = vpop.f32.mrb[0].mxu0
      %v2111 = vpop.f32.mrb[0].mxu0
      %v2112 = vadd.f32 %v1959, %v2111
      %v2113 = vpop.f32.mrb[0].mxu0
      %2114 = vmatprep.mubr.bf16.mxu0 %v1954
      %2115 = vmatmul.mubr.bf16.gmra.mrb[0].mxu0 %v1953
      %v2116 = vpop.f32.mrb[0].mxu0
      %v2117 = vadd.f32 %v1959, %v2116
      %v2118 = vpop.f32.mrb[0].mxu0
      %v2119 = vpop.f32.mrb[0].mxu0
      %v2120 = vadd.f32 %v1959, %v2119
      %v2121 = vpop.f32.mrb[0].mxu0
      %2122 = vdwg.mxu0
      %2123 = vmatprep.subr.bf16.mxu0 0
      %2124 = vmatpush1.bf16.msra.mxu0 %v2048
      %2125 = vmatprep.subr.bf16.mxu0 0
      %2126 = vmatpush1.bf16.msra.mxu0 %v2049
      %2127 = vmatprep.subr.bf16.mxu0 0
      %2128 = vmatpush1.bf16.msra.mxu0 0
      %2129 = vmatprep.subr.bf16.mxu0 0
      %2130 = vmatpush1.bf16.msra.mxu0 0
      %2131 = vmatprep.subr.bf16.mxu0 0
      %2132 = vmatpush1.bf16.msra.mxu0 0
      %2133 = vmatprep.subr.bf16.mxu0 0
      %2134 = vmatpush1.bf16.msra.mxu0 0
      %2135 = vmatprep.subr.bf16.mxu0 0
      %2136 = vmatpush1.bf16.msra.mxu0 0
      %2137 = vmatprep.subr.bf16.mxu0 0
      %2138 = vmatpush1.bf16.msra.mxu0 0
      %2139 = vmatprep.subr.bf16.mxu0 0
      %2140 = vmatpush1.bf16.msra.mxu0 0
      %2141 = vmatprep.subr.bf16.mxu0 0
      %2142 = vmatpush1.bf16.msra.mxu0 0
      %2143 = vmatprep.subr.bf16.mxu0 0
      %2144 = vmatpush1.bf16.msra.mxu0 0
      %2145 = vmatprep.subr.bf16.mxu0 0
      %2146 = vmatpush1.bf16.msra.mxu0 0
      %2147 = vmatprep.subr.bf16.mxu0 0
      %2148 = vmatpush1.bf16.msra.mxu0 0
      %2149 = vmatprep.subr.bf16.mxu0 0
      %2150 = vmatpush1.bf16.msra.mxu0 0
      %2151 = vmatprep.subr.bf16.mxu0 0
      %2152 = vmatpush1.bf16.msra.mxu0 0
      %2153 = vmatprep.subr.bf16.mxu0 0
      %2154 = vmatpush1.bf16.msra.mxu0 0
      %2155 = vmatprep.mubr.bf16.mxu0 0
      %2156 = vmatmul.mubr.bf16.gmra.mrb[0].mxu0 %v2069
      %v2157 = vpop.f32.mrb[0].mxu0
      %v2158 = vadd.f32 %v2109, %v2157
      %v2159 = vpop.f32.mrb[0].mxu0
      %v2160 = vpop.f32.mrb[0].mxu0
      %v2161 = vadd.f32 %v2112, %v2160
      %v2162 = vpop.f32.mrb[0].mxu0
      %2163 = vmatprep.mubr.bf16.mxu0 0
      %2164 = vmatmul.mubr.bf16.gmra.mrb[0].mxu0 %v2072
      %v2165 = vpop.f32.mrb[0].mxu0
      %v2166 = vadd.f32 %v2117, %v2165
      %v2167 = vpop.f32.mrb[0].mxu0
      %v2168 = vpop.f32.mrb[0].mxu0
      %v2169 = vadd.f32 %v2120, %v2168
      %v2170 = vpop.f32.mrb[0].mxu0
      %2171 = vdwg.mxu0
      %v2172 = vadd.f32 %v1382, %v2158
      %v2173 = vadd.f32 %v1383, %v2161
      %v2174 = vadd.f32 %v1384, %v2166
      %v2175 = vadd.f32 %v1385, %v2169
      %vm2176 = vcmp.gt.f32.partialorder %v2172, 0.0
      %vm2177 = vcmp.gt.f32.partialorder %v2173, 0.0
      %vm2178 = vcmp.gt.f32.partialorder %v2174, 0.0
      %vm2179 = vcmp.gt.f32.partialorder %v2175, 0.0
      %v2180 = vmul.f32 %v2172, 0.2
      %v2181 = vmul.f32 %v2173, 0.2
      %v2182 = vmul.f32 %v2174, 0.2
      %v2183 = vmul.f32 %v2175, 0.2
      %v2184 = vsel %vm2176, %v2172, %v2180
      %v2185 = vsel %vm2177, %v2173, %v2181
      %v2186 = vsel %vm2178, %v2174, %v2182
      %v2187 = vsel %vm2179, %v2175, %v2183
      %v2188 = vmul.f32 %v2184, %v401
      %v2189 = vmul.f32 %v2185, %v402
      %v2190 = vmul.f32 %v2186, %v403
      %v2191 = vmul.f32 %v2187, %v404
      %2192 = vst.msk [vmem:[#allocation2 + $0x10] sm:$0xff] %vm327, %v2188
      %2193 = vst.msk [vmem:[#allocation2 + $0x18] sm:$0xff] %vm327, %v2189
      %2194 = vst.msk [vmem:[#allocation2 + $0x20] sm:$0xff] %vm327, %v2190
      %2195 = vst.msk [vmem:[#allocation2 + $0x28] sm:$0xff] %vm327, %v2191
      %v2196 = vld [vmem:[%s6] sm:$0xf]
      %v2197 = vld [vmem:[%s6 + $0x4] sm:$0xf]
      %v2198 = vld [vmem:[%s6 + $0x8] sm:$0xf]
      %v2199 = vld [vmem:[%s6 + $0xc] sm:$0xf]
      %v2200 = vld [vmem:[%s6 + $0x10] sm:$0xf]
      %v2201 = vld [vmem:[%s6 + $0x14] sm:$0xf]
      %v2202 = vld [vmem:[%s6 + $0x18] sm:$0xf]
      %v2203 = vld [vmem:[%s6 + $0x1c] sm:$0xf]
      %v2204 = vld [vmem:[%s6 + $0x20] sm:$0xf]
      %v2205 = vld [vmem:[%s6 + $0x24] sm:$0xf]
      %v2206 = vld [vmem:[%s6 + $0x28] sm:$0xf]
      %v2207 = vld [vmem:[%s6 + $0x2c] sm:$0xf]
      %v2208 = vld [vmem:[%s6 + $0x30] sm:$0xf]
      %v2209 = vld [vmem:[%s6 + $0x34] sm:$0xf]
      %v2210 = vld [vmem:[%s6 + $0x38] sm:$0xf]
      %v2211 = vld [vmem:[%s6 + $0x3c] sm:$0xf]
      %v2212 = vld [vmem:[%s6 + $0x40] sm:$0xf]
      %v2213 = vld [vmem:[%s6 + $0x44] sm:$0xf]
      %v2214 = vld [vmem:[%s6 + $0x48] sm:$0xf]
      %v2215 = vld [vmem:[%s6 + $0x4c] sm:$0xf]
      %v2216 = vld [vmem:[%s6 + $0x50] sm:$0xf]
      %v2217 = vld [vmem:[%s6 + $0x54] sm:$0xf]
      %v2218 = vld [vmem:[%s6 + $0x58] sm:$0xf]
      %v2219 = vld [vmem:[%s6 + $0x5c] sm:$0xf]
      %v2220 = vld [vmem:[%s6 + $0x60] sm:$0xf]
      %v2221 = vld [vmem:[%s6 + $0x64] sm:$0xf]
      %v2222 = vld [vmem:[%s6 + $0x68] sm:$0xf]
      %v2223 = vld [vmem:[%s6 + $0x6c] sm:$0xf]
      %v2224 = vld [vmem:[%s6 + $0x70] sm:$0xf]
      %v2225 = vld [vmem:[%s6 + $0x74] sm:$0xf]
      %v2226 = vld [vmem:[%s6 + $0x78] sm:$0xf]
      %v2227 = vld [vmem:[%s6 + $0x7c] sm:$0xf]
      %v2228 = vld [vmem:[%s6 + $0x80] sm:$0xf]
      %v2229 = vld [vmem:[%s6 + $0x84] sm:$0xf]
      %v2230 = vld [vmem:[%s6 + $0x88] sm:$0xf]
      %v2231 = vld [vmem:[%s6 + $0x8c] sm:$0xf]
      %v2232 = vld [vmem:[%s7] sm:$0x1]
      %v2233 = vld [vmem:[#allocation2 + $0x7] sm:$0xff]
      %v2234 = vld [vmem:[#allocation2 + $0xf] sm:$0xff]
      %v2235 = vld [vmem:[#allocation2 + $0x17] sm:$0xff]
      %v2236 = vld [vmem:[#allocation2 + $0x1f] sm:$0xff]
      %v2237 = vpack.c.bf16 %v2234, %v2233
      %v2238 = vpack.c.bf16 %v2236, %v2235
      %2239 = vst.msk [vmem:[#allocation3] sm:$0xff] %vm327, %v2237
      %2240 = vst.msk [vmem:[#allocation3 + $0x18] sm:$0xff] %vm327, %v2238
      %v2241 = vld [vmem:[#allocation2 + $0x8] sm:$0xff]
      %v2242 = vld [vmem:[#allocation2 + $0x10] sm:$0xff]
      %v2243 = vld [vmem:[#allocation2 + $0x18] sm:$0xff]
      %v2244 = vld [vmem:[#allocation2 + $0x20] sm:$0xff]
      %v2245 = vpack.c.bf16 %v2242, %v2241
      %v2246 = vpack.c.bf16 %v2244, %v2243
      %2249 = vrot.lane.b32.xlu0 %v2245, 32
      %v2250 = vpop.permute.xlu0 %2249
      %2251 = vrot.lane.b32.xlu0 %v2246, 32
      %v2252 = vpop.permute.xlu0 %2251
      %2255 = vst.msk [vmem:[#allocation3] sm:$0xff] %vm648, %v2250
      %2256 = vst.msk [vmem:[#allocation3 + $0x18] sm:$0xff] %vm648, %v2252
      %v2257 = vld [vmem:[#allocation2 + $0x9] sm:$0xff]
      %v2258 = vld [vmem:[#allocation2 + $0x11] sm:$0xff]
      %v2259 = vld [vmem:[#allocation2 + $0x19] sm:$0xff]
      %v2260 = vld [vmem:[#allocation2 + $0x21] sm:$0xff]
      %v2261 = vpack.c.bf16 %v2258, %v2257
      %v2262 = vpack.c.bf16 %v2260, %v2259
      %2265 = vrot.lane.b32.xlu0 %v2261, 64
      %v2266 = vpop.permute.xlu0 %2265
      %2267 = vrot.lane.b32.xlu0 %v2262, 64
      %v2268 = vpop.permute.xlu0 %2267
      %2271 = vst.msk [vmem:[#allocation3] sm:$0xff] %vm665, %v2266
      %2272 = vst.msk [vmem:[#allocation3 + $0x18] sm:$0xff] %vm665, %v2268
      %v2273 = vld [vmem:[#allocation2 + $0xf] sm:$0xff]
      %v2274 = vld [vmem:[#allocation2 + $0x17] sm:$0xff]
      %v2275 = vld [vmem:[#allocation2 + $0x1f] sm:$0xff]
      %v2276 = vld [vmem:[#allocation2 + $0x27] sm:$0xff]
      %v2277 = vpack.c.bf16 %v2274, %v2273
      %v2278 = vpack.c.bf16 %v2276, %v2275
      %2281 = vrot.lane.b32.xlu0 %v2277, 96
      %v2282 = vpop.permute.xlu0 %2281
      %2283 = vrot.lane.b32.xlu0 %v2278, 96
      %v2284 = vpop.permute.xlu0 %2283
      %2287 = vst.msk [vmem:[#allocation3] sm:$0xff] %vm682, %v2282
      %2288 = vst.msk [vmem:[#allocation3 + $0x18] sm:$0xff] %vm682, %v2284
      %v2289 = vld [vmem:[#allocation2 + $0x10] sm:$0xff]
      %v2290 = vld [vmem:[#allocation2 + $0x18] sm:$0xff]
      %v2291 = vld [vmem:[#allocation2 + $0x20] sm:$0xff]
      %v2292 = vld [vmem:[#allocation2 + $0x28] sm:$0xff]
      %v2293 = vpack.c.bf16 %v2290, %v2289
      %v2294 = vpack.c.bf16 %v2292, %v2291
      %2295 = vst.msk [vmem:[#allocation3 + $0x8] sm:$0xff] %vm327, %v2293
      %2296 = vst.msk [vmem:[#allocation3 + $0x20] sm:$0xff] %vm327, %v2294
      %v2297 = vld [vmem:[#allocation2 + $0x11] sm:$0xff]
      %v2298 = vld [vmem:[#allocation2 + $0x19] sm:$0xff]
      %v2299 = vld [vmem:[#allocation2 + $0x21] sm:$0xff]
      %v2300 = vld [vmem:[#allocation2 + $0x29] sm:$0xff]
      %v2301 = vpack.c.bf16 %v2298, %v2297
      %v2302 = vpack.c.bf16 %v2300, %v2299
      %2305 = vrot.lane.b32.xlu0 %v2301, 32
      %v2306 = vpop.permute.xlu0 %2305
      %2307 = vrot.lane.b32.xlu0 %v2302, 32
      %v2308 = vpop.permute.xlu0 %2307
      %2311 = vst.msk [vmem:[#allocation3 + $0x8] sm:$0xff] %vm648, %v2306
      %2312 = vst.msk [vmem:[#allocation3 + $0x20] sm:$0xff] %vm648, %v2308
      %v2313 = vld [vmem:[#allocation2 + $0x17] sm:$0xff]
      %v2314 = vld [vmem:[#allocation2 + $0x1f] sm:$0xff]
      %v2315 = vld [vmem:[#allocation2 + $0x27] sm:$0xff]
      %v2316 = vld [vmem:[#allocation2 + $0x2f] sm:$0xff]
      %v2317 = vpack.c.bf16 %v2314, %v2313
      %v2318 = vpack.c.bf16 %v2316, %v2315
      %2321 = vrot.lane.b32.xlu0 %v2317, 64
      %v2322 = vpop.permute.xlu0 %2321
      %2323 = vrot.lane.b32.xlu0 %v2318, 64
      %v2324 = vpop.permute.xlu0 %2323
      %2327 = vst.msk [vmem:[#allocation3 + $0x8] sm:$0xff] %vm665, %v2322
      %2328 = vst.msk [vmem:[#allocation3 + $0x20] sm:$0xff] %vm665, %v2324
      %v2329 = vld [vmem:[#allocation2 + $0x18] sm:$0xff]
      %v2330 = vld [vmem:[#allocation2 + $0x20] sm:$0xff]
      %v2331 = vld [vmem:[#allocation2 + $0x28] sm:$0xff]
      %v2332 = vld [vmem:[#allocation2 + $0x30] sm:$0xff]
      %v2333 = vpack.c.bf16 %v2330, %v2329
      %v2334 = vpack.c.bf16 %v2332, %v2331
      %2337 = vrot.lane.b32.xlu0 %v2333, 96
      %v2338 = vpop.permute.xlu0 %2337
      %2339 = vrot.lane.b32.xlu0 %v2334, 96
      %v2340 = vpop.permute.xlu0 %2339
      %2343 = vst.msk [vmem:[#allocation3 + $0x8] sm:$0xff] %vm682, %v2338
      %2344 = vst.msk [vmem:[#allocation3 + $0x20] sm:$0xff] %vm682, %v2340
      %v2345 = vld [vmem:[#allocation2 + $0x19] sm:$0xff]
      %v2346 = vld [vmem:[#allocation2 + $0x21] sm:$0xff]
      %v2347 = vld [vmem:[#allocation2 + $0x29] sm:$0xff]
      %v2348 = vld [vmem:[#allocation2 + $0x31] sm:$0xff]
      %v2349 = vpack.c.bf16 %v2346, %v2345
      %v2350 = vpack.c.bf16 %v2348, %v2347
      %2351 = vst.msk [vmem:[#allocation3 + $0x10] sm:$0xff] %vm327, %v2349
      %2352 = vst.msk [vmem:[#allocation3 + $0x28] sm:$0xff] %vm327, %v2350
      %v2353 = vld [vmem:[#allocation3] sm:$0xff]
      %v2354 = vld [vmem:[#allocation3 + $0x8] sm:$0xff]
      %v2355 = vld [vmem:[#allocation3 + $0x10] sm:$0xff]
      %v2356 = vld [vmem:[#allocation3 + $0x18] sm:$0xff]
      %v2357 = vld [vmem:[#allocation3 + $0x20] sm:$0xff]
      %v2358 = vld [vmem:[#allocation3 + $0x28] sm:$0xff]
      %v2360 = vlaneseq
      %v2361 = vshrl.u32 %v2360, 7
      %v2362 = vsub.s32 0, %v2361
      %v2363 = vrot.slane %v2232, %v2362
      %v2401 = vunpack.c.l.b16 %v2196
      %v2402 = vunpack.c.l.b16 %v2197
      %v2403 = vunpack.c.l.b16 %v2198
      %v2404 = vunpack.c.l.b16 %v2199
      %v2405 = vunpack.c.l.b16 %v2200
      %v2406 = vunpack.c.l.b16 %v2201
      %v2407 = vunpack.c.l.b16 %v2202
      %v2408 = vunpack.c.l.b16 %v2203
      %v2409 = vunpack.c.l.b16 %v2204
      %v2410 = vunpack.c.l.b16 %v2205
      %v2411 = vunpack.c.l.b16 %v2206
      %v2412 = vunpack.c.l.b16 %v2207
      %v2413 = vunpack.c.l.b16 %v2208
      %v2414 = vunpack.c.l.b16 %v2209
      %v2415 = vunpack.c.l.b16 %v2210
      %v2416 = vunpack.c.l.b16 %v2211
      %v2417 = vunpack.c.l.b16 %v2212
      %v2418 = vunpack.c.l.b16 %v2213
      %v2419 = vunpack.c.l.b16 %v2214
      %v2420 = vunpack.c.l.b16 %v2215
      %v2421 = vunpack.c.l.b16 %v2216
      %v2422 = vunpack.c.l.b16 %v2217
      %v2423 = vunpack.c.l.b16 %v2218
      %v2424 = vunpack.c.l.b16 %v2219
      %v2425 = vunpack.c.l.b16 %v2220
      %v2426 = vunpack.c.l.b16 %v2221
      %v2427 = vunpack.c.l.b16 %v2222
      %v2428 = vunpack.c.l.b16 %v2223
      %v2429 = vunpack.c.l.b16 %v2224
      %v2430 = vunpack.c.l.b16 %v2225
      %v2431 = vunpack.c.l.b16 %v2226
      %v2432 = vunpack.c.l.b16 %v2227
      %v2433 = vunpack.c.l.b16 %v2228
      %v2434 = vunpack.c.l.b16 %v2229
      %v2435 = vunpack.c.l.b16 %v2230
      %v2436 = vunpack.c.l.b16 %v2231
      %v2437 = vpack.c.b16 %v2402, %v2401
      %v2438 = vpack.c.b16 %v2404, %v2403
      %v2439 = vpack.c.b16 %v2406, %v2405
      %v2440 = vpack.c.b16 %v2408, %v2407
      %v2441 = vpack.c.b16 %v2410, %v2409
      %v2442 = vpack.c.b16 %v2412, %v2411
      %v2443 = vpack.c.b16 %v2414, %v2413
      %v2444 = vpack.c.b16 %v2416, %v2415
      %v2445 = vpack.c.b16 %v2418, %v2417
      %v2446 = vpack.c.b16 %v2420, %v2419
      %v2447 = vpack.c.b16 %v2422, %v2421
      %v2448 = vpack.c.b16 %v2424, %v2423
      %v2449 = vpack.c.b16 %v2426, %v2425
      %v2450 = vpack.c.b16 %v2428, %v2427
      %v2451 = vpack.c.b16 %v2430, %v2429
      %v2452 = vpack.c.b16 %v2432, %v2431
      %v2453 = vpack.c.b16 %v2434, %v2433
      %v2454 = vpack.c.b16 %v2436, %v2435
      %v2474 = vsel %vm327, %v2355, 0
      %v2477 = vsel %vm327, %v2358, 0
      %2479 = vmatprep.subr.bf16.mxu0 0
      %2480 = vmatpush1.bf16.msra.mxu0 %v2437
      %2481 = vmatprep.subr.bf16.mxu0 0
      %2482 = vmatpush1.bf16.msra.mxu0 %v2438
      %2483 = vmatprep.subr.bf16.mxu0 0
      %2484 = vmatpush1.bf16.msra.mxu0 %v2439
      %2485 = vmatprep.subr.bf16.mxu0 0
      %2486 = vmatpush1.bf16.msra.mxu0 %v2440
      %2487 = vmatprep.subr.bf16.mxu0 0
      %2488 = vmatpush1.bf16.msra.mxu0 %v2441
      %2489 = vmatprep.subr.bf16.mxu0 0
      %2490 = vmatpush1.bf16.msra.mxu0 %v2442
      %2491 = vmatprep.subr.bf16.mxu0 0
      %2492 = vmatpush1.bf16.msra.mxu0 %v2443
      %2493 = vmatprep.subr.bf16.mxu0 0
      %2494 = vmatpush1.bf16.msra.mxu0 %v2444
      %2495 = vmatprep.subr.bf16.mxu0 0
      %2496 = vmatpush1.bf16.msra.mxu0 %v2445
      %2497 = vmatprep.subr.bf16.mxu0 0
      %2498 = vmatpush1.bf16.msra.mxu0 %v2446
      %2499 = vmatprep.subr.bf16.mxu0 0
      %2500 = vmatpush1.bf16.msra.mxu0 %v2447
      %2501 = vmatprep.subr.bf16.mxu0 0
      %2502 = vmatpush1.bf16.msra.mxu0 %v2448
      %2503 = vmatprep.subr.bf16.mxu0 0
      %2504 = vmatpush1.bf16.msra.mxu0 %v2449
      %2505 = vmatprep.subr.bf16.mxu0 0
      %2506 = vmatpush1.bf16.msra.mxu0 %v2450
      %2507 = vmatprep.subr.bf16.mxu0 0
      %2508 = vmatpush1.bf16.msra.mxu0 %v2451
      %2509 = vmatprep.subr.bf16.mxu0 0
      %2510 = vmatpush1.bf16.msra.mxu0 %v2452
      %2511 = vmatprep.mubr.bf16.mxu0 %v2354
      %2512 = vmatmul.mubr.bf16.gmra.mrb[0].mxu0 %v2353
      %v2513 = vpop.f32.mrb[0].mxu0
      %v2514 = vadd.f32 %v2363, %v2513
      %v2515 = vpop.f32.mrb[0].mxu0
      %v2516 = vpop.f32.mrb[0].mxu0
      %v2517 = vadd.f32 %v2363, %v2516
      %v2518 = vpop.f32.mrb[0].mxu0
      %2519 = vmatprep.mubr.bf16.mxu0 %v2357
      %2520 = vmatmul.mubr.bf16.gmra.mrb[0].mxu0 %v2356
      %v2521 = vpop.f32.mrb[0].mxu0
      %v2522 = vadd.f32 %v2363, %v2521
      %v2523 = vpop.f32.mrb[0].mxu0
      %v2524 = vpop.f32.mrb[0].mxu0
      %v2525 = vadd.f32 %v2363, %v2524
      %v2526 = vpop.f32.mrb[0].mxu0
      %2527 = vdwg.mxu0
      %2528 = vmatprep.subr.bf16.mxu0 0
      %2529 = vmatpush1.bf16.msra.mxu0 %v2453
      %2530 = vmatprep.subr.bf16.mxu0 0
      %2531 = vmatpush1.bf16.msra.mxu0 %v2454
      %2532 = vmatprep.subr.bf16.mxu0 0
      %2533 = vmatpush1.bf16.msra.mxu0 0
      %2534 = vmatprep.subr.bf16.mxu0 0
      %2535 = vmatpush1.bf16.msra.mxu0 0
      %2536 = vmatprep.subr.bf16.mxu0 0
      %2537 = vmatpush1.bf16.msra.mxu0 0
      %2538 = vmatprep.subr.bf16.mxu0 0
      %2539 = vmatpush1.bf16.msra.mxu0 0
      %2540 = vmatprep.subr.bf16.mxu0 0
      %2541 = vmatpush1.bf16.msra.mxu0 0
      %2542 = vmatprep.subr.bf16.mxu0 0
      %2543 = vmatpush1.bf16.msra.mxu0 0
      %2544 = vmatprep.subr.bf16.mxu0 0
      %2545 = vmatpush1.bf16.msra.mxu0 0
      %2546 = vmatprep.subr.bf16.mxu0 0
      %2547 = vmatpush1.bf16.msra.mxu0 0
      %2548 = vmatprep.subr.bf16.mxu0 0
      %2549 = vmatpush1.bf16.msra.mxu0 0
      %2550 = vmatprep.subr.bf16.mxu0 0
      %2551 = vmatpush1.bf16.msra.mxu0 0
      %2552 = vmatprep.subr.bf16.mxu0 0
      %2553 = vmatpush1.bf16.msra.mxu0 0
      %2554 = vmatprep.subr.bf16.mxu0 0
      %2555 = vmatpush1.bf16.msra.mxu0 0
      %2556 = vmatprep.subr.bf16.mxu0 0
      %2557 = vmatpush1.bf16.msra.mxu0 0
      %2558 = vmatprep.subr.bf16.mxu0 0
      %2559 = vmatpush1.bf16.msra.mxu0 0
      %2560 = vmatprep.mubr.bf16.mxu0 0
      %2561 = vmatmul.mubr.bf16.gmra.mrb[0].mxu0 %v2474
      %v2562 = vpop.f32.mrb[0].mxu0
      %v2563 = vadd.f32 %v2514, %v2562
      %v2564 = vpop.f32.mrb[0].mxu0
      %v2565 = vpop.f32.mrb[0].mxu0
      %v2566 = vadd.f32 %v2517, %v2565
      %v2567 = vpop.f32.mrb[0].mxu0
      %2568 = vmatprep.mubr.bf16.mxu0 0
      %2569 = vmatmul.mubr.bf16.gmra.mrb[0].mxu0 %v2477
      %v2570 = vpop.f32.mrb[0].mxu0
      %v2571 = vadd.f32 %v2522, %v2570
      %v2572 = vpop.f32.mrb[0].mxu0
      %v2573 = vpop.f32.mrb[0].mxu0
      %v2574 = vadd.f32 %v2525, %v2573
      %v2575 = vpop.f32.mrb[0].mxu0
      %2576 = vdwg.mxu0
      %v2577 = vld [vmem:[%s320] sm:$0xff]
      %v2578 = vld [vmem:[%s320 + $0x8] sm:$0xff]
      %v2579 = vld [vmem:[%s320 + $0x10] sm:$0xff]
      %v2580 = vld [vmem:[%s320 + $0x18] sm:$0xff]
      %v2581 = vadd.f32 %v2563, %v2577
      %v2582 = vadd.f32 %v2566, %v2578
      %v2583 = vadd.f32 %v2571, %v2579
      %v2584 = vadd.f32 %v2574, %v2580
      %v2585 = vlaneseq
      %v2586 = vand.u32 %v2585, 127
      %vm2587 = vcmp.eq.s32.totalorder %v2586, 0
      %vm2588 = vcmp.eq.s32.totalorder %v2586, 16
      %vm2589 = vmor %vm2587, %vm2588
      %v2590 = vmax.f32 %v2581, 0.0
      %v2591 = vmax.f32 %v2582, 0.0
      %v2592 = vmax.f32 %v2583, 0.0
      %v2593 = vmax.f32 %v2584, 0.0
      %v2594 = vsel %vm2589, 1, 0
      %vm2595 = vcmp.eq.s32.totalorder %v2594, 1
      %v2596 = vsel %vm2595, %v2590, %v2581
      %v2597 = vsel %vm2595, %v2591, %v2582
      %v2598 = vsel %vm2595, %v2592, %v2583
      %v2599 = vsel %vm2595, %v2593, %v2584
      %vm2600 = vcmask 277504
      %2601 = vst.msk [vmem:[%s325] sm:$0xff] %vm2600, %v2596
      %2602 = vst.msk [vmem:[%s325 + $0x8] sm:$0xff] %vm2600, %v2597
      %2603 = vst.msk [vmem:[%s325 + $0x10] sm:$0xff] %vm2600, %v2598
      %2604 = vst.msk [vmem:[%s325 + $0x18] sm:$0xff] %vm2600, %v2599
      %p2605 = scmp.lt.s32.totalorder %s19, 1
      %s2606 = scalar_select %p2605, %s19, 1
      %s2607 = smul.addr %s2606, 4
      %s2608 = smul.addr %s2607, 8
      %s2609 = scalar_lea.vmem %s8, %s2608
      // Predicated region
      $region53: #{_lambda_.1} parent=51 // pred_check
        %p2610 = pneg %p215
      $region54: #{_lambda_.1} parent=51 // pred_check_branch
        %2612 = sbr.rel (%p2610) target = $region56
      $region55: #{_lambda_.1} parent=51 // pred_region
        _
      $region56: #{_lambda_.1} parent=51 // pred_fallthru
        _
    $region52: #{_lambda_.1} parent=5 // pred_fallthru
      _
    %p2613 = scmp.le.s32.totalorder 2, %s14
    // Predicated region
    $region57: #{_lambda_.1} parent=5 // pred_check
      %p2614 = pneg %p2613
    $region58: #{_lambda_.1} parent=5 // pred_check_branch
      %2616 = sbr.rel (%p2614) target = $region60
    $region59: #{_lambda_.1} parent=5 // pred_region
      %s2617 = ssub.s32 %s14, 2
      // Predicated region
      $region61: #{_lambda_.1} parent=59 // pred_check
        %p2618 = pneg %p221
      $region62: #{_lambda_.1} parent=59 // pred_check_branch
        %2620 = sbr.rel (%p2618) target = $region64
      $region63: #{_lambda_.1} parent=59 // pred_region
        %p2621 = scmp.lt.s32.totalorder %s20, 1
        %s2622 = scalar_select %p2621, %s20, 1
        %s2623 = smul.addr %s2622, 4
        %s2624 = smul.addr %s2623, 8
        %s2625 = scalar_lea.vmem %s8, %s2624
      $region64: #{_lambda_.1} parent=59 // pred_fallthru
        _
    $region60: #{_lambda_.1} parent=5 // pred_fallthru
      _
  $region6: #{_lambda_.1} parent=0 // loop_footer
    %s18 = sadd.s32 1, %s14
  $region7: #{_lambda_.1} parent=0 // loop_footer_branch
    %13 = sbr.rel target = $region3
  $region8: #{_lambda_.1} parent=0 // loop_exit
    _

</llo_original>
